<compile_context>
chip_gen: v7x
topology: tpu7x:2x2x1
jax: 0.10.0
libtpu: 0.0.40
codegen_flags: <defaults>
</compile_context>

<pallas_src>
import functools

import jax
import jax.numpy as jnp
from jax.experimental import pallas as pl
from jax.experimental.pallas import tpu as pltpu

BN_EPS = 1e-5
VMEM_LIMIT_BYTES = 32 * 1024 * 1024   # explicit scoped-VMEM cap (safe on v5e/v6e/v7x)
MATMUL_ROW_TILE = 512                 # target row tile for the matmul kernels
BN_ROW_TILE = 1024                    # target row tile for the bn/relu pass
A_TILE_BUDGET = 4 * 1024 * 1024       # bf16 bytes allowed for one (tm, K) LHS tile


def _round_up(x, m):
    return (x + m - 1) // m * m


# --------------------------------------------------------------------------- #
# Pallas kernels
# --------------------------------------------------------------------------- #
def pmm_stats_kernel(x_ref, w_ref, y_ref, stats_ref, acc_ref):
    """Per-phase matmul (bf16 x bf16 -> f32 accumulate) + per-channel sum/sum-sq.

    grid = (n_phases, m_tiles).  The phase axis is 'parallel' (per-phase partial
    statistics are independent, so it may be sharded across TensorCores); the
    row-tile axis is 'arbitrary' and carries the stats accumulator, which is
    re-initialized at the first row tile of every phase and flushed at the last.
    """
    i = pl.program_id(1)

    @pl.when(i == 0)
    def _init():
        acc_ref[...] = jnp.zeros_like(acc_ref)

    y = jnp.dot(x_ref[...], w_ref[...], preferred_element_type=jnp.float32)
    y_ref[...] = y.astype(y_ref.dtype)

    # Channel sums on the MXU (ones-row dot) instead of an XLU sublane reduce.
    ones_row = jnp.ones((1, y.shape[0]), jnp.float32)
    s1 = jnp.dot(ones_row, y, preferred_element_type=jnp.float32)
    s2 = jnp.dot(ones_row, y * y, preferred_element_type=jnp.float32)
    acc_ref[...] = acc_ref[...] + jnp.concatenate([s1, s2], axis=0)

    @pl.when(i == pl.num_programs(1) - 1)
    def _flush():
        stats_ref[...] = acc_ref[...]


def pmm_tanh_kernel(x_ref, w_ref, y_ref):
    """Per-phase matmul with fused tanh (last layer)."""
    y = jnp.dot(x_ref[...], w_ref[...], preferred_element_type=jnp.float32)
    y_ref[...] = jnp.tanh(y)


def bn_relu_kernel(y_ref, stats_ref, gamma_ref, beta_ref, o_ref, *, count):
    """Training-mode BatchNorm (batch statistics, biased variance) + ReLU."""
    inv_n = 1.0 / count
    mean = stats_ref[0:1, :] * inv_n
    var = stats_ref[1:2, :] * inv_n - mean * mean
    inv = jax.lax.rsqrt(var + BN_EPS)
    yhat = (y_ref[...].astype(jnp.float32) - mean) * inv
    o_ref[...] = jnp.maximum(yhat * gamma_ref[...] + beta_ref[...], 0.0).astype(o_ref.dtype)


# --------------------------------------------------------------------------- #
# Phased matmul driver
# --------------------------------------------------------------------------- #
def _phased_matmul(patches, weights, *, epilogue, out_dtype):
    """patches: (1 or P, M, K) bf16, weights: (P, K, C) bf16.

    One pallas_call over grid (P, M_pad // tm).  Returns
      y     : (P, M_pad, C) in `out_dtype`
      stats : (P, 2, C) f32 per-phase [sum, sum_sq]  (None for the tanh path)
    Rows are zero-padded to a multiple of the tile: no output rows are dropped
    and the zero rows contribute nothing to the statistics.
    """
    pp, m, kk = patches.shape
    n_ph, _, c_out = weights.shape

    tm = min(MATMUL_ROW_TILE, _round_up(m, 8))
    # Cap the bf16 LHS tile so double buffering fits comfortably (v7x: 64 MiB VMEM).
    tm = max(8, min(tm, max(8, (A_TILE_BUDGET // (2 * kk)) // 8 * 8)))
    m_pad = _round_up(m, tm)
    if m_pad != m:
        patches = jnp.pad(patches, ((0, 0), (0, m_pad - m), (0, 0)))
    grid = (n_ph, m_pad // tm)

    if pp == 1:
        x_map = lambda ph, i: (0, i, 0)       # patches shared by all phases (layer 1)
    else:
        x_map = lambda ph, i: (ph, i, 0)
    in_specs = [pl.BlockSpec((None, tm, kk), x_map),
                pl.BlockSpec((None, kk, c_out), lambda ph, i: (ph, 0, 0))]

    out_bytes = n_ph * m_pad * c_out * jnp.dtype(out_dtype).itemsize
    cost = pl.CostEstimate(
        flops=2 * n_ph * m_pad * kk * c_out,
        transcendentals=(n_ph * m_pad * c_out) if epilogue == "tanh" else 0,
        bytes_accessed=2 * (pp * m_pad * kk + n_ph * kk * c_out) + out_bytes)

    if epilogue == "tanh":
        y = pl.pallas_call(
            pmm_tanh_kernel,
            out_shape=jax.ShapeDtypeStruct((n_ph, m_pad, c_out), out_dtype),
            grid=grid,
            in_specs=in_specs,
            out_specs=pl.BlockSpec((None, tm, c_out), lambda ph, i: (ph, i, 0)),
            compiler_params=pltpu.CompilerParams(
                dimension_semantics=("parallel", "parallel"),
                vmem_limit_bytes=VMEM_LIMIT_BYTES),
            cost_estimate=cost,
        )(patches, weights)
        return y, None

    y, stats = pl.pallas_call(
        pmm_stats_kernel,
        out_shape=(jax.ShapeDtypeStruct((n_ph, m_pad, c_out), out_dtype),
                   jax.ShapeDtypeStruct((n_ph, 2, c_out), jnp.float32)),
        grid=grid,
        in_specs=in_specs,
        out_specs=(pl.BlockSpec((None, tm, c_out), lambda ph, i: (ph, i, 0)),
                   pl.BlockSpec((None, 2, c_out), lambda ph, i: (ph, 0, 0))),
        scratch_shapes=[pltpu.VMEM((2, c_out), jnp.float32)],
        compiler_params=pltpu.CompilerParams(
            dimension_semantics=("parallel", "arbitrary"),
            vmem_limit_bytes=VMEM_LIMIT_BYTES),
        cost_estimate=cost,
    )(patches, weights)
    return y, stats


def _batchnorm_relu(y, stats, gamma, beta, count):
    """y: (P, M_pad, C) bf16; stats: (P, 2, C) f32 per-phase partial sums."""
    n_ph, m_pad, c = y.shape
    stats_tot = jnp.sum(stats, axis=0)                         # (2, C) tiny, done in JAX
    rows = n_ph * m_pad

    # Group g rows per tile row so the store lane width is >= 128 (lane-dense vst).
    g = 1
    if c < 128 and 128 % c == 0:
        cand = 128 // c
        if rows % cand == 0:
            r2 = rows // cand
            if r2 <= BN_ROW_TILE or r2 % 8 == 0:
                g = cand
    rows2, cols2 = rows // g, g * c

    y2 = y.reshape(rows2, cols2)
    stats2 = jnp.tile(stats_tot, (1, g))
    gamma2 = jnp.tile(gamma.reshape(1, c).astype(jnp.float32), (1, g))
    beta2 = jnp.tile(beta.reshape(1, c).astype(jnp.float32), (1, g))

    if rows2 <= BN_ROW_TILE:
        tr = rows2
    else:
        tr = 8
        for t in range(BN_ROW_TILE, 7, -8):
            if rows2 % t == 0:
                tr = t
                break

    out = pl.pallas_call(
        functools.partial(bn_relu_kernel, count=float(count)),
        out_shape=jax.ShapeDtypeStruct((rows2, cols2), jnp.bfloat16),
        grid=(rows2 // tr,),
        in_specs=[pl.BlockSpec((tr, cols2), lambda i: (i, 0)),
                  pl.BlockSpec((2, cols2), lambda i: (0, 0)),
                  pl.BlockSpec((1, cols2), lambda i: (0, 0)),
                  pl.BlockSpec((1, cols2), lambda i: (0, 0))],
        out_specs=pl.BlockSpec((tr, cols2), lambda i: (i, 0)),
        input_output_aliases={0: 0},          # normalize in place: no extra HBM buffer
        compiler_params=pltpu.CompilerParams(
            dimension_semantics=("parallel",),
            vmem_limit_bytes=VMEM_LIMIT_BYTES),
    )(y2, stats2, gamma2, beta2)
    return out.reshape(n_ph, m_pad, c)


# --------------------------------------------------------------------------- #
# ConvTranspose2d layer wrappers (phase decomposition glue in plain JAX)
# --------------------------------------------------------------------------- #
# Kernel tap (ky or kx) used by output phase p at window offset d:
#   even outputs (p=0): taps (3, 1);  odd outputs (p=1): taps (2, 0)
_TAPS = ((3, 1), (2, 0))


def _stride2_phases(x, w_t):
    """Phase decomposition of ConvTranspose2d(kernel=4, stride=2, padding=1).

    out[n, 2a+py, 2b+px, co] =
      sum_{dy,dx,ci} xpad[n, a+py+dy, b+px+dx, ci] * W[ci, co, TAPS[py][dy], TAPS[px][dx]]
    Returns patches (4, N*H*W, 4*C_in) and weights (4, 4*C_in, C_out), both bf16.
    """
    n, h, w, c = x.shape
    c_in, c_out = w_t.shape[0], w_t.shape[1]
    xp = jnp.pad(x, ((0, 0), (1, 1), (1, 1), (0, 0)))
    pats, wmats = [], []
    for py in range(2):
        for px in range(2):
            win = [xp[:, py + dy: py + dy + h, px + dx: px + dx + w, :]
                   for dy in range(2) for dx in range(2)]
            pats.append(jnp.stack(win, axis=3).reshape(n * h * w, 4 * c))
            wsel = jnp.stack([w_t[:, :, _TAPS[py][dy], _TAPS[px][dx]]
                              for dy in range(2) for dx in range(2)], axis=0)
            wmats.append(wsel.reshape(4 * c_in, c_out))
    return (jnp.stack(pats).astype(jnp.bfloat16),
            jnp.stack(wmats).astype(jnp.bfloat16))


def _reassemble_phases(y, n, h, w):
    """y: (4, N*H*W, C), phases ordered (py, px) row-major -> (N, 2H, 2W, C)."""
    c = y.shape[-1]
    y = y.reshape(2, 2, n, h, w, c)
    y = jnp.transpose(y, (2, 3, 0, 4, 1, 5))
    return y.reshape(n, 2 * h, 2 * w, c)


def conv_transpose_s2(x_nhwc, w_t, *, epilogue, gamma=None, beta=None):
    """ConvTranspose2d(k=4, s=2, p=1, bias=False) + (BatchNorm+ReLU | tanh)."""
    n, h, w, _ = x_nhwc.shape
    m = n * h * w
    patches, wm = _stride2_phases(x_nhwc, w_t)
    if epilogue == "tanh":
        y, _ = _phased_matmul(patches, wm, epilogue="tanh", out_dtype=jnp.float32)
        return _reassemble_phases(y[:, :m, :], n, h, w)
    y, stats = _phased_matmul(patches, wm, epilogue="bn", out_dtype=jnp.bfloat16)
    yb = _batchnorm_relu(y, stats, gamma, beta, count=n * 4 * h * w)
    return _reassemble_phases(yb[:, :m, :], n, h, w)


def conv_transpose_1x1_s1(z_nhwc, w_t, gamma, beta):
    """First layer: ConvTranspose2d(k=4, s=1, p=0) on a 1x1 input + BN + ReLU.

    out[n, oy, ox, co] = sum_ci z[n, ci] * W[ci, co, oy, ox] -> 16 per-pixel matmuls
    that all share the same (N, C_in) patches operand.
    """
    n = z_nhwc.shape[0]
    c_in, c_out, k, _ = w_t.shape
    z = z_nhwc.reshape(1, n, c_in).astype(jnp.bfloat16)
    wm = jnp.transpose(w_t, (2, 3, 0, 1)).reshape(k * k, c_in, c_out).astype(jnp.bfloat16)
    y, stats = _phased_matmul(z, wm, epilogue="bn", out_dtype=jnp.bfloat16)
    yb = _batchnorm_relu(y, stats, gamma, beta, count=n * k * k)
    return jnp.transpose(yb[:, :n, :].reshape(k, k, n, c_out), (2, 0, 1, 3))   # (N,4,4,C)


# --------------------------------------------------------------------------- #
# DCGenerator forward (NCHW in / NCHW out, like the PyTorch module)
# --------------------------------------------------------------------------- #
def dc_generator_forward(z_nchw, params):
    x = jnp.transpose(z_nchw, (0, 2, 3, 1))                      # NHWC: (N, 1, 1, noise)
    (w1, g1, b1), (w2, g2, b2), (w3, g3, b3), (w4, g4, b4), w5 = params
    x = conv_transpose_1x1_s1(x, w1, g1, b1)                                  # 1  -> 4
    x = conv_transpose_s2(x, w2, epilogue="bn", gamma=g2, beta=b2)            # 4  -> 8
    x = conv_transpose_s2(x, w3, epilogue="bn", gamma=g3, beta=b3)            # 8  -> 16
    x = conv_transpose_s2(x, w4, epilogue="bn", gamma=g4, beta=b4)            # 16 -> 32
    x = conv_transpose_s2(x, w5, epilogue="tanh")                             # 32 -> 64
    return jnp.transpose(x, (0, 3, 1, 2))                        # -> NCHW


def init_params(key, noise_size, conv_dim):
    dims = [noise_size, conv_dim * 8, conv_dim * 4, conv_dim * 2, conv_dim, 3]
    params = []
    for i in range(4):
        key, sub = jax.random.split(key)
        w = jax.random.normal(sub, (dims[i], dims[i + 1], 4, 4), jnp.float32) * 0.1
        g = jnp.ones((dims[i + 1],), jnp.float32)    # BatchNorm2d default weight
        b = jnp.zeros((dims[i + 1],), jnp.float32)   # BatchNorm2d default bias
        params.append((w, g, b))
    key, sub = jax.random.split(key)
    params.append(jax.random.normal(sub, (dims[4], dims[5], 4, 4), jnp.float32) * 0.1)
    return params


# --------------------------------------------------------------------------- #
# Pure-JAX f32 reference (in-script correctness check only)
# --------------------------------------------------------------------------- #
def _conv_transpose_ref(x_nhwc, w_t, stride, pad):
    k = w_t.shape[2]
    w_hwio = jnp.transpose(jnp.flip(w_t, axis=(2, 3)), (2, 3, 0, 1))
    return jax.lax.conv_general_dilated(
        x_nhwc, w_hwio, window_strides=(1, 1),
        padding=[(k - 1 - pad, k - 1 - pad)] * 2,
        lhs_dilation=(stride, stride),
        dimension_numbers=("NHWC", "HWIO", "NHWC"),
        precision=jax.lax.Precision.HIGHEST)


def ref_forward(z_nchw, params):
    x = jnp.transpose(z_nchw, (0, 2, 3, 1)).astype(jnp.float32)
    strides_pads = [(1, 0), (2, 1), (2, 1), (2, 1)]
    for (w, g, b), (s, p) in zip(params[:4], strides_pads):
        x = _conv_transpose_ref(x, w, s, p)
        mean = jnp.mean(x, axis=(0, 1, 2), keepdims=True)
        var = jnp.mean((x - mean) ** 2, axis=(0, 1, 2), keepdims=True)
        x = (x - mean) * jax.lax.rsqrt(var + BN_EPS) * g.reshape(1, 1, 1, -1) + b.reshape(1, 1, 1, -1)
        x = jnp.maximum(x, 0.0)
    x = jnp.tanh(_conv_transpose_ref(x, params[4], 2, 1))
    return jnp.transpose(x, (0, 3, 1, 2))


if __name__ == "__main__":
    noise_size, conv_dim, batch = 16, 4, 2          # small but architecture-consistent
    key = jax.random.PRNGKey(0)
    kp, kz = jax.random.split(key)
    params = init_params(kp, noise_size, conv_dim)
    z = jax.random.normal(kz, (batch, noise_size, 1, 1), jnp.float32)   # NCHW noise

    fwd = jax.jit(dc_generator_forward)
    out = jax.block_until_ready(fwd(z, params))
    assert out.shape == (batch, 3, 64, 64), out.shape
    assert bool(jnp.all(jnp.isfinite(out))), "non-finite output"

    ref = jax.block_until_ready(ref_forward(z, params))
    err = float(jnp.max(jnp.abs(out - ref)))
    # bf16 MXU operands + bf16 intermediate activations vs a HIGHEST-precision f32
    # reference -> tolerance reflects bf16 rounding accumulated over 5 layers.
    assert err < 1e-1, f"max abs error vs reference: {err}"

    print("KERNEL_OK")
</pallas_src>

<mosaic_0001>
module attributes {stable_mosaic.version = 11 : i64} {
  func.func @pmm_stats_kernel(%arg0: i32, %arg1: i32, %arg2: memref<1x8x16xbf16, #tpu.memory_space<vmem>>, %arg3: memref<1x16x32xbf16, #tpu.memory_space<vmem>>, %arg4: memref<1x8x32xbf16, #tpu.memory_space<vmem>>, %arg5: memref<1x2x32xf32, #tpu.memory_space<vmem>>, %arg6: memref<2x32xf32, #tpu.memory_space<vmem>>) attributes {dimension_semantics = [#tpu.dimension_semantics<parallel>, #tpu.dimension_semantics<arbitrary>], iteration_bounds = array<i64: 16, 1>, scalar_prefetch = 0 : i64, scratch_operands = 1 : i64, tpu.core_type = #tpu.core_type<tc>, window_params = [{transform_indices = @transform_0, window_bounds = array<i64: 1, 8, 16>}, {transform_indices = @transform_1, window_bounds = array<i64: 1, 16, 32>}, {transform_indices = @transform_2, window_bounds = array<i64: 1, 8, 32>}, {transform_indices = @transform_3, window_bounds = array<i64: 1, 2, 32>}]} {
    %c0_i32 = arith.constant 0 : i32
    %0 = arith.cmpi eq, %arg1, %c0_i32 : i32
    %1 = arith.extui %0 : i1 to i32
    %c0_i32_0 = arith.constant 0 : i32
    %2 = arith.cmpi ne, %1, %c0_i32_0 : i32
    scf.if %2 {
      %cst_18 = arith.constant 0.000000e+00 : f32
      %23 = vector.broadcast %cst_18 : f32 to vector<2x32xf32>
      %c0_19 = arith.constant 0 : index
      %c0_20 = arith.constant 0 : index
      %24 = vector.load %arg6[%c0_19, %c0_20] : memref<2x32xf32, #tpu.memory_space<vmem>>, vector<2x32xf32>
      tpu.vector_store %arg6[%c0_19, %c0_20], %23 {strides = array<i32>} : memref<2x32xf32, #tpu.memory_space<vmem>>, vector<2x32xf32>,
    } else {
    }
    %c0 = arith.constant 0 : index
    %c0_1 = arith.constant 0 : index
    %c0_2 = arith.constant 0 : index
    %3 = vector.load %arg2[%c0, %c0_1, %c0_2] : memref<1x8x16xbf16, #tpu.memory_space<vmem>>, vector<1x8x16xbf16>
    %4 = vector.shape_cast %3 : vector<1x8x16xbf16> to vector<8x16xbf16>
    %c0_3 = arith.constant 0 : index
    %c0_4 = arith.constant 0 : index
    %c0_5 = arith.constant 0 : index
    %5 = vector.load %arg3[%c0_3, %c0_4, %c0_5] : memref<1x16x32xbf16, #tpu.memory_space<vmem>>, vector<1x16x32xbf16>
    %6 = vector.shape_cast %5 : vector<1x16x32xbf16> to vector<16x32xbf16>
    %cst = arith.constant dense<0.000000e+00> : vector<8x32xf32>
    %7 = tpu.matmul %4, %6, %cst {dimension_numbers = #tpu.dot_dimension_numbers<[1], [0], [0], [1], [0, 0, 1, 1], [], []>} : vector<8x16xbf16>, vector<16x32xbf16>, vector<8x32xf32> -> vector<8x32xf32>
    %8 = arith.truncf %7 : vector<8x32xf32> to vector<8x32xbf16>
    %c0_6 = arith.constant 0 : index
    %c0_7 = arith.constant 0 : index
    %c0_8 = arith.constant 0 : index
    %9 = vector.load %arg4[%c0_6, %c0_7, %c0_8] : memref<1x8x32xbf16, #tpu.memory_space<vmem>>, vector<1x8x32xbf16>
    %10 = vector.shape_cast %9 : vector<1x8x32xbf16> to vector<8x32xbf16>
    %11 = vector.shape_cast %8 : vector<8x32xbf16> to vector<1x8x32xbf16>
    tpu.vector_store %arg4[%c0_6, %c0_7, %c0_8], %11 {strides = array<i32>} : memref<1x8x32xbf16, #tpu.memory_space<vmem>>, vector<1x8x32xbf16>,
    %cst_9 = arith.constant 1.000000e+00 : f32
    %12 = vector.broadcast %cst_9 : f32 to vector<1x8xf32>
    %cst_10 = arith.constant dense<0.000000e+00> : vector<1x32xf32>
    %13 = tpu.matmul %12, %7, %cst_10 {dimension_numbers = #tpu.dot_dimension_numbers<[1], [0], [0], [1], [0, 0, 1, 1], [], []>} : vector<1x8xf32>, vector<8x32xf32>, vector<1x32xf32> -> vector<1x32xf32>
    %14 = arith.mulf %7, %7 : vector<8x32xf32>
    %cst_11 = arith.constant dense<0.000000e+00> : vector<1x32xf32>
    %15 = tpu.matmul %12, %14, %cst_11 {dimension_numbers = #tpu.dot_dimension_numbers<[1], [0], [0], [1], [0, 0, 1, 1], [], []>} : vector<1x8xf32>, vector<8x32xf32>, vector<1x32xf32> -> vector<1x32xf32>
    %c0_12 = arith.constant 0 : index
    %c0_13 = arith.constant 0 : index
    %16 = vector.load %arg6[%c0_12, %c0_13] : memref<2x32xf32, #tpu.memory_space<vmem>>, vector<2x32xf32>
    %17 = tpu.concatenate %13, %15 in 0 : vector<1x32xf32>, vector<1x32xf32> -> vector<2x32xf32>
    %18 = arith.addf %16, %17 : vector<2x32xf32>
    %c0_14 = arith.constant 0 : index
    %c0_15 = arith.constant 0 : index
    %19 = vector.load %arg6[%c0_14, %c0_15] : memref<2x32xf32, #tpu.memory_space<vmem>>, vector<2x32xf32>
    tpu.vector_store %arg6[%c0_14, %c0_15], %18 {strides = array<i32>} : memref<2x32xf32, #tpu.memory_space<vmem>>, vector<2x32xf32>,
    %c0_i32_16 = arith.constant 0 : i32
    %20 = arith.cmpi eq, %arg1, %c0_i32_16 : i32
    %21 = arith.extui %20 : i1 to i32
    %c0_i32_17 = arith.constant 0 : i32
    %22 = arith.cmpi ne, %21, %c0_i32_17 : i32
    scf.if %22 {
      %c0_18 = arith.constant 0 : index
      %c0_19 = arith.constant 0 : index
      %23 = vector.load %arg6[%c0_18, %c0_19] : memref<2x32xf32, #tpu.memory_space<vmem>>, vector<2x32xf32>
      %c0_20 = arith.constant 0 : index
      %c0_21 = arith.constant 0 : index
      %c0_22 = arith.constant 0 : index
      %24 = vector.load %arg5[%c0_20, %c0_21, %c0_22] : memref<1x2x32xf32, #tpu.memory_space<vmem>>, vector<1x2x32xf32>
      %25 = vector.shape_cast %24 : vector<1x2x32xf32> to vector<2x32xf32>
      %26 = vector.shape_cast %23 : vector<2x32xf32> to vector<1x2x32xf32>
      tpu.vector_store %arg5[%c0_20, %c0_21, %c0_22], %26 {strides = array<i32>} : memref<1x2x32xf32, #tpu.memory_space<vmem>>, vector<1x2x32xf32>,
    } else {
    }
    return
  }
  func.func @transform_0(%arg0: i32, %arg1: i32) -> (i32, i32, i32) {
    %c0_i32 = arith.constant 0 : i32
    %c0_i32_0 = arith.constant 0 : i32
    %c0_i32_1 = arith.constant 0 : i32
    return %c0_i32, %arg1, %c0_i32_0 : i32, i32, i32
  }
  func.func @transform_1(%arg0: i32, %arg1: i32) -> (i32, i32, i32) {
    %c0_i32 = arith.constant 0 : i32
    %c0_i32_0 = arith.constant 0 : i32
    %c0_i32_1 = arith.constant 0 : i32
    return %arg0, %c0_i32, %c0_i32_0 : i32, i32, i32
  }
  func.func @transform_2(%arg0: i32, %arg1: i32) -> (i32, i32, i32) {
    %c0_i32 = arith.constant 0 : i32
    %c0_i32_0 = arith.constant 0 : i32
    return %arg0, %arg1, %c0_i32 : i32, i32, i32
  }
  func.func @transform_3(%arg0: i32, %arg1: i32) -> (i32, i32, i32) {
    %c0_i32 = arith.constant 0 : i32
    %c0_i32_0 = arith.constant 0 : i32
    %c0_i32_1 = arith.constant 0 : i32
    return %arg0, %c0_i32, %c0_i32_0 : i32, i32, i32
  }
}

module attributes {stable_mosaic.version = 11 : i64} {
  func.func @bn_relu_kernel(%arg0: i32, %arg1: memref<32x128xbf16, #tpu.memory_space<vmem>>, %arg2: memref<2x128xf32, #tpu.memory_space<vmem>>, %arg3: memref<1x128xf32, #tpu.memory_space<vmem>>, %arg4: memref<1x128xf32, #tpu.memory_space<vmem>>, %arg5: memref<32x128xbf16, #tpu.memory_space<vmem>>) attributes {dimension_semantics = [#tpu.dimension_semantics<parallel>], iteration_bounds = array<i64: 1>, scalar_prefetch = 0 : i64, scratch_operands = 0 : i64, tpu.core_type = #tpu.core_type<tc>, window_params = [{transform_indices = @transform_0, window_bounds = array<i64: 32, 128>}, {pipeline_mode = #tpu.pipeline_mode<synchronous>, transform_indices = @transform_1, window_bounds = array<i64: 2, 128>}, {pipeline_mode = #tpu.pipeline_mode<synchronous>, transform_indices = @transform_2, window_bounds = array<i64: 1, 128>}, {pipeline_mode = #tpu.pipeline_mode<synchronous>, transform_indices = @transform_3, window_bounds = array<i64: 1, 128>}, {transform_indices = @transform_4, window_bounds = array<i64: 32, 128>}]} {
    %c0 = arith.constant 0 : index
    %c0_0 = arith.constant 0 : index
    %0 = vector.load %arg2[%c0, %c0_0] : memref<2x128xf32, #tpu.memory_space<vmem>>, vector<1x128xf32>
    %cst = arith.constant 3.125000e-02 : f32
    %1 = vector.broadcast %cst : f32 to vector<1x128xf32>
    %2 = arith.mulf %0, %1 : vector<1x128xf32>
    %c1 = arith.constant 1 : index
    %c0_1 = arith.constant 0 : index
    %3 = vector.load %arg2[%c1, %c0_1] : memref<2x128xf32, #tpu.memory_space<vmem>>, vector<1x128xf32>
    %cst_2 = arith.constant 3.125000e-02 : f32
    %4 = vector.broadcast %cst_2 : f32 to vector<1x128xf32>
    %5 = arith.mulf %3, %4 : vector<1x128xf32>
    %6 = arith.mulf %2, %2 : vector<1x128xf32>
    %7 = arith.subf %5, %6 : vector<1x128xf32>
    %cst_3 = arith.constant 9.99999974E-6 : f32
    %8 = vector.broadcast %cst_3 : f32 to vector<1x128xf32>
    %9 = arith.addf %7, %8 : vector<1x128xf32>
    %10 = math.rsqrt %9 : vector<1x128xf32>
    %c0_4 = arith.constant 0 : index
    %c0_5 = arith.constant 0 : index
    %11 = vector.load %arg1[%c0_4, %c0_5] : memref<32x128xbf16, #tpu.memory_space<vmem>>, vector<32x128xbf16>
    %12 = arith.extf %11 : vector<32x128xbf16> to vector<32x128xf32>
    %13 = vector.broadcast %2 : vector<1x128xf32> to vector<32x128xf32>
    %14 = arith.subf %12, %13 : vector<32x128xf32>
    %15 = vector.broadcast %10 : vector<1x128xf32> to vector<32x128xf32>
    %16 = arith.mulf %14, %15 : vector<32x128xf32>
    %c0_6 = arith.constant 0 : index
    %c0_7 = arith.constant 0 : index
    %17 = vector.load %arg3[%c0_6, %c0_7] : memref<1x128xf32, #tpu.memory_space<vmem>>, vector<1x128xf32>
    %18 = vector.broadcast %17 : vector<1x128xf32> to vector<32x128xf32>
    %19 = arith.mulf %16, %18 : vector<32x128xf32>
    %c0_8 = arith.constant 0 : index
    %c0_9 = arith.constant 0 : index
    %20 = vector.load %arg4[%c0_8, %c0_9] : memref<1x128xf32, #tpu.memory_space<vmem>>, vector<1x128xf32>
    %21 = vector.broadcast %20 : vector<1x128xf32> to vector<32x128xf32>
    %22 = arith.addf %19, %21 : vector<32x128xf32>
    %cst_10 = arith.constant 0.000000e+00 : f32
    %23 = vector.broadcast %cst_10 : f32 to vector<32x128xf32>
    %24 = arith.maximumf %22, %23 : vector<32x128xf32>
    %25 = arith.truncf %24 : vector<32x128xf32> to vector<32x128xbf16>
    %c0_11 = arith.constant 0 : index
    %c0_12 = arith.constant 0 : index
    %26 = vector.load %arg5[%c0_11, %c0_12] : memref<32x128xbf16, #tpu.memory_space<vmem>>, vector<32x128xbf16>
    tpu.vector_store %arg5[%c0_11, %c0_12], %25 {strides = array<i32>} : memref<32x128xbf16, #tpu.memory_space<vmem>>, vector<32x128xbf16>,
    return
  }
  func.func @transform_0(%arg0: i32) -> (i32, i32) {
    %c0_i32 = arith.constant 0 : i32
    %c0_i32_0 = arith.constant 0 : i32
    return %arg0, %c0_i32 : i32, i32
  }
  func.func @transform_1(%arg0: i32) -> (i32, i32) {
    %c0_i32 = arith.constant 0 : i32
    %c0_i32_0 = arith.constant 0 : i32
    %c0_i32_1 = arith.constant 0 : i32
    return %c0_i32, %c0_i32_0 : i32, i32
  }
  func.func @transform_2(%arg0: i32) -> (i32, i32) {
    %c0_i32 = arith.constant 0 : i32
    %c0_i32_0 = arith.constant 0 : i32
    %c0_i32_1 = arith.constant 0 : i32
    return %c0_i32, %c0_i32_0 : i32, i32
  }
  func.func @transform_3(%arg0: i32) -> (i32, i32) {
    %c0_i32 = arith.constant 0 : i32
    %c0_i32_0 = arith.constant 0 : i32
    %c0_i32_1 = arith.constant 0 : i32
    return %c0_i32, %c0_i32_0 : i32, i32
  }
  func.func @transform_4(%arg0: i32) -> (i32, i32) {
    %c0_i32 = arith.constant 0 : i32
    %c0_i32_0 = arith.constant 0 : i32
    return %arg0, %c0_i32 : i32, i32
  }
}

module attributes {stable_mosaic.version = 11 : i64} {
  func.func @pmm_stats_kernel(%arg0: i32, %arg1: i32, %arg2: memref<1x32x128xbf16, #tpu.memory_space<vmem>>, %arg3: memref<1x128x16xbf16, #tpu.memory_space<vmem>>, %arg4: memref<1x32x16xbf16, #tpu.memory_space<vmem>>, %arg5: memref<1x2x16xf32, #tpu.memory_space<vmem>>, %arg6: memref<2x16xf32, #tpu.memory_space<vmem>>) attributes {dimension_semantics = [#tpu.dimension_semantics<parallel>, #tpu.dimension_semantics<arbitrary>], iteration_bounds = array<i64: 4, 1>, scalar_prefetch = 0 : i64, scratch_operands = 1 : i64, tpu.core_type = #tpu.core_type<tc>, window_params = [{transform_indices = @transform_0, window_bounds = array<i64: 1, 32, 128>}, {transform_indices = @transform_1, window_bounds = array<i64: 1, 128, 16>}, {transform_indices = @transform_2, window_bounds = array<i64: 1, 32, 16>}, {transform_indices = @transform_3, window_bounds = array<i64: 1, 2, 16>}]} {
    %c0_i32 = arith.constant 0 : i32
    %0 = arith.cmpi eq, %arg1, %c0_i32 : i32
    %1 = arith.extui %0 : i1 to i32
    %c0_i32_0 = arith.constant 0 : i32
    %2 = arith.cmpi ne, %1, %c0_i32_0 : i32
    scf.if %2 {
      %cst_18 = arith.constant 0.000000e+00 : f32
      %23 = vector.broadcast %cst_18 : f32 to vector<2x16xf32>
      %c0_19 = arith.constant 0 : index
      %c0_20 = arith.constant 0 : index
      %24 = vector.load %arg6[%c0_19, %c0_20] : memref<2x16xf32, #tpu.memory_space<vmem>>, vector<2x16xf32>
      tpu.vector_store %arg6[%c0_19, %c0_20], %23 {strides = array<i32>} : memref<2x16xf32, #tpu.memory_space<vmem>>, vector<2x16xf32>,
    } else {
    }
    %c0 = arith.constant 0 : index
    %c0_1 = arith.constant 0 : index
    %c0_2 = arith.constant 0 : index
    %3 = vector.load %arg2[%c0, %c0_1, %c0_2] : memref<1x32x128xbf16, #tpu.memory_space<vmem>>, vector<1x32x128xbf16>
    %4 = vector.shape_cast %3 : vector<1x32x128xbf16> to vector<32x128xbf16>
    %c0_3 = arith.constant 0 : index
    %c0_4 = arith.constant 0 : index
    %c0_5 = arith.constant 0 : index
    %5 = vector.load %arg3[%c0_3, %c0_4, %c0_5] : memref<1x128x16xbf16, #tpu.memory_space<vmem>>, vector<1x128x16xbf16>
    %6 = vector.shape_cast %5 : vector<1x128x16xbf16> to vector<128x16xbf16>
    %cst = arith.constant dense<0.000000e+00> : vector<32x16xf32>
    %7 = tpu.matmul %4, %6, %cst {dimension_numbers = #tpu.dot_dimension_numbers<[1], [0], [0], [1], [0, 0, 1, 1], [], []>} : vector<32x128xbf16>, vector<128x16xbf16>, vector<32x16xf32> -> vector<32x16xf32>
    %8 = arith.truncf %7 : vector<32x16xf32> to vector<32x16xbf16>
    %c0_6 = arith.constant 0 : index
    %c0_7 = arith.constant 0 : index
    %c0_8 = arith.constant 0 : index
    %9 = vector.load %arg4[%c0_6, %c0_7, %c0_8] : memref<1x32x16xbf16, #tpu.memory_space<vmem>>, vector<1x32x16xbf16>
    %10 = vector.shape_cast %9 : vector<1x32x16xbf16> to vector<32x16xbf16>
    %11 = vector.shape_cast %8 : vector<32x16xbf16> to vector<1x32x16xbf16>
    tpu.vector_store %arg4[%c0_6, %c0_7, %c0_8], %11 {strides = array<i32>} : memref<1x32x16xbf16, #tpu.memory_space<vmem>>, vector<1x32x16xbf16>,
    %cst_9 = arith.constant 1.000000e+00 : f32
    %12 = vector.broadcast %cst_9 : f32 to vector<1x32xf32>
    %cst_10 = arith.constant dense<0.000000e+00> : vector<1x16xf32>
    %13 = tpu.matmul %12, %7, %cst_10 {dimension_numbers = #tpu.dot_dimension_numbers<[1], [0], [0], [1], [0, 0, 1, 1], [], []>} : vector<1x32xf32>, vector<32x16xf32>, vector<1x16xf32> -> vector<1x16xf32>
    %14 = arith.mulf %7, %7 : vector<32x16xf32>
    %cst_11 = arith.constant dense<0.000000e+00> : vector<1x16xf32>
    %15 = tpu.matmul %12, %14, %cst_11 {dimension_numbers = #tpu.dot_dimension_numbers<[1], [0], [0], [1], [0, 0, 1, 1], [], []>} : vector<1x32xf32>, vector<32x16xf32>, vector<1x16xf32> -> vector<1x16xf32>
    %c0_12 = arith.constant 0 : index
    %c0_13 = arith.constant 0 : index
    %16 = vector.load %arg6[%c0_12, %c0_13] : memref<2x16xf32, #tpu.memory_space<vmem>>, vector<2x16xf32>
    %17 = tpu.concatenate %13, %15 in 0 : vector<1x16xf32>, vector<1x16xf32> -> vector<2x16xf32>
    %18 = arith.addf %16, %17 : vector<2x16xf32>
    %c0_14 = arith.constant 0 : index
    %c0_15 = arith.constant 0 : index
    %19 = vector.load %arg6[%c0_14, %c0_15] : memref<2x16xf32, #tpu.memory_space<vmem>>, vector<2x16xf32>
    tpu.vector_store %arg6[%c0_14, %c0_15], %18 {strides = array<i32>} : memref<2x16xf32, #tpu.memory_space<vmem>>, vector<2x16xf32>,
    %c0_i32_16 = arith.constant 0 : i32
    %20 = arith.cmpi eq, %arg1, %c0_i32_16 : i32
    %21 = arith.extui %20 : i1 to i32
    %c0_i32_17 = arith.constant 0 : i32
    %22 = arith.cmpi ne, %21, %c0_i32_17 : i32
    scf.if %22 {
      %c0_18 = arith.constant 0 : index
      %c0_19 = arith.constant 0 : index
      %23 = vector.load %arg6[%c0_18, %c0_19] : memref<2x16xf32, #tpu.memory_space<vmem>>, vector<2x16xf32>
      %c0_20 = arith.constant 0 : index
      %c0_21 = arith.constant 0 : index
      %c0_22 = arith.constant 0 : index
      %24 = vector.load %arg5[%c0_20, %c0_21, %c0_22] : memref<1x2x16xf32, #tpu.memory_space<vmem>>, vector<1x2x16xf32>
      %25 = vector.shape_cast %24 : vector<1x2x16xf32> to vector<2x16xf32>
      %26 = vector.shape_cast %23 : vector<2x16xf32> to vector<1x2x16xf32>
      tpu.vector_store %arg5[%c0_20, %c0_21, %c0_22], %26 {strides = array<i32>} : memref<1x2x16xf32, #tpu.memory_space<vmem>>, vector<1x2x16xf32>,
    } else {
    }
    return
  }
  func.func @transform_0(%arg0: i32, %arg1: i32) -> (i32, i32, i32) {
    %c0_i32 = arith.constant 0 : i32
    %c0_i32_0 = arith.constant 0 : i32
    return %arg0, %arg1, %c0_i32 : i32, i32, i32
  }
  func.func @transform_1(%arg0: i32, %arg1: i32) -> (i32, i32, i32) {
    %c0_i32 = arith.constant 0 : i32
    %c0_i32_0 = arith.constant 0 : i32
    %c0_i32_1 = arith.constant 0 : i32
    return %arg0, %c0_i32, %c0_i32_0 : i32, i32, i32
  }
  func.func @transform_2(%arg0: i32, %arg1: i32) -> (i32, i32, i32) {
    %c0_i32 = arith.constant 0 : i32
    %c0_i32_0 = arith.constant 0 : i32
    return %arg0, %arg1, %c0_i32 : i32, i32, i32
  }
  func.func @transform_3(%arg0: i32, %arg1: i32) -> (i32, i32, i32) {
    %c0_i32 = arith.constant 0 : i32
    %c0_i32_0 = arith.constant 0 : i32
    %c0_i32_1 = arith.constant 0 : i32
    return %arg0, %c0_i32, %c0_i32_0 : i32, i32, i32
  }
}

module attributes {stable_mosaic.version = 11 : i64} {
  func.func @bn_relu_kernel(%arg0: i32, %arg1: memref<16x128xbf16, #tpu.memory_space<vmem>>, %arg2: memref<2x128xf32, #tpu.memory_space<vmem>>, %arg3: memref<1x128xf32, #tpu.memory_space<vmem>>, %arg4: memref<1x128xf32, #tpu.memory_space<vmem>>, %arg5: memref<16x128xbf16, #tpu.memory_space<vmem>>) attributes {dimension_semantics = [#tpu.dimension_semantics<parallel>], iteration_bounds = array<i64: 1>, scalar_prefetch = 0 : i64, scratch_operands = 0 : i64, tpu.core_type = #tpu.core_type<tc>, window_params = [{transform_indices = @transform_0, window_bounds = array<i64: 16, 128>}, {pipeline_mode = #tpu.pipeline_mode<synchronous>, transform_indices = @transform_1, window_bounds = array<i64: 2, 128>}, {pipeline_mode = #tpu.pipeline_mode<synchronous>, transform_indices = @transform_2, window_bounds = array<i64: 1, 128>}, {pipeline_mode = #tpu.pipeline_mode<synchronous>, transform_indices = @transform_3, window_bounds = array<i64: 1, 128>}, {transform_indices = @transform_4, window_bounds = array<i64: 16, 128>}]} {
    %c0 = arith.constant 0 : index
    %c0_0 = arith.constant 0 : index
    %0 = vector.load %arg2[%c0, %c0_0] : memref<2x128xf32, #tpu.memory_space<vmem>>, vector<1x128xf32>
    %cst = arith.constant 7.812500e-03 : f32
    %1 = vector.broadcast %cst : f32 to vector<1x128xf32>
    %2 = arith.mulf %0, %1 : vector<1x128xf32>
    %c1 = arith.constant 1 : index
    %c0_1 = arith.constant 0 : index
    %3 = vector.load %arg2[%c1, %c0_1] : memref<2x128xf32, #tpu.memory_space<vmem>>, vector<1x128xf32>
    %cst_2 = arith.constant 7.812500e-03 : f32
    %4 = vector.broadcast %cst_2 : f32 to vector<1x128xf32>
    %5 = arith.mulf %3, %4 : vector<1x128xf32>
    %6 = arith.mulf %2, %2 : vector<1x128xf32>
    %7 = arith.subf %5, %6 : vector<1x128xf32>
    %cst_3 = arith.constant 9.99999974E-6 : f32
    %8 = vector.broadcast %cst_3 : f32 to vector<1x128xf32>
    %9 = arith.addf %7, %8 : vector<1x128xf32>
    %10 = math.rsqrt %9 : vector<1x128xf32>
    %c0_4 = arith.constant 0 : index
    %c0_5 = arith.constant 0 : index
    %11 = vector.load %arg1[%c0_4, %c0_5] : memref<16x128xbf16, #tpu.memory_space<vmem>>, vector<16x128xbf16>
    %12 = arith.extf %11 : vector<16x128xbf16> to vector<16x128xf32>
    %13 = vector.broadcast %2 : vector<1x128xf32> to vector<16x128xf32>
    %14 = arith.subf %12, %13 : vector<16x128xf32>
    %15 = vector.broadcast %10 : vector<1x128xf32> to vector<16x128xf32>
    %16 = arith.mulf %14, %15 : vector<16x128xf32>
    %c0_6 = arith.constant 0 : index
    %c0_7 = arith.constant 0 : index
    %17 = vector.load %arg3[%c0_6, %c0_7] : memref<1x128xf32, #tpu.memory_space<vmem>>, vector<1x128xf32>
    %18 = vector.broadcast %17 : vector<1x128xf32> to vector<16x128xf32>
    %19 = arith.mulf %16, %18 : vector<16x128xf32>
    %c0_8 = arith.constant 0 : index
    %c0_9 = arith.constant 0 : index
    %20 = vector.load %arg4[%c0_8, %c0_9] : memref<1x128xf32, #tpu.memory_space<vmem>>, vector<1x128xf32>
    %21 = vector.broadcast %20 : vector<1x128xf32> to vector<16x128xf32>
    %22 = arith.addf %19, %21 : vector<16x128xf32>
    %cst_10 = arith.constant 0.000000e+00 : f32
    %23 = vector.broadcast %cst_10 : f32 to vector<16x128xf32>
    %24 = arith.maximumf %22, %23 : vector<16x128xf32>
    %25 = arith.truncf %24 : vector<16x128xf32> to vector<16x128xbf16>
    %c0_11 = arith.constant 0 : index
    %c0_12 = arith.constant 0 : index
    %26 = vector.load %arg5[%c0_11, %c0_12] : memref<16x128xbf16, #tpu.memory_space<vmem>>, vector<16x128xbf16>
    tpu.vector_store %arg5[%c0_11, %c0_12], %25 {strides = array<i32>} : memref<16x128xbf16, #tpu.memory_space<vmem>>, vector<16x128xbf16>,
    return
  }
  func.func @transform_0(%arg0: i32) -> (i32, i32) {
    %c0_i32 = arith.constant 0 : i32
    %c0_i32_0 = arith.constant 0 : i32
    return %arg0, %c0_i32 : i32, i32
  }
  func.func @transform_1(%arg0: i32) -> (i32, i32) {
    %c0_i32 = arith.constant 0 : i32
    %c0_i32_0 = arith.constant 0 : i32
    %c0_i32_1 = arith.constant 0 : i32
    return %c0_i32, %c0_i32_0 : i32, i32
  }
  func.func @transform_2(%arg0: i32) -> (i32, i32) {
    %c0_i32 = arith.constant 0 : i32
    %c0_i32_0 = arith.constant 0 : i32
    %c0_i32_1 = arith.constant 0 : i32
    return %c0_i32, %c0_i32_0 : i32, i32
  }
  func.func @transform_3(%arg0: i32) -> (i32, i32) {
    %c0_i32 = arith.constant 0 : i32
    %c0_i32_0 = arith.constant 0 : i32
    %c0_i32_1 = arith.constant 0 : i32
    return %c0_i32, %c0_i32_0 : i32, i32
  }
  func.func @transform_4(%arg0: i32) -> (i32, i32) {
    %c0_i32 = arith.constant 0 : i32
    %c0_i32_0 = arith.constant 0 : i32
    return %arg0, %c0_i32 : i32, i32
  }
}

module attributes {stable_mosaic.version = 11 : i64} {
  func.func @pmm_stats_kernel(%arg0: i32, %arg1: i32, %arg2: memref<1x128x64xbf16, #tpu.memory_space<vmem>>, %arg3: memref<1x64x8xbf16, #tpu.memory_space<vmem>>, %arg4: memref<1x128x8xbf16, #tpu.memory_space<vmem>>, %arg5: memref<1x2x8xf32, #tpu.memory_space<vmem>>, %arg6: memref<2x8xf32, #tpu.memory_space<vmem>>) attributes {dimension_semantics = [#tpu.dimension_semantics<parallel>, #tpu.dimension_semantics<arbitrary>], iteration_bounds = array<i64: 4, 1>, scalar_prefetch = 0 : i64, scratch_operands = 1 : i64, tpu.core_type = #tpu.core_type<tc>, window_params = [{transform_indices = @transform_0, window_bounds = array<i64: 1, 128, 64>}, {transform_indices = @transform_1, window_bounds = array<i64: 1, 64, 8>}, {transform_indices = @transform_2, window_bounds = array<i64: 1, 128, 8>}, {transform_indices = @transform_3, window_bounds = array<i64: 1, 2, 8>}]} {
    %c0_i32 = arith.constant 0 : i32
    %0 = arith.cmpi eq, %arg1, %c0_i32 : i32
    %1 = arith.extui %0 : i1 to i32
    %c0_i32_0 = arith.constant 0 : i32
    %2 = arith.cmpi ne, %1, %c0_i32_0 : i32
    scf.if %2 {
      %cst_18 = arith.constant 0.000000e+00 : f32
      %23 = vector.broadcast %cst_18 : f32 to vector<2x8xf32>
      %c0_19 = arith.constant 0 : index
      %c0_20 = arith.constant 0 : index
      %24 = vector.load %arg6[%c0_19, %c0_20] : memref<2x8xf32, #tpu.memory_space<vmem>>, vector<2x8xf32>
      tpu.vector_store %arg6[%c0_19, %c0_20], %23 {strides = array<i32>} : memref<2x8xf32, #tpu.memory_space<vmem>>, vector<2x8xf32>,
    } else {
    }
    %c0 = arith.constant 0 : index
    %c0_1 = arith.constant 0 : index
    %c0_2 = arith.constant 0 : index
    %3 = vector.load %arg2[%c0, %c0_1, %c0_2] : memref<1x128x64xbf16, #tpu.memory_space<vmem>>, vector<1x128x64xbf16>
    %4 = vector.shape_cast %3 : vector<1x128x64xbf16> to vector<128x64xbf16>
    %c0_3 = arith.constant 0 : index
    %c0_4 = arith.constant 0 : index
    %c0_5 = arith.constant 0 : index
    %5 = vector.load %arg3[%c0_3, %c0_4, %c0_5] : memref<1x64x8xbf16, #tpu.memory_space<vmem>>, vector<1x64x8xbf16>
    %6 = vector.shape_cast %5 : vector<1x64x8xbf16> to vector<64x8xbf16>
    %cst = arith.constant dense<0.000000e+00> : vector<128x8xf32>
    %7 = tpu.matmul %4, %6, %cst {dimension_numbers = #tpu.dot_dimension_numbers<[1], [0], [0], [1], [0, 0, 1, 1], [], []>} : vector<128x64xbf16>, vector<64x8xbf16>, vector<128x8xf32> -> vector<128x8xf32>
    %8 = arith.truncf %7 : vector<128x8xf32> to vector<128x8xbf16>
    %c0_6 = arith.constant 0 : index
    %c0_7 = arith.constant 0 : index
    %c0_8 = arith.constant 0 : index
    %9 = vector.load %arg4[%c0_6, %c0_7, %c0_8] : memref<1x128x8xbf16, #tpu.memory_space<vmem>>, vector<1x128x8xbf16>
    %10 = vector.shape_cast %9 : vector<1x128x8xbf16> to vector<128x8xbf16>
    %11 = vector.shape_cast %8 : vector<128x8xbf16> to vector<1x128x8xbf16>
    tpu.vector_store %arg4[%c0_6, %c0_7, %c0_8], %11 {strides = array<i32>} : memref<1x128x8xbf16, #tpu.memory_space<vmem>>, vector<1x128x8xbf16>,
    %cst_9 = arith.constant 1.000000e+00 : f32
    %12 = vector.broadcast %cst_9 : f32 to vector<1x128xf32>
    %cst_10 = arith.constant dense<0.000000e+00> : vector<1x8xf32>
    %13 = tpu.matmul %12, %7, %cst_10 {dimension_numbers = #tpu.dot_dimension_numbers<[1], [0], [0], [1], [0, 0, 1, 1], [], []>} : vector<1x128xf32>, vector<128x8xf32>, vector<1x8xf32> -> vector<1x8xf32>
    %14 = arith.mulf %7, %7 : vector<128x8xf32>
    %cst_11 = arith.constant dense<0.000000e+00> : vector<1x8xf32>
    %15 = tpu.matmul %12, %14, %cst_11 {dimension_numbers = #tpu.dot_dimension_numbers<[1], [0], [0], [1], [0, 0, 1, 1], [], []>} : vector<1x128xf32>, vector<128x8xf32>, vector<1x8xf32> -> vector<1x8xf32>
    %c0_12 = arith.constant 0 : index
    %c0_13 = arith.constant 0 : index
    %16 = vector.load %arg6[%c0_12, %c0_13] : memref<2x8xf32, #tpu.memory_space<vmem>>, vector<2x8xf32>
    %17 = tpu.concatenate %13, %15 in 0 : vector<1x8xf32>, vector<1x8xf32> -> vector<2x8xf32>
    %18 = arith.addf %16, %17 : vector<2x8xf32>
    %c0_14 = arith.constant 0 : index
    %c0_15 = arith.constant 0 : index
    %19 = vector.load %arg6[%c0_14, %c0_15] : memref<2x8xf32, #tpu.memory_space<vmem>>, vector<2x8xf32>
    tpu.vector_store %arg6[%c0_14, %c0_15], %18 {strides = array<i32>} : memref<2x8xf32, #tpu.memory_space<vmem>>, vector<2x8xf32>,
    %c0_i32_16 = arith.constant 0 : i32
    %20 = arith.cmpi eq, %arg1, %c0_i32_16 : i32
    %21 = arith.extui %20 : i1 to i32
    %c0_i32_17 = arith.constant 0 : i32
    %22 = arith.cmpi ne, %21, %c0_i32_17 : i32
    scf.if %22 {
      %c0_18 = arith.constant 0 : index
      %c0_19 = arith.constant 0 : index
      %23 = vector.load %arg6[%c0_18, %c0_19] : memref<2x8xf32, #tpu.memory_space<vmem>>, vector<2x8xf32>
      %c0_20 = arith.constant 0 : index
      %c0_21 = arith.constant 0 : index
      %c0_22 = arith.constant 0 : index
      %24 = vector.load %arg5[%c0_20, %c0_21, %c0_22] : memref<1x2x8xf32, #tpu.memory_space<vmem>>, vector<1x2x8xf32>
      %25 = vector.shape_cast %24 : vector<1x2x8xf32> to vector<2x8xf32>
      %26 = vector.shape_cast %23 : vector<2x8xf32> to vector<1x2x8xf32>
      tpu.vector_store %arg5[%c0_20, %c0_21, %c0_22], %26 {strides = array<i32>} : memref<1x2x8xf32, #tpu.memory_space<vmem>>, vector<1x2x8xf32>,
    } else {
    }
    return
  }
  func.func @transform_0(%arg0: i32, %arg1: i32) -> (i32, i32, i32) {
    %c0_i32 = arith.constant 0 : i32
    %c0_i32_0 = arith.constant 0 : i32
    return %arg0, %arg1, %c0_i32 : i32, i32, i32
  }
  func.func @transform_1(%arg0: i32, %arg1: i32) -> (i32, i32, i32) {
    %c0_i32 = arith.constant 0 : i32
    %c0_i32_0 = arith.constant 0 : i32
    %c0_i32_1 = arith.constant 0 : i32
    return %arg0, %c0_i32, %c0_i32_0 : i32, i32, i32
  }
  func.func @transform_2(%arg0: i32, %arg1: i32) -> (i32, i32, i32) {
    %c0_i32 = arith.constant 0 : i32
    %c0_i32_0 = arith.constant 0 : i32
    return %arg0, %arg1, %c0_i32 : i32, i32, i32
  }
  func.func @transform_3(%arg0: i32, %arg1: i32) -> (i32, i32, i32) {
    %c0_i32 = arith.constant 0 : i32
    %c0_i32_0 = arith.constant 0 : i32
    %c0_i32_1 = arith.constant 0 : i32
    return %arg0, %c0_i32, %c0_i32_0 : i32, i32, i32
  }
}

module attributes {stable_mosaic.version = 11 : i64} {
  func.func @bn_relu_kernel(%arg0: i32, %arg1: memref<32x128xbf16, #tpu.memory_space<vmem>>, %arg2: memref<2x128xf32, #tpu.memory_space<vmem>>, %arg3: memref<1x128xf32, #tpu.memory_space<vmem>>, %arg4: memref<1x128xf32, #tpu.memory_space<vmem>>, %arg5: memref<32x128xbf16, #tpu.memory_space<vmem>>) attributes {dimension_semantics = [#tpu.dimension_semantics<parallel>], iteration_bounds = array<i64: 1>, scalar_prefetch = 0 : i64, scratch_operands = 0 : i64, tpu.core_type = #tpu.core_type<tc>, window_params = [{transform_indices = @transform_0, window_bounds = array<i64: 32, 128>}, {pipeline_mode = #tpu.pipeline_mode<synchronous>, transform_indices = @transform_1, window_bounds = array<i64: 2, 128>}, {pipeline_mode = #tpu.pipeline_mode<synchronous>, transform_indices = @transform_2, window_bounds = array<i64: 1, 128>}, {pipeline_mode = #tpu.pipeline_mode<synchronous>, transform_indices = @transform_3, window_bounds = array<i64: 1, 128>}, {transform_indices = @transform_4, window_bounds = array<i64: 32, 128>}]} {
    %c0 = arith.constant 0 : index
    %c0_0 = arith.constant 0 : index
    %0 = vector.load %arg2[%c0, %c0_0] : memref<2x128xf32, #tpu.memory_space<vmem>>, vector<1x128xf32>
    %cst = arith.constant 0.001953125 : f32
    %1 = vector.broadcast %cst : f32 to vector<1x128xf32>
    %2 = arith.mulf %0, %1 : vector<1x128xf32>
    %c1 = arith.constant 1 : index
    %c0_1 = arith.constant 0 : index
    %3 = vector.load %arg2[%c1, %c0_1] : memref<2x128xf32, #tpu.memory_space<vmem>>, vector<1x128xf32>
    %cst_2 = arith.constant 0.001953125 : f32
    %4 = vector.broadcast %cst_2 : f32 to vector<1x128xf32>
    %5 = arith.mulf %3, %4 : vector<1x128xf32>
    %6 = arith.mulf %2, %2 : vector<1x128xf32>
    %7 = arith.subf %5, %6 : vector<1x128xf32>
    %cst_3 = arith.constant 9.99999974E-6 : f32
    %8 = vector.broadcast %cst_3 : f32 to vector<1x128xf32>
    %9 = arith.addf %7, %8 : vector<1x128xf32>
    %10 = math.rsqrt %9 : vector<1x128xf32>
    %c0_4 = arith.constant 0 : index
    %c0_5 = arith.constant 0 : index
    %11 = vector.load %arg1[%c0_4, %c0_5] : memref<32x128xbf16, #tpu.memory_space<vmem>>, vector<32x128xbf16>
    %12 = arith.extf %11 : vector<32x128xbf16> to vector<32x128xf32>
    %13 = vector.broadcast %2 : vector<1x128xf32> to vector<32x128xf32>
    %14 = arith.subf %12, %13 : vector<32x128xf32>
    %15 = vector.broadcast %10 : vector<1x128xf32> to vector<32x128xf32>
    %16 = arith.mulf %14, %15 : vector<32x128xf32>
    %c0_6 = arith.constant 0 : index
    %c0_7 = arith.constant 0 : index
    %17 = vector.load %arg3[%c0_6, %c0_7] : memref<1x128xf32, #tpu.memory_space<vmem>>, vector<1x128xf32>
    %18 = vector.broadcast %17 : vector<1x128xf32> to vector<32x128xf32>
    %19 = arith.mulf %16, %18 : vector<32x128xf32>
    %c0_8 = arith.constant 0 : index
    %c0_9 = arith.constant 0 : index
    %20 = vector.load %arg4[%c0_8, %c0_9] : memref<1x128xf32, #tpu.memory_space<vmem>>, vector<1x128xf32>
    %21 = vector.broadcast %20 : vector<1x128xf32> to vector<32x128xf32>
    %22 = arith.addf %19, %21 : vector<32x128xf32>
    %cst_10 = arith.constant 0.000000e+00 : f32
    %23 = vector.broadcast %cst_10 : f32 to vector<32x128xf32>
    %24 = arith.maximumf %22, %23 : vector<32x128xf32>
    %25 = arith.truncf %24 : vector<32x128xf32> to vector<32x128xbf16>
    %c0_11 = arith.constant 0 : index
    %c0_12 = arith.constant 0 : index
    %26 = vector.load %arg5[%c0_11, %c0_12] : memref<32x128xbf16, #tpu.memory_space<vmem>>, vector<32x128xbf16>
    tpu.vector_store %arg5[%c0_11, %c0_12], %25 {strides = array<i32>} : memref<32x128xbf16, #tpu.memory_space<vmem>>, vector<32x128xbf16>,
    return
  }
  func.func @transform_0(%arg0: i32) -> (i32, i32) {
    %c0_i32 = arith.constant 0 : i32
    %c0_i32_0 = arith.constant 0 : i32
    return %arg0, %c0_i32 : i32, i32
  }
  func.func @transform_1(%arg0: i32) -> (i32, i32) {
    %c0_i32 = arith.constant 0 : i32
    %c0_i32_0 = arith.constant 0 : i32
    %c0_i32_1 = arith.constant 0 : i32
    return %c0_i32, %c0_i32_0 : i32, i32
  }
  func.func @transform_2(%arg0: i32) -> (i32, i32) {
    %c0_i32 = arith.constant 0 : i32
    %c0_i32_0 = arith.constant 0 : i32
    %c0_i32_1 = arith.constant 0 : i32
    return %c0_i32, %c0_i32_0 : i32, i32
  }
  func.func @transform_3(%arg0: i32) -> (i32, i32) {
    %c0_i32 = arith.constant 0 : i32
    %c0_i32_0 = arith.constant 0 : i32
    %c0_i32_1 = arith.constant 0 : i32
    return %c0_i32, %c0_i32_0 : i32, i32
  }
  func.func @transform_4(%arg0: i32) -> (i32, i32) {
    %c0_i32 = arith.constant 0 : i32
    %c0_i32_0 = arith.constant 0 : i32
    return %arg0, %c0_i32 : i32, i32
  }
}

module attributes {stable_mosaic.version = 11 : i64} {
  func.func @pmm_stats_kernel(%arg0: i32, %arg1: i32, %arg2: memref<1x512x32xbf16, #tpu.memory_space<vmem>>, %arg3: memref<1x32x4xbf16, #tpu.memory_space<vmem>>, %arg4: memref<1x512x4xbf16, #tpu.memory_space<vmem>>, %arg5: memref<1x2x4xf32, #tpu.memory_space<vmem>>, %arg6: memref<2x4xf32, #tpu.memory_space<vmem>>) attributes {dimension_semantics = [#tpu.dimension_semantics<parallel>, #tpu.dimension_semantics<arbitrary>], iteration_bounds = array<i64: 4, 1>, scalar_prefetch = 0 : i64, scratch_operands = 1 : i64, tpu.core_type = #tpu.core_type<tc>, window_params = [{transform_indices = @transform_0, window_bounds = array<i64: 1, 512, 32>}, {transform_indices = @transform_1, window_bounds = array<i64: 1, 32, 4>}, {transform_indices = @transform_2, window_bounds = array<i64: 1, 512, 4>}, {transform_indices = @transform_3, window_bounds = array<i64: 1, 2, 4>}]} {
    %c0_i32 = arith.constant 0 : i32
    %0 = arith.cmpi eq, %arg1, %c0_i32 : i32
    %1 = arith.extui %0 : i1 to i32
    %c0_i32_0 = arith.constant 0 : i32
    %2 = arith.cmpi ne, %1, %c0_i32_0 : i32
    scf.if %2 {
      %cst_18 = arith.constant 0.000000e+00 : f32
      %23 = vector.broadcast %cst_18 : f32 to vector<2x4xf32>
      %c0_19 = arith.constant 0 : index
      %c0_20 = arith.constant 0 : index
      %24 = vector.load %arg6[%c0_19, %c0_20] : memref<2x4xf32, #tpu.memory_space<vmem>>, vector<2x4xf32>
      tpu.vector_store %arg6[%c0_19, %c0_20], %23 {strides = array<i32>} : memref<2x4xf32, #tpu.memory_space<vmem>>, vector<2x4xf32>,
    } else {
    }
    %c0 = arith.constant 0 : index
    %c0_1 = arith.constant 0 : index
    %c0_2 = arith.constant 0 : index
    %3 = vector.load %arg2[%c0, %c0_1, %c0_2] : memref<1x512x32xbf16, #tpu.memory_space<vmem>>, vector<1x512x32xbf16>
    %4 = vector.shape_cast %3 : vector<1x512x32xbf16> to vector<512x32xbf16>
    %c0_3 = arith.constant 0 : index
    %c0_4 = arith.constant 0 : index
    %c0_5 = arith.constant 0 : index
    %5 = vector.load %arg3[%c0_3, %c0_4, %c0_5] : memref<1x32x4xbf16, #tpu.memory_space<vmem>>, vector<1x32x4xbf16>
    %6 = vector.shape_cast %5 : vector<1x32x4xbf16> to vector<32x4xbf16>
    %cst = arith.constant dense<0.000000e+00> : vector<512x4xf32>
    %7 = tpu.matmul %4, %6, %cst {dimension_numbers = #tpu.dot_dimension_numbers<[1], [0], [0], [1], [0, 0, 1, 1], [], []>} : vector<512x32xbf16>, vector<32x4xbf16>, vector<512x4xf32> -> vector<512x4xf32>
    %8 = arith.truncf %7 : vector<512x4xf32> to vector<512x4xbf16>
    %c0_6 = arith.constant 0 : index
    %c0_7 = arith.constant 0 : index
    %c0_8 = arith.constant 0 : index
    %9 = vector.load %arg4[%c0_6, %c0_7, %c0_8] : memref<1x512x4xbf16, #tpu.memory_space<vmem>>, vector<1x512x4xbf16>
    %10 = vector.shape_cast %9 : vector<1x512x4xbf16> to vector<512x4xbf16>
    %11 = vector.shape_cast %8 : vector<512x4xbf16> to vector<1x512x4xbf16>
    tpu.vector_store %arg4[%c0_6, %c0_7, %c0_8], %11 {strides = array<i32>} : memref<1x512x4xbf16, #tpu.memory_space<vmem>>, vector<1x512x4xbf16>,
    %cst_9 = arith.constant 1.000000e+00 : f32
    %12 = vector.broadcast %cst_9 : f32 to vector<1x512xf32>
    %cst_10 = arith.constant dense<0.000000e+00> : vector<1x4xf32>
    %13 = tpu.matmul %12, %7, %cst_10 {dimension_numbers = #tpu.dot_dimension_numbers<[1], [0], [0], [1], [0, 0, 1, 1], [], []>} : vector<1x512xf32>, vector<512x4xf32>, vector<1x4xf32> -> vector<1x4xf32>
    %14 = arith.mulf %7, %7 : vector<512x4xf32>
    %cst_11 = arith.constant dense<0.000000e+00> : vector<1x4xf32>
    %15 = tpu.matmul %12, %14, %cst_11 {dimension_numbers = #tpu.dot_dimension_numbers<[1], [0], [0], [1], [0, 0, 1, 1], [], []>} : vector<1x512xf32>, vector<512x4xf32>, vector<1x4xf32> -> vector<1x4xf32>
    %c0_12 = arith.constant 0 : index
    %c0_13 = arith.constant 0 : index
    %16 = vector.load %arg6[%c0_12, %c0_13] : memref<2x4xf32, #tpu.memory_space<vmem>>, vector<2x4xf32>
    %17 = tpu.concatenate %13, %15 in 0 : vector<1x4xf32>, vector<1x4xf32> -> vector<2x4xf32>
    %18 = arith.addf %16, %17 : vector<2x4xf32>
    %c0_14 = arith.constant 0 : index
    %c0_15 = arith.constant 0 : index
    %19 = vector.load %arg6[%c0_14, %c0_15] : memref<2x4xf32, #tpu.memory_space<vmem>>, vector<2x4xf32>
    tpu.vector_store %arg6[%c0_14, %c0_15], %18 {strides = array<i32>} : memref<2x4xf32, #tpu.memory_space<vmem>>, vector<2x4xf32>,
    %c0_i32_16 = arith.constant 0 : i32
    %20 = arith.cmpi eq, %arg1, %c0_i32_16 : i32
    %21 = arith.extui %20 : i1 to i32
    %c0_i32_17 = arith.constant 0 : i32
    %22 = arith.cmpi ne, %21, %c0_i32_17 : i32
    scf.if %22 {
      %c0_18 = arith.constant 0 : index
      %c0_19 = arith.constant 0 : index
      %23 = vector.load %arg6[%c0_18, %c0_19] : memref<2x4xf32, #tpu.memory_space<vmem>>, vector<2x4xf32>
      %c0_20 = arith.constant 0 : index
      %c0_21 = arith.constant 0 : index
      %c0_22 = arith.constant 0 : index
      %24 = vector.load %arg5[%c0_20, %c0_21, %c0_22] : memref<1x2x4xf32, #tpu.memory_space<vmem>>, vector<1x2x4xf32>
      %25 = vector.shape_cast %24 : vector<1x2x4xf32> to vector<2x4xf32>
      %26 = vector.shape_cast %23 : vector<2x4xf32> to vector<1x2x4xf32>
      tpu.vector_store %arg5[%c0_20, %c0_21, %c0_22], %26 {strides = array<i32>} : memref<1x2x4xf32, #tpu.memory_space<vmem>>, vector<1x2x4xf32>,
    } else {
    }
    return
  }
  func.func @transform_0(%arg0: i32, %arg1: i32) -> (i32, i32, i32) {
    %c0_i32 = arith.constant 0 : i32
    %c0_i32_0 = arith.constant 0 : i32
    return %arg0, %arg1, %c0_i32 : i32, i32, i32
  }
  func.func @transform_1(%arg0: i32, %arg1: i32) -> (i32, i32, i32) {
    %c0_i32 = arith.constant 0 : i32
    %c0_i32_0 = arith.constant 0 : i32
    %c0_i32_1 = arith.constant 0 : i32
    return %arg0, %c0_i32, %c0_i32_0 : i32, i32, i32
  }
  func.func @transform_2(%arg0: i32, %arg1: i32) -> (i32, i32, i32) {
    %c0_i32 = arith.constant 0 : i32
    %c0_i32_0 = arith.constant 0 : i32
    return %arg0, %arg1, %c0_i32 : i32, i32, i32
  }
  func.func @transform_3(%arg0: i32, %arg1: i32) -> (i32, i32, i32) {
    %c0_i32 = arith.constant 0 : i32
    %c0_i32_0 = arith.constant 0 : i32
    %c0_i32_1 = arith.constant 0 : i32
    return %arg0, %c0_i32, %c0_i32_0 : i32, i32, i32
  }
}

module attributes {stable_mosaic.version = 11 : i64} {
  func.func @bn_relu_kernel(%arg0: i32, %arg1: memref<64x128xbf16, #tpu.memory_space<vmem>>, %arg2: memref<2x128xf32, #tpu.memory_space<vmem>>, %arg3: memref<1x128xf32, #tpu.memory_space<vmem>>, %arg4: memref<1x128xf32, #tpu.memory_space<vmem>>, %arg5: memref<64x128xbf16, #tpu.memory_space<vmem>>) attributes {dimension_semantics = [#tpu.dimension_semantics<parallel>], iteration_bounds = array<i64: 1>, scalar_prefetch = 0 : i64, scratch_operands = 0 : i64, tpu.core_type = #tpu.core_type<tc>, window_params = [{transform_indices = @transform_0, window_bounds = array<i64: 64, 128>}, {pipeline_mode = #tpu.pipeline_mode<synchronous>, transform_indices = @transform_1, window_bounds = array<i64: 2, 128>}, {pipeline_mode = #tpu.pipeline_mode<synchronous>, transform_indices = @transform_2, window_bounds = array<i64: 1, 128>}, {pipeline_mode = #tpu.pipeline_mode<synchronous>, transform_indices = @transform_3, window_bounds = array<i64: 1, 128>}, {transform_indices = @transform_4, window_bounds = array<i64: 64, 128>}]} {
    %c0 = arith.constant 0 : index
    %c0_0 = arith.constant 0 : index
    %0 = vector.load %arg2[%c0, %c0_0] : memref<2x128xf32, #tpu.memory_space<vmem>>, vector<1x128xf32>
    %cst = arith.constant 4.8828125E-4 : f32
    %1 = vector.broadcast %cst : f32 to vector<1x128xf32>
    %2 = arith.mulf %0, %1 : vector<1x128xf32>
    %c1 = arith.constant 1 : index
    %c0_1 = arith.constant 0 : index
    %3 = vector.load %arg2[%c1, %c0_1] : memref<2x128xf32, #tpu.memory_space<vmem>>, vector<1x128xf32>
    %cst_2 = arith.constant 4.8828125E-4 : f32
    %4 = vector.broadcast %cst_2 : f32 to vector<1x128xf32>
    %5 = arith.mulf %3, %4 : vector<1x128xf32>
    %6 = arith.mulf %2, %2 : vector<1x128xf32>
    %7 = arith.subf %5, %6 : vector<1x128xf32>
    %cst_3 = arith.constant 9.99999974E-6 : f32
    %8 = vector.broadcast %cst_3 : f32 to vector<1x128xf32>
    %9 = arith.addf %7, %8 : vector<1x128xf32>
    %10 = math.rsqrt %9 : vector<1x128xf32>
    %c0_4 = arith.constant 0 : index
    %c0_5 = arith.constant 0 : index
    %11 = vector.load %arg1[%c0_4, %c0_5] : memref<64x128xbf16, #tpu.memory_space<vmem>>, vector<64x128xbf16>
    %12 = arith.extf %11 : vector<64x128xbf16> to vector<64x128xf32>
    %13 = vector.broadcast %2 : vector<1x128xf32> to vector<64x128xf32>
    %14 = arith.subf %12, %13 : vector<64x128xf32>
    %15 = vector.broadcast %10 : vector<1x128xf32> to vector<64x128xf32>
    %16 = arith.mulf %14, %15 : vector<64x128xf32>
    %c0_6 = arith.constant 0 : index
    %c0_7 = arith.constant 0 : index
    %17 = vector.load %arg3[%c0_6, %c0_7] : memref<1x128xf32, #tpu.memory_space<vmem>>, vector<1x128xf32>
    %18 = vector.broadcast %17 : vector<1x128xf32> to vector<64x128xf32>
    %19 = arith.mulf %16, %18 : vector<64x128xf32>
    %c0_8 = arith.constant 0 : index
    %c0_9 = arith.constant 0 : index
    %20 = vector.load %arg4[%c0_8, %c0_9] : memref<1x128xf32, #tpu.memory_space<vmem>>, vector<1x128xf32>
    %21 = vector.broadcast %20 : vector<1x128xf32> to vector<64x128xf32>
    %22 = arith.addf %19, %21 : vector<64x128xf32>
    %cst_10 = arith.constant 0.000000e+00 : f32
    %23 = vector.broadcast %cst_10 : f32 to vector<64x128xf32>
    %24 = arith.maximumf %22, %23 : vector<64x128xf32>
    %25 = arith.truncf %24 : vector<64x128xf32> to vector<64x128xbf16>
    %c0_11 = arith.constant 0 : index
    %c0_12 = arith.constant 0 : index
    %26 = vector.load %arg5[%c0_11, %c0_12] : memref<64x128xbf16, #tpu.memory_space<vmem>>, vector<64x128xbf16>
    tpu.vector_store %arg5[%c0_11, %c0_12], %25 {strides = array<i32>} : memref<64x128xbf16, #tpu.memory_space<vmem>>, vector<64x128xbf16>,
    return
  }
  func.func @transform_0(%arg0: i32) -> (i32, i32) {
    %c0_i32 = arith.constant 0 : i32
    %c0_i32_0 = arith.constant 0 : i32
    return %arg0, %c0_i32 : i32, i32
  }
  func.func @transform_1(%arg0: i32) -> (i32, i32) {
    %c0_i32 = arith.constant 0 : i32
    %c0_i32_0 = arith.constant 0 : i32
    %c0_i32_1 = arith.constant 0 : i32
    return %c0_i32, %c0_i32_0 : i32, i32
  }
  func.func @transform_2(%arg0: i32) -> (i32, i32) {
    %c0_i32 = arith.constant 0 : i32
    %c0_i32_0 = arith.constant 0 : i32
    %c0_i32_1 = arith.constant 0 : i32
    return %c0_i32, %c0_i32_0 : i32, i32
  }
  func.func @transform_3(%arg0: i32) -> (i32, i32) {
    %c0_i32 = arith.constant 0 : i32
    %c0_i32_0 = arith.constant 0 : i32
    %c0_i32_1 = arith.constant 0 : i32
    return %c0_i32, %c0_i32_0 : i32, i32
  }
  func.func @transform_4(%arg0: i32) -> (i32, i32) {
    %c0_i32 = arith.constant 0 : i32
    %c0_i32_0 = arith.constant 0 : i32
    return %arg0, %c0_i32 : i32, i32
  }
}

module attributes {stable_mosaic.version = 11 : i64} {
  func.func @pmm_tanh_kernel(%arg0: i32, %arg1: i32, %arg2: memref<1x512x16xbf16, #tpu.memory_space<vmem>>, %arg3: memref<1x16x3xbf16, #tpu.memory_space<vmem>>, %arg4: memref<1x512x3xf32, #tpu.memory_space<vmem>>) attributes {dimension_semantics = [#tpu.dimension_semantics<parallel>, #tpu.dimension_semantics<parallel>], iteration_bounds = array<i64: 4, 4>, scalar_prefetch = 0 : i64, scratch_operands = 0 : i64, tpu.core_type = #tpu.core_type<tc>, window_params = [{transform_indices = @transform_0, window_bounds = array<i64: 1, 512, 16>}, {transform_indices = @transform_1, window_bounds = array<i64: 1, 16, 3>}, {transform_indices = @transform_2, window_bounds = array<i64: 1, 512, 3>}]} {
    %c0 = arith.constant 0 : index
    %c0_0 = arith.constant 0 : index
    %c0_1 = arith.constant 0 : index
    %0 = vector.load %arg2[%c0, %c0_0, %c0_1] : memref<1x512x16xbf16, #tpu.memory_space<vmem>>, vector<1x512x16xbf16>
    %1 = vector.shape_cast %0 : vector<1x512x16xbf16> to vector<512x16xbf16>
    %c0_2 = arith.constant 0 : index
    %c0_3 = arith.constant 0 : index
    %c0_4 = arith.constant 0 : index
    %2 = vector.load %arg3[%c0_2, %c0_3, %c0_4] : memref<1x16x3xbf16, #tpu.memory_space<vmem>>, vector<1x16x3xbf16>
    %3 = vector.shape_cast %2 : vector<1x16x3xbf16> to vector<16x3xbf16>
    %cst = arith.constant dense<0.000000e+00> : vector<512x3xf32>
    %4 = tpu.matmul %1, %3, %cst {dimension_numbers = #tpu.dot_dimension_numbers<[1], [0], [0], [1], [0, 0, 1, 1], [], []>} : vector<512x16xbf16>, vector<16x3xbf16>, vector<512x3xf32> -> vector<512x3xf32>
    %5 = math.tanh %4 : vector<512x3xf32>
    %c0_5 = arith.constant 0 : index
    %c0_6 = arith.constant 0 : index
    %c0_7 = arith.constant 0 : index
    %6 = vector.load %arg4[%c0_5, %c0_6, %c0_7] : memref<1x512x3xf32, #tpu.memory_space<vmem>>, vector<1x512x3xf32>
    %7 = vector.shape_cast %6 : vector<1x512x3xf32> to vector<512x3xf32>
    %8 = vector.shape_cast %5 : vector<512x3xf32> to vector<1x512x3xf32>
    tpu.vector_store %arg4[%c0_5, %c0_6, %c0_7], %8 {strides = array<i32>} : memref<1x512x3xf32, #tpu.memory_space<vmem>>, vector<1x512x3xf32>,
    return
  }
  func.func @transform_0(%arg0: i32, %arg1: i32) -> (i32, i32, i32) {
    %c0_i32 = arith.constant 0 : i32
    %c0_i32_0 = arith.constant 0 : i32
    return %arg0, %arg1, %c0_i32 : i32, i32, i32
  }
  func.func @transform_1(%arg0: i32, %arg1: i32) -> (i32, i32, i32) {
    %c0_i32 = arith.constant 0 : i32
    %c0_i32_0 = arith.constant 0 : i32
    %c0_i32_1 = arith.constant 0 : i32
    return %arg0, %c0_i32, %c0_i32_0 : i32, i32, i32
  }
  func.func @transform_2(%arg0: i32, %arg1: i32) -> (i32, i32, i32) {
    %c0_i32 = arith.constant 0 : i32
    %c0_i32_0 = arith.constant 0 : i32
    return %arg0, %arg1, %c0_i32 : i32, i32, i32
  }
}

</mosaic_0001>

<llo_original>
// kernel: tile.56
$region0: #{tile.56}
  %s0 = inlined_call_operand.vmem [shape: f32[2,4,32], index: 0, kind: input, shape index: {}]
  %s1 = inlined_call_operand.vmem [shape: f32[2,128], index: 1, kind: output, shape index: {}]
  $region1: #{tile.56} parent=0
    #allocation0 [shape = 'u8[4096]{0}', space=vmem, size = 0x1000, scoped, tag = 'scoped mem for output reshape']
    #allocation1 [shape = 'u8[8192]{0}', space=vmem, size = 0x2000, scoped, tag = 'scoped mem for input reshape']
    %s3 = sshllo.u32 0, 4
    %s4 = scalar_lea.vmem %s0, 4
    %v5 = vld [vmem:[%s4] sm:%s3]
    %s6 = scalar_lea.vmem [#allocation1], 8
    %7 = vst [vmem:[%s6] sm:%s3] %v5
    %v8 = vld [vmem:[%s0] sm:%s3]
    %9 = vst [vmem:[#allocation1] sm:%s3] %v8
    %s10 = smov 3
    %v11 = vld [vmem:[#allocation1] ss:$8 sm:%s10]
    %vm12 = vcmask 261120
    %13 = vst.msk [vmem:[#allocation0] sm:$0x3] %vm12, %v11
    %s14 = scalar_lea.vmem [#allocation1], 3
    %s15 = smov 3
    %v16 = vld [vmem:[%s14] ss:$8 sm:%s15]
    %17 = vrot.lane.b32.xlu0 %v16, 96
    %v18 = vpop.permute.xlu0 %17
    %vm19 = vcmask 1048320
    %20 = vst.msk [vmem:[#allocation0] sm:$0x3] %vm19, %v18
    %s21 = scalar_lea.vmem [#allocation1], 2
    %s22 = smov 3
    %v23 = vld [vmem:[%s21] ss:$8 sm:%s22]
    %24 = vrot.lane.b32.xlu0 %v23, 64
    %v25 = vpop.permute.xlu0 %24
    %vm26 = vcmask 785920
    %27 = vst.msk [vmem:[#allocation0] sm:$0x3] %vm26, %v25
    %s28 = scalar_lea.vmem [#allocation1], 1
    %s29 = smov 3
    %v30 = vld [vmem:[%s28] ss:$8 sm:%s29]
    %31 = vrot.lane.b32.xlu0 %v30, 32
    %v32 = vpop.permute.xlu0 %31
    %vm33 = vcmask 523520
    %34 = vst.msk [vmem:[#allocation0] sm:$0x3] %vm33, %v32
    %s36 = sshllo.u32 0, 2
    %v38 = vld [vmem:[#allocation0] sm:%s36]
    %s39 = sshllo.u32 0, 2
    %40 = vst [vmem:[%s1] sm:%s39] %v38

// kernel: tile.69
$region0: #{tile.69}
  %s0 = inlined_call_operand.vmem [shape: f32[2,8,16], index: 0, kind: input, shape index: {}]
  %s1 = inlined_call_operand.vmem [shape: f32[2,128], index: 1, kind: output, shape index: {}]
  $region1: #{tile.69} parent=0
    #allocation0 [shape = 'u8[4096]{0}', space=vmem, size = 0x1000, scoped, tag = 'scoped mem for output reshape']
    %s2 = smov 3
    %v3 = vld [vmem:[%s0] ss:$8 sm:%s2]
    %vm4 = vcmask 130048
    %5 = vst.msk [vmem:[#allocation0] sm:$0x3] %vm4, %v3
    %s6 = scalar_lea.vmem %s0, 7
    %s7 = smov 3
    %v8 = vld [vmem:[%s6] ss:$8 sm:%s7]
    %9 = vrot.lane.b32.xlu0 %v8, 112
    %v10 = vpop.permute.xlu0 %9
    %vm11 = vcmask 1048448
    %12 = vst.msk [vmem:[#allocation0] sm:$0x3] %vm11, %v10
    %s13 = scalar_lea.vmem %s0, 6
    %s14 = smov 3
    %v15 = vld [vmem:[%s13] ss:$8 sm:%s14]
    %16 = vrot.lane.b32.xlu0 %v15, 96
    %v17 = vpop.permute.xlu0 %16
    %vm18 = vcmask 917248
    %19 = vst.msk [vmem:[#allocation0] sm:$0x3] %vm18, %v17
    %s20 = scalar_lea.vmem %s0, 5
    %s21 = smov 3
    %v22 = vld [vmem:[%s20] ss:$8 sm:%s21]
    %23 = vrot.lane.b32.xlu0 %v22, 80
    %v24 = vpop.permute.xlu0 %23
    %vm25 = vcmask 786048
    %26 = vst.msk [vmem:[#allocation0] sm:$0x3] %vm25, %v24
    %s27 = scalar_lea.vmem %s0, 4
    %s28 = smov 3
    %v29 = vld [vmem:[%s27] ss:$8 sm:%s28]
    %30 = vrot.lane.b32.xlu0 %v29, 64
    %v31 = vpop.permute.xlu0 %30
    %vm32 = vcmask 654848
    %33 = vst.msk [vmem:[#allocation0] sm:$0x3] %vm32, %v31
    %s34 = scalar_lea.vmem %s0, 3
    %s35 = smov 3
    %v36 = vld [vmem:[%s34] ss:$8 sm:%s35]
    %37 = vrot.lane.b32.xlu0 %v36, 48
    %v38 = vpop.permute.xlu0 %37
    %vm39 = vcmask 523648
    %40 = vst.msk [vmem:[#allocation0] sm:$0x3] %vm39, %v38
    %s41 = scalar_lea.vmem %s0, 2
    %s42 = smov 3
    %v43 = vld [vmem:[%s41] ss:$8 sm:%s42]
    %44 = vrot.lane.b32.xlu0 %v43, 32
    %v45 = vpop.permute.xlu0 %44
    %vm46 = vcmask 392448
    %47 = vst.msk [vmem:[#allocation0] sm:$0x3] %vm46, %v45
    %s48 = scalar_lea.vmem %s0, 1
    %s49 = smov 3
    %v50 = vld [vmem:[%s48] ss:$8 sm:%s49]
    %51 = vrot.lane.b32.xlu0 %v50, 16
    %v52 = vpop.permute.xlu0 %51
    %vm53 = vcmask 261248
    %54 = vst.msk [vmem:[#allocation0] sm:$0x3] %vm53, %v52
    %s56 = sshllo.u32 0, 2
    %v58 = vld [vmem:[#allocation0] sm:%s56]
    %s59 = sshllo.u32 0, 2
    %60 = vst [vmem:[%s1] sm:%s59] %v58

// kernel: dc_generator_forward.9
$region0: #{dc_generator_forward.9}
  #allocation0 [shape = 'u32[]', space=smem, size = 0x4, offset = 0x4, fixed_abs, tag = 'smem constant byte address 0x4 - core index']
  #allocation1 [shape = 'u32[144,128]{1,0:T(1,128)}', space=vmem, size = 0x12000, scoped, tag = 'internal scratch']
  #allocation2 [shape = 'f32[2,32]{1,0:T(2,128)}', space=vmem, size = 0x400, scoped, tag = 'scratch operand']
  %s0 = inlined_call_operand.vmem [shape: bf16[1,8,16], index: 0, kind: input, shape index: {}]
  %s1 = inlined_call_operand.vmem [shape: bf16[16,16,32], index: 1, kind: input, shape index: {}]
  %s2 = inlined_call_operand.vmem [shape: bf16[16,8,32], index: 2, kind: output, shape index: {0}]
  %s3 = inlined_call_operand.vmem [shape: f32[16,2,32], index: 3, kind: output, shape index: {1}]
  %4 = xla_tuple %s2, %s3
  %s5 = sld [smem:[#allocation0]]
  $region57: #{dc_generator_forward.9} parent=0
    _
  %s7 = ssub.s32 1, %s5
  %s8 = scalar_select 0, %s7, %s5
  loop: start=0, step=1, limit=18
  $region2: #{dc_generator_forward.9} parent=0 // loop_pre_header
    _
  $region3: #{dc_generator_forward.9} parent=0 // loop_header
    %s10 = sphi 0, %s14
    %p11 = scmp.ge.s32.totalorder %s10, 18
    %s17 = sphi 0, %s29
    %s18 = sphi 0, %s25
    %s19 = sphi 0, %s17
    %s20 = sphi 0, %s18
    %s21 = sphi 0, %s19
    %s22 = sphi 0, %s20
    %s32 = sphi 0, %s34
    %s35 = sphi 0, %s32
    %s36 = sphi 0, %s35
    %s52 = sphi 0, %s36
    %s58 = sphi 0, %s60
    %s61 = sphi 0, %s58
    %s62 = sphi 0, %s61
    %s78 = sphi 0, %s62
    %s86 = sphi 0, %s88
    %s89 = sphi 0, %s86
    %s90 = sphi 0, %s89
    %s106 = sphi 0, %s90
    %s112 = sphi 0, %s114
    %s115 = sphi 0, %s112
    %s116 = sphi 0, %s115
    %s132 = sphi 0, %s116
  $region4: #{dc_generator_forward.9} parent=0 // loop_header_branch
    %13 = sbr.rel (%p11) target = $region8
  $region5: #{dc_generator_forward.9} parent=0 // loop_body
    %s15 = ssub.s32 %s10, 1
    %s16 = ssub.s32 %s10, 2
    %s23 = sadd.s32 1, %s18
    %p24 = scmp.ge.s32.totalorder %s23, 1
    %s25 = scalar_select %p24, 0, %s23
    %s26 = sadd.s32 1, %s17
    %s27 = scalar_select %p24, %s26, %s17
    %p28 = scmp.ge.s32.totalorder %s27, 16
    %s29 = scalar_select %p28, 0, %s27
    %s30 = ssub.s32 %s18, %s25
    %p31 = scmp.eq.s32.totalorder %s30, 0
    %s33 = sadd.s32 %s32, 1
    %s34 = scalar_select %p31, %s32, %s33
    %p37 = pneg %p31
    %p38 = scmp.eq.s32.totalorder %s10, 15
    %p39 = por %p37, %p38
    %p40 = scmp.ne.s32.totalorder %s32, %s35
    %p41 = scmp.eq.s32.totalorder %s10, 0
    %p42 = por %p40, %p41
    %p43 = scmp.ne.s32.totalorder %s32, %s35
    %p44 = scmp.eq.s32.totalorder %s15, 15
    %p45 = por %p43, %p44
    %p46 = scmp.ne.s32.totalorder %s35, %s36
    %p47 = scmp.eq.s32.totalorder %s15, 0
    %p48 = por %p46, %p47
    %p49 = scmp.ne.s32.totalorder %s35, %s36
    %p50 = scmp.eq.s32.totalorder %s16, 15
    %p51 = por %p49, %p50
    %p53 = scmp.ne.s32.totalorder %s36, %s52
    %p54 = scmp.eq.s32.totalorder %s16, 0
    %p55 = por %p53, %p54
    %s56 = ssub.s32 %s17, %s29
    %p57 = scmp.eq.s32.totalorder %s56, 0
    %s59 = sadd.s32 %s58, 1
    %s60 = scalar_select %p57, %s58, %s59
    %p63 = pneg %p57
    %p64 = scmp.eq.s32.totalorder %s10, 15
    %p65 = por %p63, %p64
    %p66 = scmp.ne.s32.totalorder %s58, %s61
    %p67 = scmp.eq.s32.totalorder %s10, 0
    %p68 = por %p66, %p67
    %p69 = scmp.ne.s32.totalorder %s58, %s61
    %p70 = scmp.eq.s32.totalorder %s15, 15
    %p71 = por %p69, %p70
    %p72 = scmp.ne.s32.totalorder %s61, %s62
    %p73 = scmp.eq.s32.totalorder %s15, 0
    %p74 = por %p72, %p73
    %p75 = scmp.ne.s32.totalorder %s61, %s62
    %p76 = scmp.eq.s32.totalorder %s16, 15
    %p77 = por %p75, %p76
    %p79 = scmp.ne.s32.totalorder %s62, %s78
    %p80 = scmp.eq.s32.totalorder %s16, 0
    %p81 = por %p79, %p80
    %s82 = ssub.s32 %s17, %s29
    %s83 = ssub.s32 %s18, %s25
    %s84 = sor.u32 %s82, %s83
    %p85 = scmp.eq.s32.totalorder %s84, 0
    %s87 = sadd.s32 %s86, 1
    %s88 = scalar_select %p85, %s86, %s87
    %p91 = pneg %p85
    %p92 = scmp.eq.s32.totalorder %s10, 15
    %p93 = por %p91, %p92
    %p94 = scmp.ne.s32.totalorder %s86, %s89
    %p95 = scmp.eq.s32.totalorder %s10, 0
    %p96 = por %p94, %p95
    %p97 = scmp.ne.s32.totalorder %s86, %s89
    %p98 = scmp.eq.s32.totalorder %s15, 15
    %p99 = por %p97, %p98
    %p100 = scmp.ne.s32.totalorder %s89, %s90
    %p101 = scmp.eq.s32.totalorder %s15, 0
    %p102 = por %p100, %p101
    %p103 = scmp.ne.s32.totalorder %s89, %s90
    %p104 = scmp.eq.s32.totalorder %s16, 15
    %p105 = por %p103, %p104
    %p107 = scmp.ne.s32.totalorder %s90, %s106
    %p108 = scmp.eq.s32.totalorder %s16, 0
    %p109 = por %p107, %p108
    %s110 = ssub.s32 %s17, %s29
    %p111 = scmp.eq.s32.totalorder %s110, 0
    %s113 = sadd.s32 %s112, 1
    %s114 = scalar_select %p111, %s112, %s113
    %p117 = pneg %p111
    %p118 = scmp.eq.s32.totalorder %s10, 15
    %p119 = por %p117, %p118
    %p120 = scmp.ne.s32.totalorder %s112, %s115
    %p121 = scmp.eq.s32.totalorder %s10, 0
    %p122 = por %p120, %p121
    %p123 = scmp.ne.s32.totalorder %s112, %s115
    %p124 = scmp.eq.s32.totalorder %s15, 15
    %p125 = por %p123, %p124
    %p126 = scmp.ne.s32.totalorder %s115, %s116
    %p127 = scmp.eq.s32.totalorder %s15, 0
    %p128 = por %p126, %p127
    %p129 = scmp.ne.s32.totalorder %s115, %s116
    %p130 = scmp.eq.s32.totalorder %s16, 15
    %p131 = por %p129, %p130
    %p133 = scmp.ne.s32.totalorder %s116, %s132
    %p134 = scmp.eq.s32.totalorder %s16, 0
    %p135 = por %p133, %p134
    %p136 = scmp.le.s32.totalorder 1, %s10
    %p137 = scmp.lt.s32.totalorder %s10, 17
    %p138 = pnand %p136, %p137
    %p139 = pneg %p138
    // Predicated region
    $region9: #{dc_generator_forward.9} parent=5 // pred_check
      _
    $region10: #{dc_generator_forward.9} parent=5 // pred_check_branch
      %141 = sbr.rel (%p138) target = $region12
    $region11: #{dc_generator_forward.9} parent=5 // pred_region
      %s142 = ssub.s32 %s10, 1
      // Predicated region
      $region13: #{dc_generator_forward.9} parent=11 // pred_check
        %p143 = pneg %p48
      $region14: #{dc_generator_forward.9} parent=11 // pred_check_branch
        %145 = sbr.rel (%p143) target = $region16
      $region15: #{dc_generator_forward.9} parent=11 // pred_region
        %p146 = scmp.lt.s32.totalorder %s20, 0
        %s147 = scalar_select %p146, %s20, 0
        %s148 = smul.addr %s147, 4
        %s149 = scalar_lea.vmem %s0, %s148
      $region16: #{dc_generator_forward.9} parent=11 // pred_fallthru
        _
    $region12: #{dc_generator_forward.9} parent=5 // pred_fallthru
      _
    %p150 = scmp.lt.s32.totalorder %s10, 16
    // Predicated region
    $region17: #{dc_generator_forward.9} parent=5 // pred_check
      %p151 = pneg %p150
    $region18: #{dc_generator_forward.9} parent=5 // pred_check_branch
      %153 = sbr.rel (%p151) target = $region20
    $region19: #{dc_generator_forward.9} parent=5 // pred_region
      // Predicated region
      $region21: #{dc_generator_forward.9} parent=19 // pred_check
        %p154 = pneg %p68
      $region22: #{dc_generator_forward.9} parent=19 // pred_check_branch
        %156 = sbr.rel (%p154) target = $region24
      $region23: #{dc_generator_forward.9} parent=19 // pred_region
        %p157 = scmp.lt.s32.totalorder %s17, 15
        %s158 = scalar_select %p157, %s17, 15
        %s159 = smul.addr %s158, 2
        %s160 = smul.addr %s159, 4
        %s161 = scalar_lea.vmem %s1, %s160
      $region24: #{dc_generator_forward.9} parent=19 // pred_fallthru
        _
    $region20: #{dc_generator_forward.9} parent=5 // pred_fallthru
      _
    %p162 = scmp.le.s32.totalorder 1, %s10
    %p163 = scmp.lt.s32.totalorder %s10, 17
    %p164 = pnand %p162, %p163
    %p165 = pneg %p164
    // Predicated region
    $region25: #{dc_generator_forward.9} parent=5 // pred_check
      _
    $region26: #{dc_generator_forward.9} parent=5 // pred_check_branch
      %167 = sbr.rel (%p164) target = $region28
    $region27: #{dc_generator_forward.9} parent=5 // pred_region
      %s168 = ssub.s32 %s10, 1
      %p169 = scmp.lt.s32.totalorder %s20, 0
      %s170 = scalar_select %p169, %s20, 0
      %s171 = smul.addr %s170, 4
      %s172 = scalar_lea.vmem %s0, %s171
      %p173 = pneg %p48
      %p174 = pneg %p45
      %p175 = scmp.lt.s32.totalorder %s19, 15
      %s176 = scalar_select %p175, %s19, 15
      %s177 = smul.addr %s176, 2
      %s178 = smul.addr %s177, 4
      %s179 = scalar_lea.vmem %s1, %s178
      %p180 = pneg %p74
      %p181 = pneg %p71
      %p182 = pneg %p102
      %p183 = pneg %p99
      %p184 = scmp.lt.s32.totalorder %s19, 15
      %s185 = scalar_select %p184, %s19, 15
      %p186 = scmp.lt.s32.totalorder %s20, 0
      %s187 = scalar_select %p186, %s20, 0
      %s188 = sadd.s32 %s187, %s185
      %s189 = smul.addr %s188, 4
      %s190 = scalar_lea.vmem %s2, %s189
      %p191 = pneg %p128
      %p192 = pneg %p125
      %p193 = scmp.lt.s32.totalorder %s19, 15
      %s194 = scalar_select %p193, %s19, 15
      %s195 = smul.addr %s194, 2
      %s196 = scalar_lea.vmem %s3, %s195
      %p197 = scmp.lt.s32.totalorder %s20, 0
      %s198 = scalar_select %p197, %s20, 0
      %s199 = smul.addr %s198, 4
      %s200 = scalar_lea.vmem %s0, %s199
      %p201 = scmp.lt.s32.totalorder %s19, 15
      %s202 = scalar_select %p201, %s19, 15
      %s203 = smul.addr %s202, 2
      %s204 = smul.addr %s203, 4
      %s205 = scalar_lea.vmem %s1, %s204
      %p206 = scmp.lt.s32.totalorder %s19, 15
      %s207 = scalar_select %p206, %s19, 15
      %p208 = scmp.lt.s32.totalorder %s20, 0
      %s209 = scalar_select %p208, %s20, 0
      %s210 = sadd.s32 %s209, %s207
      %s211 = smul.addr %s210, 4
      %s212 = scalar_lea.vmem %s2, %s211
      %p213 = scmp.lt.s32.totalorder %s19, 15
      %s214 = scalar_select %p213, %s19, 15
      %s215 = smul.addr %s214, 2
      %s216 = scalar_lea.vmem %s3, %s215
      %p218 = scmp.eq.s32.totalorder %s20, 0
      // Predicated region
      $region29: #{dc_generator_forward.9} parent=27 // pred_check
        %p219 = pneg %p218
      $region30: #{dc_generator_forward.9} parent=27 // pred_check_branch
        %221 = sbr.rel (%p219) target = $region32
      $region31: #{dc_generator_forward.9} parent=27 // pred_region
        %vm222 = vcmask 254976
        %223 = vst.msk [vmem:[#allocation2] sm:$0x3] %vm222, 0.0
      $region32: #{dc_generator_forward.9} parent=27 // pred_fallthru
        _
      %v224 = vld [vmem:[%s200] sm:$0xf]
      %v225 = vld [vmem:[%s205] sm:$0xf]
      %v226 = vld [vmem:[%s205 + $0x4] sm:$0xf]
      %v229 = vunpack.c.l.b16 %v225
      %v230 = vunpack.c.l.b16 %v226
      %v231 = vpack.c.b16 %v230, %v229
      %vm233 = vcmask 130048
      %v235 = vsel %vm233, %v224, 0
      %237 = vmatprep.subr.bf16.mxu0 0
      %238 = vmatpush1.bf16.msra.mxu0 %v231
      %239 = vmatprep.subr.bf16.mxu0 0
      %240 = vmatpush1.bf16.msra.mxu0 0
      %241 = vmatprep.subr.bf16.mxu0 0
      %242 = vmatpush1.bf16.msra.mxu0 0
      %243 = vmatprep.subr.bf16.mxu0 0
      %244 = vmatpush1.bf16.msra.mxu0 0
      %245 = vmatprep.subr.bf16.mxu0 0
      %246 = vmatpush1.bf16.msra.mxu0 0
      %247 = vmatprep.subr.bf16.mxu0 0
      %248 = vmatpush1.bf16.msra.mxu0 0
      %249 = vmatprep.subr.bf16.mxu0 0
      %250 = vmatpush1.bf16.msra.mxu0 0
      %251 = vmatprep.subr.bf16.mxu0 0
      %252 = vmatpush1.bf16.msra.mxu0 0
      %253 = vmatprep.subr.bf16.mxu0 0
      %254 = vmatpush1.bf16.msra.mxu0 0
      %255 = vmatprep.subr.bf16.mxu0 0
      %256 = vmatpush1.bf16.msra.mxu0 0
      %257 = vmatprep.subr.bf16.mxu0 0
      %258 = vmatpush1.bf16.msra.mxu0 0
      %259 = vmatprep.subr.bf16.mxu0 0
      %260 = vmatpush1.bf16.msra.mxu0 0
      %261 = vmatprep.subr.bf16.mxu0 0
      %262 = vmatpush1.bf16.msra.mxu0 0
      %263 = vmatprep.subr.bf16.mxu0 0
      %264 = vmatpush1.bf16.msra.mxu0 0
      %265 = vmatprep.subr.bf16.mxu0 0
      %266 = vmatpush1.bf16.msra.mxu0 0
      %267 = vmatprep.subr.bf16.mxu0 0
      %268 = vmatpush1.bf16.msra.mxu0 0
      %269 = vmatprep.mubr.bf16.mxu0 0
      %270 = vmatmul.mubr.bf16.gmra.mrb[0].mxu0 %v235
      %v271 = vpop.f32.mrb[0].mxu0
      %v272 = vadd.f32 0.0, %v271
      %v273 = vpop.f32.mrb[0].mxu0
      %v274 = vpop.f32.mrb[0].mxu0
      %v275 = vpop.f32.mrb[0].mxu0
      %276 = vdwg.mxu0
      %v277 = vpack.c.bf16 %v272, %v272
      %vm278 = vcmask 257024
      %279 = vst.msk [vmem:[%s212] sm:$0xf] %vm278, %v277
      %vm280 = vcmask 64512
      %v282 = vsel %vm280, 1.0, 0
      %284 = vmatprep.subr.mxu0 0.0
      %285 = vmatpush1.msra.mxu0 %v272
      %286 = vmatprep.subr.mxu0 0.0
      %287 = vmatpush1.msra.mxu0 0.0
      %288 = vmatprep.subr.mxu0 0.0
      %289 = vmatpush1.msra.mxu0 0.0
      %290 = vmatprep.subr.mxu0 0.0
      %291 = vmatpush1.msra.mxu0 0.0
      %292 = vmatprep.subr.mxu0 0.0
      %293 = vmatpush1.msra.mxu0 0.0
      %294 = vmatprep.subr.mxu0 0.0
      %295 = vmatpush1.msra.mxu0 0.0
      %296 = vmatprep.subr.mxu0 0.0
      %297 = vmatpush1.msra.mxu0 0.0
      %298 = vmatprep.subr.mxu0 0.0
      %299 = vmatpush1.msra.mxu0 0.0
      %300 = vmatprep.subr.mxu0 0.0
      %301 = vmatpush1.msra.mxu0 0.0
      %302 = vmatprep.subr.mxu0 0.0
      %303 = vmatpush1.msra.mxu0 0.0
      %304 = vmatprep.subr.mxu0 0.0
      %305 = vmatpush1.msra.mxu0 0.0
      %306 = vmatprep.subr.mxu0 0.0
      %307 = vmatpush1.msra.mxu0 0.0
      %308 = vmatprep.subr.mxu0 0.0
      %309 = vmatpush1.msra.mxu0 0.0
      %310 = vmatprep.subr.mxu0 0.0
      %311 = vmatpush1.msra.mxu0 0.0
      %312 = vmatprep.subr.mxu0 0.0
      %313 = vmatpush1.msra.mxu0 0.0
      %314 = vmatprep.subr.mxu0 0.0
      %315 = vmatpush1.msra.mxu0 0.0
      %316 = vmatprep.subr.mxu0 0.0
      %317 = vmatpush1.msra.mxu0 0.0
      %318 = vmatprep.subr.mxu0 0.0
      %319 = vmatpush1.msra.mxu0 0.0
      %320 = vmatprep.subr.mxu0 0.0
      %321 = vmatpush1.msra.mxu0 0.0
      %322 = vmatprep.subr.mxu0 0.0
      %323 = vmatpush1.msra.mxu0 0.0
      %324 = vmatprep.subr.mxu0 0.0
      %325 = vmatpush1.msra.mxu0 0.0
      %326 = vmatprep.subr.mxu0 0.0
      %327 = vmatpush1.msra.mxu0 0.0
      %328 = vmatprep.subr.mxu0 0.0
      %329 = vmatpush1.msra.mxu0 0.0
      %330 = vmatprep.subr.mxu0 0.0
      %331 = vmatpush1.msra.mxu0 0.0
      %332 = vmatprep.subr.mxu0 0.0
      %333 = vmatpush1.msra.mxu0 0.0
      %334 = vmatprep.subr.mxu0 0.0
      %335 = vmatpush1.msra.mxu0 0.0
      %336 = vmatprep.subr.mxu0 0.0
      %337 = vmatpush1.msra.mxu0 0.0
      %338 = vmatprep.subr.mxu0 0.0
      %339 = vmatpush1.msra.mxu0 0.0
      %340 = vmatprep.subr.mxu0 0.0
      %341 = vmatpush1.msra.mxu0 0.0
      %342 = vmatprep.subr.mxu0 0.0
      %343 = vmatpush1.msra.mxu0 0.0
      %344 = vmatprep.subr.mxu0 0.0
      %345 = vmatpush1.msra.mxu0 0.0
      %346 = vmatprep.subr.mxu0 0.0
      %347 = vmatpush1.msra.mxu0 0.0
      %348 = vmatprep.mubr.f32.mxu0 0.0
      %349 = vmatmul.mubr.f32.gmra.mrb[0].mxu0 %v282
      %v350 = vpop.f32.mrb[0].mxu0
      %v351 = vadd.f32 0.0, %v350
      %v352 = vpop.f32.mrb[0].mxu0
      %353 = vdwg.mxu0
      %v354 = vmul.f32 %v272, %v272
      %355 = vmatprep.subr.mxu0 0.0
      %356 = vmatpush1.msra.mxu0 %v354
      %357 = vmatprep.subr.mxu0 0.0
      %358 = vmatpush1.msra.mxu0 0.0
      %359 = vmatprep.subr.mxu0 0.0
      %360 = vmatpush1.msra.mxu0 0.0
      %361 = vmatprep.subr.mxu0 0.0
      %362 = vmatpush1.msra.mxu0 0.0
      %363 = vmatprep.subr.mxu0 0.0
      %364 = vmatpush1.msra.mxu0 0.0
      %365 = vmatprep.subr.mxu0 0.0
      %366 = vmatpush1.msra.mxu0 0.0
      %367 = vmatprep.subr.mxu0 0.0
      %368 = vmatpush1.msra.mxu0 0.0
      %369 = vmatprep.subr.mxu0 0.0
      %370 = vmatpush1.msra.mxu0 0.0
      %371 = vmatprep.subr.mxu0 0.0
      %372 = vmatpush1.msra.mxu0 0.0
      %373 = vmatprep.subr.mxu0 0.0
      %374 = vmatpush1.msra.mxu0 0.0
      %375 = vmatprep.subr.mxu0 0.0
      %376 = vmatpush1.msra.mxu0 0.0
      %377 = vmatprep.subr.mxu0 0.0
      %378 = vmatpush1.msra.mxu0 0.0
      %379 = vmatprep.subr.mxu0 0.0
      %380 = vmatpush1.msra.mxu0 0.0
      %381 = vmatprep.subr.mxu0 0.0
      %382 = vmatpush1.msra.mxu0 0.0
      %383 = vmatprep.subr.mxu0 0.0
      %384 = vmatpush1.msra.mxu0 0.0
      %385 = vmatprep.subr.mxu0 0.0
      %386 = vmatpush1.msra.mxu0 0.0
      %387 = vmatprep.subr.mxu0 0.0
      %388 = vmatpush1.msra.mxu0 0.0
      %389 = vmatprep.subr.mxu0 0.0
      %390 = vmatpush1.msra.mxu0 0.0
      %391 = vmatprep.subr.mxu0 0.0
      %392 = vmatpush1.msra.mxu0 0.0
      %393 = vmatprep.subr.mxu0 0.0
      %394 = vmatpush1.msra.mxu0 0.0
      %395 = vmatprep.subr.mxu0 0.0
      %396 = vmatpush1.msra.mxu0 0.0
      %397 = vmatprep.subr.mxu0 0.0
      %398 = vmatpush1.msra.mxu0 0.0
      %399 = vmatprep.subr.mxu0 0.0
      %400 = vmatpush1.msra.mxu0 0.0
      %401 = vmatprep.subr.mxu0 0.0
      %402 = vmatpush1.msra.mxu0 0.0
      %403 = vmatprep.subr.mxu0 0.0
      %404 = vmatpush1.msra.mxu0 0.0
      %405 = vmatprep.subr.mxu0 0.0
      %406 = vmatpush1.msra.mxu0 0.0
      %407 = vmatprep.subr.mxu0 0.0
      %408 = vmatpush1.msra.mxu0 0.0
      %409 = vmatprep.subr.mxu0 0.0
      %410 = vmatpush1.msra.mxu0 0.0
      %411 = vmatprep.subr.mxu0 0.0
      %412 = vmatpush1.msra.mxu0 0.0
      %413 = vmatprep.subr.mxu0 0.0
      %414 = vmatpush1.msra.mxu0 0.0
      %415 = vmatprep.subr.mxu0 0.0
      %416 = vmatpush1.msra.mxu0 0.0
      %417 = vmatprep.subr.mxu0 0.0
      %418 = vmatpush1.msra.mxu0 0.0
      %419 = vmatprep.mubr.f32.mxu0 0.0
      %420 = vmatmul.mubr.f32.gmra.mrb[0].mxu0 %v282
      %v421 = vpop.f32.mrb[0].mxu0
      %v422 = vadd.f32 0.0, %v421
      %v423 = vpop.f32.mrb[0].mxu0
      %424 = vdwg.mxu0
      %v425 = vld [vmem:[#allocation2] sm:$0x3]
      %v427 = vrot.slane %v422, 7
      %vm429 = vcmask 1040384
      %v430 = vsel %vm429, %v351, %v427
      %v431 = vadd.f32 %v425, %v430
      %vm432 = vcmask 254976
      %433 = vst.msk [vmem:[#allocation2] sm:$0x3] %vm432, %v431
      // Predicated region
      $region33: #{dc_generator_forward.9} parent=27 // pred_check
        %p434 = pneg %p218
      $region34: #{dc_generator_forward.9} parent=27 // pred_check_branch
        %436 = sbr.rel (%p434) target = $region36
      $region35: #{dc_generator_forward.9} parent=27 // pred_region
        %v437 = vld [vmem:[#allocation2] sm:$0x3]
        %438 = vst.msk [vmem:[%s216] sm:$0x3] %vm432, %v437
      $region36: #{dc_generator_forward.9} parent=27 // pred_fallthru
        _
      %p439 = scmp.lt.s32.totalorder %s19, 15
      %s440 = scalar_select %p439, %s19, 15
      %p441 = scmp.lt.s32.totalorder %s20, 0
      %s442 = scalar_select %p441, %s20, 0
      %s443 = sadd.s32 %s442, %s440
      %s444 = smul.addr %s443, 4
      %s445 = scalar_lea.vmem %s2, %s444
      %p446 = scmp.lt.s32.totalorder %s19, 15
      %s447 = scalar_select %p446, %s19, 15
      %s448 = smul.addr %s447, 2
      %s449 = scalar_lea.vmem %s3, %s448
      // Predicated region
      $region37: #{dc_generator_forward.9} parent=27 // pred_check
        %p450 = pneg %p99
      $region38: #{dc_generator_forward.9} parent=27 // pred_check_branch
        %452 = sbr.rel (%p450) target = $region40
      $region39: #{dc_generator_forward.9} parent=27 // pred_region
        _
      $region40: #{dc_generator_forward.9} parent=27 // pred_fallthru
        _
      // Predicated region
      $region41: #{dc_generator_forward.9} parent=27 // pred_check
        %p453 = pneg %p125
      $region42: #{dc_generator_forward.9} parent=27 // pred_check_branch
        %455 = sbr.rel (%p453) target = $region44
      $region43: #{dc_generator_forward.9} parent=27 // pred_region
        _
      $region44: #{dc_generator_forward.9} parent=27 // pred_fallthru
        _
    $region28: #{dc_generator_forward.9} parent=5 // pred_fallthru
      _
    %p456 = scmp.le.s32.totalorder 2, %s10
    // Predicated region
    $region45: #{dc_generator_forward.9} parent=5 // pred_check
      %p457 = pneg %p456
    $region46: #{dc_generator_forward.9} parent=5 // pred_check_branch
      %459 = sbr.rel (%p457) target = $region48
    $region47: #{dc_generator_forward.9} parent=5 // pred_region
      %s460 = ssub.s32 %s10, 2
      // Predicated region
      $region49: #{dc_generator_forward.9} parent=47 // pred_check
        %p461 = pneg %p105
      $region50: #{dc_generator_forward.9} parent=47 // pred_check_branch
        %463 = sbr.rel (%p461) target = $region52
      $region51: #{dc_generator_forward.9} parent=47 // pred_region
        %p464 = scmp.lt.s32.totalorder %s21, 15
        %s465 = scalar_select %p464, %s21, 15
        %p466 = scmp.lt.s32.totalorder %s22, 0
        %s467 = scalar_select %p466, %s22, 0
        %s468 = sadd.s32 %s467, %s465
        %s469 = smul.addr %s468, 4
        %s470 = scalar_lea.vmem %s2, %s469
      $region52: #{dc_generator_forward.9} parent=47 // pred_fallthru
        _
      // Predicated region
      $region53: #{dc_generator_forward.9} parent=47 // pred_check
        %p471 = pneg %p131
      $region54: #{dc_generator_forward.9} parent=47 // pred_check_branch
        %473 = sbr.rel (%p471) target = $region56
      $region55: #{dc_generator_forward.9} parent=47 // pred_region
        %p474 = scmp.lt.s32.totalorder %s21, 15
        %s475 = scalar_select %p474, %s21, 15
        %s476 = smul.addr %s475, 2
        %s477 = scalar_lea.vmem %s3, %s476
      $region56: #{dc_generator_forward.9} parent=47 // pred_fallthru
        _
    $region48: #{dc_generator_forward.9} parent=5 // pred_fallthru
      _
  $region6: #{dc_generator_forward.9} parent=0 // loop_footer
    %s14 = sadd.s32 1, %s10
  $region7: #{dc_generator_forward.9} parent=0 // loop_footer_branch
    %9 = sbr.rel target = $region3
  $region8: #{dc_generator_forward.9} parent=0 // loop_exit
    _

// kernel: dc_generator_forward.10
$region0: #{dc_generator_forward.10}
  #allocation0 [shape = 'u32[]', space=smem, size = 0x4, offset = 0x4, fixed_abs, tag = 'smem constant byte address 0x4 - core index']
  #allocation1 [shape = 'u32[144,128]{1,0:T(1,128)}', space=vmem, size = 0x12000, scoped, tag = 'internal scratch']
  %s0 = inlined_call_operand.vmem [shape: bf16[32,128], index: 0, kind: input, shape index: {}, may-alias: {0,4}]
  %s1 = inlined_call_operand.vmem [shape: f32[2,128], index: 1, kind: input, shape index: {}]
  %s2 = inlined_call_operand.vmem [shape: f32[1,128], index: 2, kind: input, shape index: {}]
  %s3 = inlined_call_operand.vmem [shape: f32[1,128], index: 3, kind: input, shape index: {}]
  %s4 = inlined_call_operand.vmem [shape: bf16[32,128], index: 4, kind: output, shape index: {}, may-alias: {0,4}]
  %s5 = sld [smem:[#allocation0]]
  $region26: #{dc_generator_forward.10} parent=0
    _
  %s7 = ssub.s32 1, %s5
  %s8 = scalar_select 0, %s7, %s5
  // Predicated region
  $region2: #{dc_generator_forward.10} parent=0 // pred_check
    _
  $region3: #{dc_generator_forward.10} parent=0 // pred_check_branch
    %10 = sbr.rel (0) target = $region5
  $region4: #{dc_generator_forward.10} parent=0 // pred_region
    _
  $region5: #{dc_generator_forward.10} parent=0 // pred_fallthru
    _
  // Predicated region
  $region6: #{dc_generator_forward.10} parent=0 // pred_check
    _
  $region7: #{dc_generator_forward.10} parent=0 // pred_check_branch
    %12 = sbr.rel (0) target = $region9
  $region8: #{dc_generator_forward.10} parent=0 // pred_region
    _
  $region9: #{dc_generator_forward.10} parent=0 // pred_fallthru
    _
  // Predicated region
  $region10: #{dc_generator_forward.10} parent=0 // pred_check
    _
  $region11: #{dc_generator_forward.10} parent=0 // pred_check_branch
    %14 = sbr.rel (0) target = $region13
  $region12: #{dc_generator_forward.10} parent=0 // pred_region
    _
  $region13: #{dc_generator_forward.10} parent=0 // pred_fallthru
    _
  // Predicated region
  $region14: #{dc_generator_forward.10} parent=0 // pred_check
    _
  $region15: #{dc_generator_forward.10} parent=0 // pred_check_branch
    %16 = sbr.rel (0) target = $region17
  $region16: #{dc_generator_forward.10} parent=0 // pred_region
    _
  $region17: #{dc_generator_forward.10} parent=0 // pred_fallthru
    _
  %v17 = vld [vmem:[%s1] sm:$0x1]
  %v18 = vmul.f32 %v17, 0.03125
  %v19 = vld [vmem:[%s1 + $0x1] sm:$0x1]
  %v20 = vmul.f32 %v19, 0.03125
  %v21 = vmul.f32 %v18, %v18
  %v22 = vsub.f32 %v20, %v21
  %v23 = vadd.f32 %v22, 1e-05
  %v24 = vrsqrt.pop %v23
  %v25 = vld [vmem:[%s0] sm:$0xf]
  %v26 = vld [vmem:[%s0 + $0x4] sm:$0xf]
  %v27 = vld [vmem:[%s0 + $0x8] sm:$0xf]
  %v28 = vld [vmem:[%s0 + $0xc] sm:$0xf]
  %v29 = vunpack.c.l.bf16 %v25
  %v30 = vunpack.c.l.bf16 %v26
  %v31 = vunpack.c.l.bf16 %v27
  %v32 = vunpack.c.l.bf16 %v28
  %v33 = vlaneseq
  %v34 = vshrl.u32 %v33, 7
  %v35 = vsub.s32 0, %v34
  %v36 = vrot.slane %v18, %v35
  %v37 = vsub.f32 %v29, %v36
  %v38 = vsub.f32 %v30, %v36
  %v39 = vsub.f32 %v31, %v36
  %v40 = vsub.f32 %v32, %v36
  %v41 = vlaneseq
  %v42 = vshrl.u32 %v41, 7
  %v43 = vsub.s32 0, %v42
  %v44 = vrot.slane %v24, %v43
  %v45 = vmul.f32 %v37, %v44
  %v46 = vmul.f32 %v38, %v44
  %v47 = vmul.f32 %v39, %v44
  %v48 = vmul.f32 %v40, %v44
  %v49 = vld [vmem:[%s2] sm:$0x1]
  %v51 = vlaneseq
  %v52 = vshrl.u32 %v51, 7
  %v53 = vsub.s32 0, %v52
  %v54 = vrot.slane %v49, %v53
  %v56 = vmul.f32 %v45, %v54
  %v57 = vmul.f32 %v46, %v54
  %v58 = vmul.f32 %v47, %v54
  %v59 = vmul.f32 %v48, %v54
  %v60 = vld [vmem:[%s3] sm:$0x1]
  %v62 = vlaneseq
  %v63 = vshrl.u32 %v62, 7
  %v64 = vsub.s32 0, %v63
  %v65 = vrot.slane %v60, %v64
  %v67 = vadd.f32 %v56, %v65
  %v68 = vadd.f32 %v57, %v65
  %v69 = vadd.f32 %v58, %v65
  %v70 = vadd.f32 %v59, %v65
  %v71 = vmax.f32 %v67, 0.0
  %v72 = vmax.f32 %v68, 0.0
  %v73 = vmax.f32 %v69, 0.0
  %v74 = vmax.f32 %v70, 0.0
  %v75 = vpack.c.bf16 %v72, %v71
  %v76 = vpack.c.bf16 %v74, %v73
  %v79 = vunpack.c.l.b16 %v75
  %v80 = vunpack.c.h.b16 %v75
  %v81 = vunpack.c.l.b16 %v76
  %v82 = vunpack.c.h.b16 %v76
  %v83 = vpack.c.b16 %v79, %v79
  %v84 = vpack.c.b16 %v80, %v80
  %v85 = vpack.c.b16 %v81, %v81
  %v86 = vpack.c.b16 %v82, %v82
  %91 = vst [vmem:[%s4] sm:$0xf] %v83
  %92 = vst [vmem:[%s4 + $0x4] sm:$0xf] %v84
  %93 = vst [vmem:[%s4 + $0x8] sm:$0xf] %v85
  %94 = vst [vmem:[%s4 + $0xc] sm:$0xf] %v86
  // Predicated region
  $region18: #{dc_generator_forward.10} parent=0 // pred_check
    _
  $region19: #{dc_generator_forward.10} parent=0 // pred_check_branch
    %96 = sbr.rel (0) target = $region21
  $region20: #{dc_generator_forward.10} parent=0 // pred_region
    _
  $region21: #{dc_generator_forward.10} parent=0 // pred_fallthru
    _
  // Predicated region
  $region22: #{dc_generator_forward.10} parent=0 // pred_check
    _
  $region23: #{dc_generator_forward.10} parent=0 // pred_check_branch
    %98 = sbr.rel (0) target = $region25
  $region24: #{dc_generator_forward.10} parent=0 // pred_region
    _
  $region25: #{dc_generator_forward.10} parent=0 // pred_fallthru
    _

// kernel: dc_generator_forward.11
$region0: #{dc_generator_forward.11}
  #allocation0 [shape = 'u32[]', space=smem, size = 0x4, offset = 0x4, fixed_abs, tag = 'smem constant byte address 0x4 - core index']
  #allocation1 [shape = 'u32[144,128]{1,0:T(1,128)}', space=vmem, size = 0x12000, scoped, tag = 'internal scratch']
  #allocation2 [shape = 'f32[2,16]{1,0:T(2,128)}', space=vmem, size = 0x400, scoped, tag = 'scratch operand']
  %s0 = inlined_call_operand.vmem [shape: bf16[4,32,128], index: 0, kind: input, shape index: {}]
  %s1 = inlined_call_operand.vmem [shape: bf16[4,128,16], index: 1, kind: input, shape index: {}]
  %s2 = inlined_call_operand.vmem [shape: bf16[4,32,16], index: 2, kind: output, shape index: {0}]
  %s3 = inlined_call_operand.vmem [shape: f32[4,2,16], index: 3, kind: output, shape index: {1}]
  %4 = xla_tuple %s2, %s3
  %s5 = sld [smem:[#allocation0]]
  $region57: #{dc_generator_forward.11} parent=0
    _
  %s7 = ssub.s32 1, %s5
  %s8 = scalar_select 0, %s7, %s5
  loop: start=0, step=1, limit=6
  $region2: #{dc_generator_forward.11} parent=0 // loop_pre_header
    _
  $region3: #{dc_generator_forward.11} parent=0 // loop_header
    %s10 = sphi 0, %s14
    %p11 = scmp.ge.s32.totalorder %s10, 6
    %s17 = sphi 0, %s29
    %s18 = sphi 0, %s25
    %s19 = sphi 0, %s17
    %s20 = sphi 0, %s18
    %s21 = sphi 0, %s19
    %s22 = sphi 0, %s20
    %s34 = sphi 0, %s36
    %s37 = sphi 0, %s34
    %s38 = sphi 0, %s37
    %s54 = sphi 0, %s38
    %s60 = sphi 0, %s62
    %s63 = sphi 0, %s60
    %s64 = sphi 0, %s63
    %s80 = sphi 0, %s64
    %s88 = sphi 0, %s90
    %s91 = sphi 0, %s88
    %s92 = sphi 0, %s91
    %s108 = sphi 0, %s92
    %s114 = sphi 0, %s116
    %s117 = sphi 0, %s114
    %s118 = sphi 0, %s117
    %s134 = sphi 0, %s118
  $region4: #{dc_generator_forward.11} parent=0 // loop_header_branch
    %13 = sbr.rel (%p11) target = $region8
  $region5: #{dc_generator_forward.11} parent=0 // loop_body
    %s15 = ssub.s32 %s10, 1
    %s16 = ssub.s32 %s10, 2
    %s23 = sadd.s32 1, %s18
    %p24 = scmp.ge.s32.totalorder %s23, 1
    %s25 = scalar_select %p24, 0, %s23
    %s26 = sadd.s32 1, %s17
    %s27 = scalar_select %p24, %s26, %s17
    %p28 = scmp.ge.s32.totalorder %s27, 4
    %s29 = scalar_select %p28, 0, %s27
    %s30 = ssub.s32 %s17, %s29
    %s31 = ssub.s32 %s18, %s25
    %s32 = sor.u32 %s30, %s31
    %p33 = scmp.eq.s32.totalorder %s32, 0
    %s35 = sadd.s32 %s34, 1
    %s36 = scalar_select %p33, %s34, %s35
    %p39 = pneg %p33
    %p40 = scmp.eq.s32.totalorder %s10, 3
    %p41 = por %p39, %p40
    %p42 = scmp.ne.s32.totalorder %s34, %s37
    %p43 = scmp.eq.s32.totalorder %s10, 0
    %p44 = por %p42, %p43
    %p45 = scmp.ne.s32.totalorder %s34, %s37
    %p46 = scmp.eq.s32.totalorder %s15, 3
    %p47 = por %p45, %p46
    %p48 = scmp.ne.s32.totalorder %s37, %s38
    %p49 = scmp.eq.s32.totalorder %s15, 0
    %p50 = por %p48, %p49
    %p51 = scmp.ne.s32.totalorder %s37, %s38
    %p52 = scmp.eq.s32.totalorder %s16, 3
    %p53 = por %p51, %p52
    %p55 = scmp.ne.s32.totalorder %s38, %s54
    %p56 = scmp.eq.s32.totalorder %s16, 0
    %p57 = por %p55, %p56
    %s58 = ssub.s32 %s17, %s29
    %p59 = scmp.eq.s32.totalorder %s58, 0
    %s61 = sadd.s32 %s60, 1
    %s62 = scalar_select %p59, %s60, %s61
    %p65 = pneg %p59
    %p66 = scmp.eq.s32.totalorder %s10, 3
    %p67 = por %p65, %p66
    %p68 = scmp.ne.s32.totalorder %s60, %s63
    %p69 = scmp.eq.s32.totalorder %s10, 0
    %p70 = por %p68, %p69
    %p71 = scmp.ne.s32.totalorder %s60, %s63
    %p72 = scmp.eq.s32.totalorder %s15, 3
    %p73 = por %p71, %p72
    %p74 = scmp.ne.s32.totalorder %s63, %s64
    %p75 = scmp.eq.s32.totalorder %s15, 0
    %p76 = por %p74, %p75
    %p77 = scmp.ne.s32.totalorder %s63, %s64
    %p78 = scmp.eq.s32.totalorder %s16, 3
    %p79 = por %p77, %p78
    %p81 = scmp.ne.s32.totalorder %s64, %s80
    %p82 = scmp.eq.s32.totalorder %s16, 0
    %p83 = por %p81, %p82
    %s84 = ssub.s32 %s17, %s29
    %s85 = ssub.s32 %s18, %s25
    %s86 = sor.u32 %s84, %s85
    %p87 = scmp.eq.s32.totalorder %s86, 0
    %s89 = sadd.s32 %s88, 1
    %s90 = scalar_select %p87, %s88, %s89
    %p93 = pneg %p87
    %p94 = scmp.eq.s32.totalorder %s10, 3
    %p95 = por %p93, %p94
    %p96 = scmp.ne.s32.totalorder %s88, %s91
    %p97 = scmp.eq.s32.totalorder %s10, 0
    %p98 = por %p96, %p97
    %p99 = scmp.ne.s32.totalorder %s88, %s91
    %p100 = scmp.eq.s32.totalorder %s15, 3
    %p101 = por %p99, %p100
    %p102 = scmp.ne.s32.totalorder %s91, %s92
    %p103 = scmp.eq.s32.totalorder %s15, 0
    %p104 = por %p102, %p103
    %p105 = scmp.ne.s32.totalorder %s91, %s92
    %p106 = scmp.eq.s32.totalorder %s16, 3
    %p107 = por %p105, %p106
    %p109 = scmp.ne.s32.totalorder %s92, %s108
    %p110 = scmp.eq.s32.totalorder %s16, 0
    %p111 = por %p109, %p110
    %s112 = ssub.s32 %s17, %s29
    %p113 = scmp.eq.s32.totalorder %s112, 0
    %s115 = sadd.s32 %s114, 1
    %s116 = scalar_select %p113, %s114, %s115
    %p119 = pneg %p113
    %p120 = scmp.eq.s32.totalorder %s10, 3
    %p121 = por %p119, %p120
    %p122 = scmp.ne.s32.totalorder %s114, %s117
    %p123 = scmp.eq.s32.totalorder %s10, 0
    %p124 = por %p122, %p123
    %p125 = scmp.ne.s32.totalorder %s114, %s117
    %p126 = scmp.eq.s32.totalorder %s15, 3
    %p127 = por %p125, %p126
    %p128 = scmp.ne.s32.totalorder %s117, %s118
    %p129 = scmp.eq.s32.totalorder %s15, 0
    %p130 = por %p128, %p129
    %p131 = scmp.ne.s32.totalorder %s117, %s118
    %p132 = scmp.eq.s32.totalorder %s16, 3
    %p133 = por %p131, %p132
    %p135 = scmp.ne.s32.totalorder %s118, %s134
    %p136 = scmp.eq.s32.totalorder %s16, 0
    %p137 = por %p135, %p136
    %p138 = scmp.le.s32.totalorder 1, %s10
    %p139 = scmp.lt.s32.totalorder %s10, 5
    %p140 = pnand %p138, %p139
    %p141 = pneg %p140
    // Predicated region
    $region9: #{dc_generator_forward.11} parent=5 // pred_check
      _
    $region10: #{dc_generator_forward.11} parent=5 // pred_check_branch
      %143 = sbr.rel (%p140) target = $region12
    $region11: #{dc_generator_forward.11} parent=5 // pred_region
      %s144 = ssub.s32 %s10, 1
    $region12: #{dc_generator_forward.11} parent=5 // pred_fallthru
      _
    %p145 = scmp.lt.s32.totalorder %s10, 4
    // Predicated region
    $region13: #{dc_generator_forward.11} parent=5 // pred_check
      %p146 = pneg %p145
    $region14: #{dc_generator_forward.11} parent=5 // pred_check_branch
      %148 = sbr.rel (%p146) target = $region16
    $region15: #{dc_generator_forward.11} parent=5 // pred_region
      // Predicated region
      $region17: #{dc_generator_forward.11} parent=15 // pred_check
        %p149 = pneg %p44
      $region18: #{dc_generator_forward.11} parent=15 // pred_check_branch
        %151 = sbr.rel (%p149) target = $region20
      $region19: #{dc_generator_forward.11} parent=15 // pred_region
        %s152 = smul.u32 4, %s18
        %p153 = scmp.lt.s32.totalorder %s17, 3
        %s154 = scalar_select %p153, %s17, 3
        %p155 = scmp.lt.s32.totalorder %s152, 3
        %s156 = scalar_select %p155, %s152, 3
        %s157 = smul.addr %s154, 4
        %s158 = sadd.s32 %s156, %s157
        %s159 = smul.addr %s158, 4
        %s160 = scalar_lea.vmem %s0, %s159
        %s161 = smul.u32 4, %s18
      $region20: #{dc_generator_forward.11} parent=15 // pred_fallthru
        _
      // Predicated region
      $region21: #{dc_generator_forward.11} parent=15 // pred_check
        %p162 = pneg %p70
      $region22: #{dc_generator_forward.11} parent=15 // pred_check_branch
        %164 = sbr.rel (%p162) target = $region24
      $region23: #{dc_generator_forward.11} parent=15 // pred_region
        %p165 = scmp.lt.s32.totalorder %s17, 3
        %s166 = scalar_select %p165, %s17, 3
        %s167 = smul.addr %s166, 16
        %s168 = smul.addr %s167, 4
        %s169 = scalar_lea.vmem %s1, %s168
      $region24: #{dc_generator_forward.11} parent=15 // pred_fallthru
        _
    $region16: #{dc_generator_forward.11} parent=5 // pred_fallthru
      _
    %p170 = scmp.le.s32.totalorder 1, %s10
    %p171 = scmp.lt.s32.totalorder %s10, 5
    %p172 = pnand %p170, %p171
    %p173 = pneg %p172
    // Predicated region
    $region25: #{dc_generator_forward.11} parent=5 // pred_check
      _
    $region26: #{dc_generator_forward.11} parent=5 // pred_check_branch
      %175 = sbr.rel (%p172) target = $region28
    $region27: #{dc_generator_forward.11} parent=5 // pred_region
      %s176 = ssub.s32 %s10, 1
      %s177 = smul.u32 4, %s20
      %p178 = scmp.lt.s32.totalorder %s19, 3
      %s179 = scalar_select %p178, %s19, 3
      %p180 = scmp.lt.s32.totalorder %s177, 3
      %s181 = scalar_select %p180, %s177, 3
      %s182 = smul.addr %s179, 4
      %s183 = sadd.s32 %s181, %s182
      %s184 = smul.addr %s183, 4
      %s185 = scalar_lea.vmem %s0, %s184
      %p186 = pneg %p50
      %p187 = pneg %p47
      %p188 = scmp.lt.s32.totalorder %s19, 3
      %s189 = scalar_select %p188, %s19, 3
      %s190 = smul.addr %s189, 16
      %s191 = smul.addr %s190, 4
      %s192 = scalar_lea.vmem %s1, %s191
      %p193 = pneg %p76
      %p194 = pneg %p73
      %p195 = pneg %p104
      %p196 = pneg %p101
      %s197 = smul.u32 4, %s20
      %p198 = scmp.lt.s32.totalorder %s19, 3
      %s199 = scalar_select %p198, %s19, 3
      %p200 = scmp.lt.s32.totalorder %s197, 3
      %s201 = scalar_select %p200, %s197, 3
      %s202 = smul.addr %s199, 4
      %s203 = sadd.s32 %s201, %s202
      %s204 = smul.addr %s203, 4
      %s205 = scalar_lea.vmem %s2, %s204
      %p206 = pneg %p130
      %p207 = pneg %p127
      %p208 = scmp.lt.s32.totalorder %s19, 3
      %s209 = scalar_select %p208, %s19, 3
      %s210 = smul.addr %s209, 2
      %s211 = scalar_lea.vmem %s3, %s210
      %s212 = smul.u32 4, %s20
      %p213 = scmp.lt.s32.totalorder %s19, 3
      %s214 = scalar_select %p213, %s19, 3
      %p215 = scmp.lt.s32.totalorder %s212, 3
      %s216 = scalar_select %p215, %s212, 3
      %s217 = smul.addr %s214, 4
      %s218 = sadd.s32 %s216, %s217
      %s219 = smul.addr %s218, 4
      %s220 = scalar_lea.vmem %s0, %s219
      %s221 = smul.u32 4, %s20
      %p222 = scmp.lt.s32.totalorder %s19, 3
      %s223 = scalar_select %p222, %s19, 3
      %s224 = smul.addr %s223, 16
      %s225 = smul.addr %s224, 4
      %s226 = scalar_lea.vmem %s1, %s225
      %s227 = smul.u32 4, %s20
      %p228 = scmp.lt.s32.totalorder %s19, 3
      %s229 = scalar_select %p228, %s19, 3
      %p230 = scmp.lt.s32.totalorder %s227, 3
      %s231 = scalar_select %p230, %s227, 3
      %s232 = smul.addr %s229, 4
      %s233 = sadd.s32 %s231, %s232
      %s234 = smul.addr %s233, 4
      %s235 = scalar_lea.vmem %s2, %s234
      %s236 = smul.u32 4, %s20
      %p237 = scmp.lt.s32.totalorder %s19, 3
      %s238 = scalar_select %p237, %s19, 3
      %s239 = smul.addr %s238, 2
      %s240 = scalar_lea.vmem %s3, %s239
      %p242 = scmp.eq.s32.totalorder %s20, 0
      // Predicated region
      $region29: #{dc_generator_forward.11} parent=27 // pred_check
        %p243 = pneg %p242
      $region30: #{dc_generator_forward.11} parent=27 // pred_check_branch
        %245 = sbr.rel (%p243) target = $region32
      $region31: #{dc_generator_forward.11} parent=27 // pred_region
        %vm246 = vcmask 123904
        %247 = vst.msk [vmem:[#allocation2] sm:$0x3] %vm246, 0.0
      $region32: #{dc_generator_forward.11} parent=27 // pred_fallthru
        _
      %v248 = vld [vmem:[%s220] sm:$0xf]
      %v249 = vld [vmem:[%s220 + $0x4] sm:$0xf]
      %v250 = vld [vmem:[%s220 + $0x8] sm:$0xf]
      %v251 = vld [vmem:[%s220 + $0xc] sm:$0xf]
      %v252 = vld [vmem:[%s226] sm:$0xf]
      %v253 = vld [vmem:[%s226 + $0x4] sm:$0xf]
      %v254 = vld [vmem:[%s226 + $0x8] sm:$0xf]
      %v255 = vld [vmem:[%s226 + $0xc] sm:$0xf]
      %v256 = vld [vmem:[%s226 + $0x10] sm:$0xf]
      %v257 = vld [vmem:[%s226 + $0x14] sm:$0xf]
      %v258 = vld [vmem:[%s226 + $0x18] sm:$0xf]
      %v259 = vld [vmem:[%s226 + $0x1c] sm:$0xf]
      %v260 = vld [vmem:[%s226 + $0x20] sm:$0xf]
      %v261 = vld [vmem:[%s226 + $0x24] sm:$0xf]
      %v262 = vld [vmem:[%s226 + $0x28] sm:$0xf]
      %v263 = vld [vmem:[%s226 + $0x2c] sm:$0xf]
      %v264 = vld [vmem:[%s226 + $0x30] sm:$0xf]
      %v265 = vld [vmem:[%s226 + $0x34] sm:$0xf]
      %v266 = vld [vmem:[%s226 + $0x38] sm:$0xf]
      %v267 = vld [vmem:[%s226 + $0x3c] sm:$0xf]
      %v272 = vunpack.c.l.b16 %v248
      %v273 = vunpack.c.l.b16 %v249
      %v274 = vunpack.c.l.b16 %v250
      %v275 = vunpack.c.l.b16 %v251
      %v276 = vpack.c.b16 %v273, %v272
      %v277 = vpack.c.b16 %v275, %v274
      %v296 = vunpack.c.l.b16 %v252
      %v297 = vunpack.c.l.b16 %v253
      %v298 = vunpack.c.l.b16 %v254
      %v299 = vunpack.c.l.b16 %v255
      %v300 = vunpack.c.l.b16 %v256
      %v301 = vunpack.c.l.b16 %v257
      %v302 = vunpack.c.l.b16 %v258
      %v303 = vunpack.c.l.b16 %v259
      %v304 = vunpack.c.l.b16 %v260
      %v305 = vunpack.c.l.b16 %v261
      %v306 = vunpack.c.l.b16 %v262
      %v307 = vunpack.c.l.b16 %v263
      %v308 = vunpack.c.l.b16 %v264
      %v309 = vunpack.c.l.b16 %v265
      %v310 = vunpack.c.l.b16 %v266
      %v311 = vunpack.c.l.b16 %v267
      %v312 = vpack.c.b16 %v297, %v296
      %v313 = vpack.c.b16 %v299, %v298
      %v314 = vpack.c.b16 %v301, %v300
      %v315 = vpack.c.b16 %v303, %v302
      %v316 = vpack.c.b16 %v305, %v304
      %v317 = vpack.c.b16 %v307, %v306
      %v318 = vpack.c.b16 %v309, %v308
      %v319 = vpack.c.b16 %v311, %v310
      %328 = vmatprep.subr.bf16.mxu0 0
      %329 = vmatpush1.bf16.msra.mxu0 %v312
      %330 = vmatprep.subr.bf16.mxu0 0
      %331 = vmatpush1.bf16.msra.mxu0 %v313
      %332 = vmatprep.subr.bf16.mxu0 0
      %333 = vmatpush1.bf16.msra.mxu0 %v314
      %334 = vmatprep.subr.bf16.mxu0 0
      %335 = vmatpush1.bf16.msra.mxu0 %v315
      %336 = vmatprep.subr.bf16.mxu0 0
      %337 = vmatpush1.bf16.msra.mxu0 %v316
      %338 = vmatprep.subr.bf16.mxu0 0
      %339 = vmatpush1.bf16.msra.mxu0 %v317
      %340 = vmatprep.subr.bf16.mxu0 0
      %341 = vmatpush1.bf16.msra.mxu0 %v318
      %342 = vmatprep.subr.bf16.mxu0 0
      %343 = vmatpush1.bf16.msra.mxu0 %v319
      %344 = vmatprep.subr.bf16.mxu0 0
      %345 = vmatpush1.bf16.msra.mxu0 0
      %346 = vmatprep.subr.bf16.mxu0 0
      %347 = vmatpush1.bf16.msra.mxu0 0
      %348 = vmatprep.subr.bf16.mxu0 0
      %349 = vmatpush1.bf16.msra.mxu0 0
      %350 = vmatprep.subr.bf16.mxu0 0
      %351 = vmatpush1.bf16.msra.mxu0 0
      %352 = vmatprep.subr.bf16.mxu0 0
      %353 = vmatpush1.bf16.msra.mxu0 0
      %354 = vmatprep.subr.bf16.mxu0 0
      %355 = vmatpush1.bf16.msra.mxu0 0
      %356 = vmatprep.subr.bf16.mxu0 0
      %357 = vmatpush1.bf16.msra.mxu0 0
      %358 = vmatprep.subr.bf16.mxu0 0
      %359 = vmatpush1.bf16.msra.mxu0 0
      %360 = vmatprep.mubr.bf16.mxu0 0
      %361 = vmatmul.mubr.bf16.gmra.mrb[0].mxu0 %v276
      %v362 = vpop.f32.mrb[0].mxu0
      %v363 = vadd.f32 0.0, %v362
      %v364 = vpop.f32.mrb[0].mxu0
      %v365 = vpop.f32.mrb[0].mxu0
      %v366 = vadd.f32 0.0, %v365
      %v367 = vpop.f32.mrb[0].mxu0
      %368 = vmatprep.mubr.bf16.mxu0 0
      %369 = vmatmul.mubr.bf16.gmra.mrb[0].mxu0 %v277
      %v370 = vpop.f32.mrb[0].mxu0
      %v371 = vadd.f32 0.0, %v370
      %v372 = vpop.f32.mrb[0].mxu0
      %v373 = vpop.f32.mrb[0].mxu0
      %v374 = vadd.f32 0.0, %v373
      %v375 = vpop.f32.mrb[0].mxu0
      %376 = vdwg.mxu0
      %v377 = vpack.c.bf16 %v366, %v363
      %v378 = vpack.c.bf16 %v374, %v371
      %v381 = vunpack.c.l.b16 %v377
      %v382 = vunpack.c.h.b16 %v377
      %v383 = vunpack.c.l.b16 %v378
      %v384 = vunpack.c.h.b16 %v378
      %v385 = vpack.c.b16 %v381, %v381
      %v386 = vpack.c.b16 %v382, %v382
      %v387 = vpack.c.b16 %v383, %v383
      %v388 = vpack.c.b16 %v384, %v384
      %vm393 = vcmask 125952
      %394 = vst.msk [vmem:[%s235] sm:$0xf] %vm393, %v385
      %395 = vst.msk [vmem:[%s235 + $0x4] sm:$0xf] %vm393, %v386
      %396 = vst.msk [vmem:[%s235 + $0x8] sm:$0xf] %vm393, %v387
      %397 = vst.msk [vmem:[%s235 + $0xc] sm:$0xf] %vm393, %v388
      %vm398 = vcmask 261120
      %v400 = vsel %vm398, 1.0, 0
      %402 = vmatprep.subr.mxu0 0.0
      %403 = vmatpush1.msra.mxu0 %v363
      %404 = vmatprep.subr.mxu0 0.0
      %405 = vmatpush1.msra.mxu0 %v366
      %406 = vmatprep.subr.mxu0 0.0
      %407 = vmatpush1.msra.mxu0 %v371
      %408 = vmatprep.subr.mxu0 0.0
      %409 = vmatpush1.msra.mxu0 %v374
      %410 = vmatprep.subr.mxu0 0.0
      %411 = vmatpush1.msra.mxu0 0.0
      %412 = vmatprep.subr.mxu0 0.0
      %413 = vmatpush1.msra.mxu0 0.0
      %414 = vmatprep.subr.mxu0 0.0
      %415 = vmatpush1.msra.mxu0 0.0
      %416 = vmatprep.subr.mxu0 0.0
      %417 = vmatpush1.msra.mxu0 0.0
      %418 = vmatprep.subr.mxu0 0.0
      %419 = vmatpush1.msra.mxu0 0.0
      %420 = vmatprep.subr.mxu0 0.0
      %421 = vmatpush1.msra.mxu0 0.0
      %422 = vmatprep.subr.mxu0 0.0
      %423 = vmatpush1.msra.mxu0 0.0
      %424 = vmatprep.subr.mxu0 0.0
      %425 = vmatpush1.msra.mxu0 0.0
      %426 = vmatprep.subr.mxu0 0.0
      %427 = vmatpush1.msra.mxu0 0.0
      %428 = vmatprep.subr.mxu0 0.0
      %429 = vmatpush1.msra.mxu0 0.0
      %430 = vmatprep.subr.mxu0 0.0
      %431 = vmatpush1.msra.mxu0 0.0
      %432 = vmatprep.subr.mxu0 0.0
      %433 = vmatpush1.msra.mxu0 0.0
      %434 = vmatprep.subr.mxu0 0.0
      %435 = vmatpush1.msra.mxu0 0.0
      %436 = vmatprep.subr.mxu0 0.0
      %437 = vmatpush1.msra.mxu0 0.0
      %438 = vmatprep.subr.mxu0 0.0
      %439 = vmatpush1.msra.mxu0 0.0
      %440 = vmatprep.subr.mxu0 0.0
      %441 = vmatpush1.msra.mxu0 0.0
      %442 = vmatprep.subr.mxu0 0.0
      %443 = vmatpush1.msra.mxu0 0.0
      %444 = vmatprep.subr.mxu0 0.0
      %445 = vmatpush1.msra.mxu0 0.0
      %446 = vmatprep.subr.mxu0 0.0
      %447 = vmatpush1.msra.mxu0 0.0
      %448 = vmatprep.subr.mxu0 0.0
      %449 = vmatpush1.msra.mxu0 0.0
      %450 = vmatprep.subr.mxu0 0.0
      %451 = vmatpush1.msra.mxu0 0.0
      %452 = vmatprep.subr.mxu0 0.0
      %453 = vmatpush1.msra.mxu0 0.0
      %454 = vmatprep.subr.mxu0 0.0
      %455 = vmatpush1.msra.mxu0 0.0
      %456 = vmatprep.subr.mxu0 0.0
      %457 = vmatpush1.msra.mxu0 0.0
      %458 = vmatprep.subr.mxu0 0.0
      %459 = vmatpush1.msra.mxu0 0.0
      %460 = vmatprep.subr.mxu0 0.0
      %461 = vmatpush1.msra.mxu0 0.0
      %462 = vmatprep.subr.mxu0 0.0
      %463 = vmatpush1.msra.mxu0 0.0
      %464 = vmatprep.subr.mxu0 0.0
      %465 = vmatpush1.msra.mxu0 0.0
      %466 = vmatprep.mubr.f32.mxu0 0.0
      %467 = vmatmul.mubr.f32.gmra.mrb[0].mxu0 %v400
      %v468 = vpop.f32.mrb[0].mxu0
      %v469 = vadd.f32 0.0, %v468
      %v470 = vpop.f32.mrb[0].mxu0
      %471 = vdwg.mxu0
      %v472 = vmul.f32 %v363, %v363
      %v473 = vmul.f32 %v366, %v366
      %v474 = vmul.f32 %v371, %v371
      %v475 = vmul.f32 %v374, %v374
      %476 = vmatprep.subr.mxu0 0.0
      %477 = vmatpush1.msra.mxu0 %v472
      %478 = vmatprep.subr.mxu0 0.0
      %479 = vmatpush1.msra.mxu0 %v473
      %480 = vmatprep.subr.mxu0 0.0
      %481 = vmatpush1.msra.mxu0 %v474
      %482 = vmatprep.subr.mxu0 0.0
      %483 = vmatpush1.msra.mxu0 %v475
      %484 = vmatprep.subr.mxu0 0.0
      %485 = vmatpush1.msra.mxu0 0.0
      %486 = vmatprep.subr.mxu0 0.0
      %487 = vmatpush1.msra.mxu0 0.0
      %488 = vmatprep.subr.mxu0 0.0
      %489 = vmatpush1.msra.mxu0 0.0
      %490 = vmatprep.subr.mxu0 0.0
      %491 = vmatpush1.msra.mxu0 0.0
      %492 = vmatprep.subr.mxu0 0.0
      %493 = vmatpush1.msra.mxu0 0.0
      %494 = vmatprep.subr.mxu0 0.0
      %495 = vmatpush1.msra.mxu0 0.0
      %496 = vmatprep.subr.mxu0 0.0
      %497 = vmatpush1.msra.mxu0 0.0
      %498 = vmatprep.subr.mxu0 0.0
      %499 = vmatpush1.msra.mxu0 0.0
      %500 = vmatprep.subr.mxu0 0.0
      %501 = vmatpush1.msra.mxu0 0.0
      %502 = vmatprep.subr.mxu0 0.0
      %503 = vmatpush1.msra.mxu0 0.0
      %504 = vmatprep.subr.mxu0 0.0
      %505 = vmatpush1.msra.mxu0 0.0
      %506 = vmatprep.subr.mxu0 0.0
      %507 = vmatpush1.msra.mxu0 0.0
      %508 = vmatprep.subr.mxu0 0.0
      %509 = vmatpush1.msra.mxu0 0.0
      %510 = vmatprep.subr.mxu0 0.0
      %511 = vmatpush1.msra.mxu0 0.0
      %512 = vmatprep.subr.mxu0 0.0
      %513 = vmatpush1.msra.mxu0 0.0
      %514 = vmatprep.subr.mxu0 0.0
      %515 = vmatpush1.msra.mxu0 0.0
      %516 = vmatprep.subr.mxu0 0.0
      %517 = vmatpush1.msra.mxu0 0.0
      %518 = vmatprep.subr.mxu0 0.0
      %519 = vmatpush1.msra.mxu0 0.0
      %520 = vmatprep.subr.mxu0 0.0
      %521 = vmatpush1.msra.mxu0 0.0
      %522 = vmatprep.subr.mxu0 0.0
      %523 = vmatpush1.msra.mxu0 0.0
      %524 = vmatprep.subr.mxu0 0.0
      %525 = vmatpush1.msra.mxu0 0.0
      %526 = vmatprep.subr.mxu0 0.0
      %527 = vmatpush1.msra.mxu0 0.0
      %528 = vmatprep.subr.mxu0 0.0
      %529 = vmatpush1.msra.mxu0 0.0
      %530 = vmatprep.subr.mxu0 0.0
      %531 = vmatpush1.msra.mxu0 0.0
      %532 = vmatprep.subr.mxu0 0.0
      %533 = vmatpush1.msra.mxu0 0.0
      %534 = vmatprep.subr.mxu0 0.0
      %535 = vmatpush1.msra.mxu0 0.0
      %536 = vmatprep.subr.mxu0 0.0
      %537 = vmatpush1.msra.mxu0 0.0
      %538 = vmatprep.subr.mxu0 0.0
      %539 = vmatpush1.msra.mxu0 0.0
      %540 = vmatprep.mubr.f32.mxu0 0.0
      %541 = vmatmul.mubr.f32.gmra.mrb[0].mxu0 %v400
      %v542 = vpop.f32.mrb[0].mxu0
      %v543 = vadd.f32 0.0, %v542
      %v544 = vpop.f32.mrb[0].mxu0
      %545 = vdwg.mxu0
      %v546 = vld [vmem:[#allocation2] sm:$0x3]
      %v548 = vrot.slane %v543, 7
      %vm550 = vcmask 1040384
      %v551 = vsel %vm550, %v469, %v548
      %v552 = vadd.f32 %v546, %v551
      %vm553 = vcmask 123904
      %554 = vst.msk [vmem:[#allocation2] sm:$0x3] %vm553, %v552
      // Predicated region
      $region33: #{dc_generator_forward.11} parent=27 // pred_check
        %p555 = pneg %p242
      $region34: #{dc_generator_forward.11} parent=27 // pred_check_branch
        %557 = sbr.rel (%p555) target = $region36
      $region35: #{dc_generator_forward.11} parent=27 // pred_region
        %v558 = vld [vmem:[#allocation2] sm:$0x3]
        %559 = vst.msk [vmem:[%s240] sm:$0x3] %vm553, %v558
      $region36: #{dc_generator_forward.11} parent=27 // pred_fallthru
        _
      %s560 = smul.u32 4, %s20
      %p561 = scmp.lt.s32.totalorder %s19, 3
      %s562 = scalar_select %p561, %s19, 3
      %p563 = scmp.lt.s32.totalorder %s560, 3
      %s564 = scalar_select %p563, %s560, 3
      %s565 = smul.addr %s562, 4
      %s566 = sadd.s32 %s564, %s565
      %s567 = smul.addr %s566, 4
      %s568 = scalar_lea.vmem %s2, %s567
      %p569 = scmp.lt.s32.totalorder %s19, 3
      %s570 = scalar_select %p569, %s19, 3
      %s571 = smul.addr %s570, 2
      %s572 = scalar_lea.vmem %s3, %s571
      // Predicated region
      $region37: #{dc_generator_forward.11} parent=27 // pred_check
        %p573 = pneg %p101
      $region38: #{dc_generator_forward.11} parent=27 // pred_check_branch
        %575 = sbr.rel (%p573) target = $region40
      $region39: #{dc_generator_forward.11} parent=27 // pred_region
        %s576 = smul.u32 4, %s20
      $region40: #{dc_generator_forward.11} parent=27 // pred_fallthru
        _
      // Predicated region
      $region41: #{dc_generator_forward.11} parent=27 // pred_check
        %p577 = pneg %p127
      $region42: #{dc_generator_forward.11} parent=27 // pred_check_branch
        %579 = sbr.rel (%p577) target = $region44
      $region43: #{dc_generator_forward.11} parent=27 // pred_region
        _
      $region44: #{dc_generator_forward.11} parent=27 // pred_fallthru
        _
    $region28: #{dc_generator_forward.11} parent=5 // pred_fallthru
      _
    %p580 = scmp.le.s32.totalorder 2, %s10
    // Predicated region
    $region45: #{dc_generator_forward.11} parent=5 // pred_check
      %p581 = pneg %p580
    $region46: #{dc_generator_forward.11} parent=5 // pred_check_branch
      %583 = sbr.rel (%p581) target = $region48
    $region47: #{dc_generator_forward.11} parent=5 // pred_region
      %s584 = ssub.s32 %s10, 2
      // Predicated region
      $region49: #{dc_generator_forward.11} parent=47 // pred_check
        %p585 = pneg %p107
      $region50: #{dc_generator_forward.11} parent=47 // pred_check_branch
        %587 = sbr.rel (%p585) target = $region52
      $region51: #{dc_generator_forward.11} parent=47 // pred_region
        %s588 = smul.u32 4, %s22
        %p589 = scmp.lt.s32.totalorder %s21, 3
        %s590 = scalar_select %p589, %s21, 3
        %p591 = scmp.lt.s32.totalorder %s588, 3
        %s592 = scalar_select %p591, %s588, 3
        %s593 = smul.addr %s590, 4
        %s594 = sadd.s32 %s592, %s593
        %s595 = smul.addr %s594, 4
        %s596 = scalar_lea.vmem %s2, %s595
      $region52: #{dc_generator_forward.11} parent=47 // pred_fallthru
        _
      // Predicated region
      $region53: #{dc_generator_forward.11} parent=47 // pred_check
        %p597 = pneg %p133
      $region54: #{dc_generator_forward.11} parent=47 // pred_check_branch
        %599 = sbr.rel (%p597) target = $region56
      $region55: #{dc_generator_forward.11} parent=47 // pred_region
        %p600 = scmp.lt.s32.totalorder %s21, 3
        %s601 = scalar_select %p600, %s21, 3
        %s602 = smul.addr %s601, 2
        %s603 = scalar_lea.vmem %s3, %s602
      $region56: #{dc_generator_forward.11} parent=47 // pred_fallthru
        _
    $region48: #{dc_generator_forward.11} parent=5 // pred_fallthru
      _
  $region6: #{dc_generator_forward.11} parent=0 // loop_footer
    %s14 = sadd.s32 1, %s10
  $region7: #{dc_generator_forward.11} parent=0 // loop_footer_branch
    %9 = sbr.rel target = $region3
  $region8: #{dc_generator_forward.11} parent=0 // loop_exit
    _

// kernel: dc_generator_forward.12
$region0: #{dc_generator_forward.12}
  #allocation0 [shape = 'u32[]', space=smem, size = 0x4, offset = 0x4, fixed_abs, tag = 'smem constant byte address 0x4 - core index']
  #allocation1 [shape = 'u32[144,128]{1,0:T(1,128)}', space=vmem, size = 0x12000, scoped, tag = 'internal scratch']
  %s0 = inlined_call_operand.vmem [shape: bf16[16,128], index: 0, kind: input, shape index: {}, may-alias: {0,4}]
  %s1 = inlined_call_operand.vmem [shape: f32[2,128], index: 1, kind: input, shape index: {}]
  %s2 = inlined_call_operand.vmem [shape: f32[1,128], index: 2, kind: input, shape index: {}]
  %s3 = inlined_call_operand.vmem [shape: f32[1,128], index: 3, kind: input, shape index: {}]
  %s4 = inlined_call_operand.vmem [shape: bf16[16,128], index: 4, kind: output, shape index: {}, may-alias: {0,4}]
  %s5 = sld [smem:[#allocation0]]
  $region26: #{dc_generator_forward.12} parent=0
    _
  %s7 = ssub.s32 1, %s5
  %s8 = scalar_select 0, %s7, %s5
  // Predicated region
  $region2: #{dc_generator_forward.12} parent=0 // pred_check
    _
  $region3: #{dc_generator_forward.12} parent=0 // pred_check_branch
    %10 = sbr.rel (0) target = $region5
  $region4: #{dc_generator_forward.12} parent=0 // pred_region
    _
  $region5: #{dc_generator_forward.12} parent=0 // pred_fallthru
    _
  // Predicated region
  $region6: #{dc_generator_forward.12} parent=0 // pred_check
    _
  $region7: #{dc_generator_forward.12} parent=0 // pred_check_branch
    %12 = sbr.rel (0) target = $region9
  $region8: #{dc_generator_forward.12} parent=0 // pred_region
    _
  $region9: #{dc_generator_forward.12} parent=0 // pred_fallthru
    _
  // Predicated region
  $region10: #{dc_generator_forward.12} parent=0 // pred_check
    _
  $region11: #{dc_generator_forward.12} parent=0 // pred_check_branch
    %14 = sbr.rel (0) target = $region13
  $region12: #{dc_generator_forward.12} parent=0 // pred_region
    _
  $region13: #{dc_generator_forward.12} parent=0 // pred_fallthru
    _
  // Predicated region
  $region14: #{dc_generator_forward.12} parent=0 // pred_check
    _
  $region15: #{dc_generator_forward.12} parent=0 // pred_check_branch
    %16 = sbr.rel (0) target = $region17
  $region16: #{dc_generator_forward.12} parent=0 // pred_region
    _
  $region17: #{dc_generator_forward.12} parent=0 // pred_fallthru
    _
  %v17 = vld [vmem:[%s1] sm:$0x1]
  %v18 = vmul.f32 %v17, 0.0078125
  %v19 = vld [vmem:[%s1 + $0x1] sm:$0x1]
  %v20 = vmul.f32 %v19, 0.0078125
  %v21 = vmul.f32 %v18, %v18
  %v22 = vsub.f32 %v20, %v21
  %v23 = vadd.f32 %v22, 1e-05
  %v24 = vrsqrt.pop %v23
  %v25 = vld [vmem:[%s0] sm:$0xf]
  %v26 = vld [vmem:[%s0 + $0x4] sm:$0xf]
  %v27 = vunpack.c.l.bf16 %v25
  %v28 = vunpack.c.l.bf16 %v26
  %v29 = vlaneseq
  %v30 = vshrl.u32 %v29, 7
  %v31 = vsub.s32 0, %v30
  %v32 = vrot.slane %v18, %v31
  %v33 = vsub.f32 %v27, %v32
  %v34 = vsub.f32 %v28, %v32
  %v35 = vlaneseq
  %v36 = vshrl.u32 %v35, 7
  %v37 = vsub.s32 0, %v36
  %v38 = vrot.slane %v24, %v37
  %v39 = vmul.f32 %v33, %v38
  %v40 = vmul.f32 %v34, %v38
  %v41 = vld [vmem:[%s2] sm:$0x1]
  %v43 = vlaneseq
  %v44 = vshrl.u32 %v43, 7
  %v45 = vsub.s32 0, %v44
  %v46 = vrot.slane %v41, %v45
  %v48 = vmul.f32 %v39, %v46
  %v49 = vmul.f32 %v40, %v46
  %v50 = vld [vmem:[%s3] sm:$0x1]
  %v52 = vlaneseq
  %v53 = vshrl.u32 %v52, 7
  %v54 = vsub.s32 0, %v53
  %v55 = vrot.slane %v50, %v54
  %v57 = vadd.f32 %v48, %v55
  %v58 = vadd.f32 %v49, %v55
  %v59 = vmax.f32 %v57, 0.0
  %v60 = vmax.f32 %v58, 0.0
  %v61 = vpack.c.bf16 %v60, %v59
  %v63 = vunpack.c.l.b16 %v61
  %v64 = vunpack.c.h.b16 %v61
  %v65 = vpack.c.b16 %v63, %v63
  %v66 = vpack.c.b16 %v64, %v64
  %69 = vst [vmem:[%s4] sm:$0xf] %v65
  %70 = vst [vmem:[%s4 + $0x4] sm:$0xf] %v66
  // Predicated region
  $region18: #{dc_generator_forward.12} parent=0 // pred_check
    _
  $region19: #{dc_generator_forward.12} parent=0 // pred_check_branch
    %72 = sbr.rel (0) target = $region21
  $region20: #{dc_generator_forward.12} parent=0 // pred_region
    _
  $region21: #{dc_generator_forward.12} parent=0 // pred_fallthru
    _
  // Predicated region
  $region22: #{dc_generator_forward.12} parent=0 // pred_check
    _
  $region23: #{dc_generator_forward.12} parent=0 // pred_check_branch
    %74 = sbr.rel (0) target = $region25
  $region24: #{dc_generator_forward.12} parent=0 // pred_region
    _
  $region25: #{dc_generator_forward.12} parent=0 // pred_fallthru
    _

// kernel: tile.82
$region0: #{tile.82}
  %s0 = inlined_call_operand.vmem [shape: f32[2,16,8], index: 0, kind: input, shape index: {}]
  %s1 = inlined_call_operand.vmem [shape: f32[2,128], index: 1, kind: output, shape index: {}]
  $region1: #{tile.82} parent=0
    #allocation0 [shape = 'u8[4096]{0}', space=vmem, size = 0x1000, scoped, tag = 'scoped mem for output reshape']
    %s2 = smov 3
    %v3 = vld [vmem:[%s0] ss:$16 sm:%s2]
    %vm4 = vcmask 64512
    %5 = vst.msk [vmem:[#allocation0] sm:$0x3] %vm4, %v3
    %s6 = scalar_lea.vmem %s0, 15
    %s7 = smov 3
    %v8 = vld [vmem:[%s6] ss:$16 sm:%s7]
    %9 = vrot.lane.b32.xlu0 %v8, 120
    %v10 = vpop.permute.xlu0 %9
    %vm11 = vcmask 1048512
    %12 = vst.msk [vmem:[#allocation0] sm:$0x3] %vm11, %v10
    %s13 = scalar_lea.vmem %s0, 14
    %s14 = smov 3
    %v15 = vld [vmem:[%s13] ss:$16 sm:%s14]
    %16 = vrot.lane.b32.xlu0 %v15, 112
    %v17 = vpop.permute.xlu0 %16
    %vm18 = vcmask 982912
    %19 = vst.msk [vmem:[#allocation0] sm:$0x3] %vm18, %v17
    %s20 = scalar_lea.vmem %s0, 13
    %s21 = smov 3
    %v22 = vld [vmem:[%s20] ss:$16 sm:%s21]
    %23 = vrot.lane.b32.xlu0 %v22, 104
    %v24 = vpop.permute.xlu0 %23
    %vm25 = vcmask 917312
    %26 = vst.msk [vmem:[#allocation0] sm:$0x3] %vm25, %v24
    %s27 = scalar_lea.vmem %s0, 12
    %s28 = smov 3
    %v29 = vld [vmem:[%s27] ss:$16 sm:%s28]
    %30 = vrot.lane.b32.xlu0 %v29, 96
    %v31 = vpop.permute.xlu0 %30
    %vm32 = vcmask 851712
    %33 = vst.msk [vmem:[#allocation0] sm:$0x3] %vm32, %v31
    %s34 = scalar_lea.vmem %s0, 11
    %s35 = smov 3
    %v36 = vld [vmem:[%s34] ss:$16 sm:%s35]
    %37 = vrot.lane.b32.xlu0 %v36, 88
    %v38 = vpop.permute.xlu0 %37
    %vm39 = vcmask 786112
    %40 = vst.msk [vmem:[#allocation0] sm:$0x3] %vm39, %v38
    %s41 = scalar_lea.vmem %s0, 10
    %s42 = smov 3
    %v43 = vld [vmem:[%s41] ss:$16 sm:%s42]
    %44 = vrot.lane.b32.xlu0 %v43, 80
    %v45 = vpop.permute.xlu0 %44
    %vm46 = vcmask 720512
    %47 = vst.msk [vmem:[#allocation0] sm:$0x3] %vm46, %v45
    %s48 = scalar_lea.vmem %s0, 9
    %s49 = smov 3
    %v50 = vld [vmem:[%s48] ss:$16 sm:%s49]
    %51 = vrot.lane.b32.xlu0 %v50, 72
    %v52 = vpop.permute.xlu0 %51
    %vm53 = vcmask 654912
    %54 = vst.msk [vmem:[#allocation0] sm:$0x3] %vm53, %v52
    %s55 = scalar_lea.vmem %s0, 8
    %s56 = smov 3
    %v57 = vld [vmem:[%s55] ss:$16 sm:%s56]
    %58 = vrot.lane.b32.xlu0 %v57, 64
    %v59 = vpop.permute.xlu0 %58
    %vm60 = vcmask 589312
    %61 = vst.msk [vmem:[#allocation0] sm:$0x3] %vm60, %v59
    %s62 = scalar_lea.vmem %s0, 7
    %s63 = smov 3
    %v64 = vld [vmem:[%s62] ss:$16 sm:%s63]
    %65 = vrot.lane.b32.xlu0 %v64, 56
    %v66 = vpop.permute.xlu0 %65
    %vm67 = vcmask 523712
    %68 = vst.msk [vmem:[#allocation0] sm:$0x3] %vm67, %v66
    %s69 = scalar_lea.vmem %s0, 6
    %s70 = smov 3
    %v71 = vld [vmem:[%s69] ss:$16 sm:%s70]
    %72 = vrot.lane.b32.xlu0 %v71, 48
    %v73 = vpop.permute.xlu0 %72
    %vm74 = vcmask 458112
    %75 = vst.msk [vmem:[#allocation0] sm:$0x3] %vm74, %v73
    %s76 = scalar_lea.vmem %s0, 5
    %s77 = smov 3
    %v78 = vld [vmem:[%s76] ss:$16 sm:%s77]
    %79 = vrot.lane.b32.xlu0 %v78, 40
    %v80 = vpop.permute.xlu0 %79
    %vm81 = vcmask 392512
    %82 = vst.msk [vmem:[#allocation0] sm:$0x3] %vm81, %v80
    %s83 = scalar_lea.vmem %s0, 4
    %s84 = smov 3
    %v85 = vld [vmem:[%s83] ss:$16 sm:%s84]
    %86 = vrot.lane.b32.xlu0 %v85, 32
    %v87 = vpop.permute.xlu0 %86
    %vm88 = vcmask 326912
    %89 = vst.msk [vmem:[#allocation0] sm:$0x3] %vm88, %v87
    %s90 = scalar_lea.vmem %s0, 3
    %s91 = smov 3
    %v92 = vld [vmem:[%s90] ss:$16 sm:%s91]
    %93 = vrot.lane.b32.xlu0 %v92, 24
    %v94 = vpop.permute.xlu0 %93
    %vm95 = vcmask 261312
    %96 = vst.msk [vmem:[#allocation0] sm:$0x3] %vm95, %v94
    %s97 = scalar_lea.vmem %s0, 2
    %s98 = smov 3
    %v99 = vld [vmem:[%s97] ss:$16 sm:%s98]
    %100 = vrot.lane.b32.xlu0 %v99, 16
    %v101 = vpop.permute.xlu0 %100
    %vm102 = vcmask 195712
    %103 = vst.msk [vmem:[#allocation0] sm:$0x3] %vm102, %v101
    %s104 = scalar_lea.vmem %s0, 1
    %s105 = smov 3
    %v106 = vld [vmem:[%s104] ss:$16 sm:%s105]
    %107 = vrot.lane.b32.xlu0 %v106, 8
    %v108 = vpop.permute.xlu0 %107
    %vm109 = vcmask 130112
    %110 = vst.msk [vmem:[#allocation0] sm:$0x3] %vm109, %v108
    %s112 = sshllo.u32 0, 2
    %v114 = vld [vmem:[#allocation0] sm:%s112]
    %s115 = sshllo.u32 0, 2
    %116 = vst [vmem:[%s1] sm:%s115] %v114

// kernel: dc_generator_forward.14
$region0: #{dc_generator_forward.14}
  #allocation0 [shape = 'u32[]', space=smem, size = 0x4, offset = 0x4, fixed_abs, tag = 'smem constant byte address 0x4 - core index']
  #allocation1 [shape = 'u32[144,128]{1,0:T(1,128)}', space=vmem, size = 0x12000, scoped, tag = 'internal scratch']
  %s0 = inlined_call_operand.vmem [shape: bf16[32,128], index: 0, kind: input, shape index: {}, may-alias: {0,4}]
  %s1 = inlined_call_operand.vmem [shape: f32[2,128], index: 1, kind: input, shape index: {}]
  %s2 = inlined_call_operand.vmem [shape: f32[1,128], index: 2, kind: input, shape index: {}]
  %s3 = inlined_call_operand.vmem [shape: f32[1,128], index: 3, kind: input, shape index: {}]
  %s4 = inlined_call_operand.vmem [shape: bf16[32,128], index: 4, kind: output, shape index: {}, may-alias: {0,4}]
  %s5 = sld [smem:[#allocation0]]
  $region26: #{dc_generator_forward.14} parent=0
    _
  %s7 = ssub.s32 1, %s5
  %s8 = scalar_select 0, %s7, %s5
  // Predicated region
  $region2: #{dc_generator_forward.14} parent=0 // pred_check
    _
  $region3: #{dc_generator_forward.14} parent=0 // pred_check_branch
    %10 = sbr.rel (0) target = $region5
  $region4: #{dc_generator_forward.14} parent=0 // pred_region
    _
  $region5: #{dc_generator_forward.14} parent=0 // pred_fallthru
    _
  // Predicated region
  $region6: #{dc_generator_forward.14} parent=0 // pred_check
    _
  $region7: #{dc_generator_forward.14} parent=0 // pred_check_branch
    %12 = sbr.rel (0) target = $region9
  $region8: #{dc_generator_forward.14} parent=0 // pred_region
    _
  $region9: #{dc_generator_forward.14} parent=0 // pred_fallthru
    _
  // Predicated region
  $region10: #{dc_generator_forward.14} parent=0 // pred_check
    _
  $region11: #{dc_generator_forward.14} parent=0 // pred_check_branch
    %14 = sbr.rel (0) target = $region13
  $region12: #{dc_generator_forward.14} parent=0 // pred_region
    _
  $region13: #{dc_generator_forward.14} parent=0 // pred_fallthru
    _
  // Predicated region
  $region14: #{dc_generator_forward.14} parent=0 // pred_check
    _
  $region15: #{dc_generator_forward.14} parent=0 // pred_check_branch
    %16 = sbr.rel (0) target = $region17
  $region16: #{dc_generator_forward.14} parent=0 // pred_region
    _
  $region17: #{dc_generator_forward.14} parent=0 // pred_fallthru
    _
  %v17 = vld [vmem:[%s1] sm:$0x1]
  %v18 = vmul.f32 %v17, 0.001953125
  %v19 = vld [vmem:[%s1 + $0x1] sm:$0x1]
  %v20 = vmul.f32 %v19, 0.001953125
  %v21 = vmul.f32 %v18, %v18
  %v22 = vsub.f32 %v20, %v21
  %v23 = vadd.f32 %v22, 1e-05
  %v24 = vrsqrt.pop %v23
  %v25 = vld [vmem:[%s0] sm:$0xf]
  %v26 = vld [vmem:[%s0 + $0x4] sm:$0xf]
  %v27 = vld [vmem:[%s0 + $0x8] sm:$0xf]
  %v28 = vld [vmem:[%s0 + $0xc] sm:$0xf]
  %v29 = vunpack.c.l.bf16 %v25
  %v30 = vunpack.c.l.bf16 %v26
  %v31 = vunpack.c.l.bf16 %v27
  %v32 = vunpack.c.l.bf16 %v28
  %v33 = vlaneseq
  %v34 = vshrl.u32 %v33, 7
  %v35 = vsub.s32 0, %v34
  %v36 = vrot.slane %v18, %v35
  %v37 = vsub.f32 %v29, %v36
  %v38 = vsub.f32 %v30, %v36
  %v39 = vsub.f32 %v31, %v36
  %v40 = vsub.f32 %v32, %v36
  %v41 = vlaneseq
  %v42 = vshrl.u32 %v41, 7
  %v43 = vsub.s32 0, %v42
  %v44 = vrot.slane %v24, %v43
  %v45 = vmul.f32 %v37, %v44
  %v46 = vmul.f32 %v38, %v44
  %v47 = vmul.f32 %v39, %v44
  %v48 = vmul.f32 %v40, %v44
  %v49 = vld [vmem:[%s2] sm:$0x1]
  %v51 = vlaneseq
  %v52 = vshrl.u32 %v51, 7
  %v53 = vsub.s32 0, %v52
  %v54 = vrot.slane %v49, %v53
  %v56 = vmul.f32 %v45, %v54
  %v57 = vmul.f32 %v46, %v54
  %v58 = vmul.f32 %v47, %v54
  %v59 = vmul.f32 %v48, %v54
  %v60 = vld [vmem:[%s3] sm:$0x1]
  %v62 = vlaneseq
  %v63 = vshrl.u32 %v62, 7
  %v64 = vsub.s32 0, %v63
  %v65 = vrot.slane %v60, %v64
  %v67 = vadd.f32 %v56, %v65
  %v68 = vadd.f32 %v57, %v65
  %v69 = vadd.f32 %v58, %v65
  %v70 = vadd.f32 %v59, %v65
  %v71 = vmax.f32 %v67, 0.0
  %v72 = vmax.f32 %v68, 0.0
  %v73 = vmax.f32 %v69, 0.0
  %v74 = vmax.f32 %v70, 0.0
  %v75 = vpack.c.bf16 %v72, %v71
  %v76 = vpack.c.bf16 %v74, %v73
  %v79 = vunpack.c.l.b16 %v75
  %v80 = vunpack.c.h.b16 %v75
  %v81 = vunpack.c.l.b16 %v76
  %v82 = vunpack.c.h.b16 %v76
  %v83 = vpack.c.b16 %v79, %v79
  %v84 = vpack.c.b16 %v80, %v80
  %v85 = vpack.c.b16 %v81, %v81
  %v86 = vpack.c.b16 %v82, %v82
  %91 = vst [vmem:[%s4] sm:$0xf] %v83
  %92 = vst [vmem:[%s4 + $0x4] sm:$0xf] %v84
  %93 = vst [vmem:[%s4 + $0x8] sm:$0xf] %v85
  %94 = vst [vmem:[%s4 + $0xc] sm:$0xf] %v86
  // Predicated region
  $region18: #{dc_generator_forward.14} parent=0 // pred_check
    _
  $region19: #{dc_generator_forward.14} parent=0 // pred_check_branch
    %96 = sbr.rel (0) target = $region21
  $region20: #{dc_generator_forward.14} parent=0 // pred_region
    _
  $region21: #{dc_generator_forward.14} parent=0 // pred_fallthru
    _
  // Predicated region
  $region22: #{dc_generator_forward.14} parent=0 // pred_check
    _
  $region23: #{dc_generator_forward.14} parent=0 // pred_check_branch
    %98 = sbr.rel (0) target = $region25
  $region24: #{dc_generator_forward.14} parent=0 // pred_region
    _
  $region25: #{dc_generator_forward.14} parent=0 // pred_fallthru
    _

// kernel: dc_generator_forward.13
$region0: #{dc_generator_forward.13}
  #allocation0 [shape = 'u32[]', space=smem, size = 0x4, offset = 0x4, fixed_abs, tag = 'smem constant byte address 0x4 - core index']
  #allocation1 [shape = 'u32[144,128]{1,0:T(1,128)}', space=vmem, size = 0x12000, scoped, tag = 'internal scratch']
  #allocation2 [shape = 'f32[2,8]{1,0:T(2,128)}', space=vmem, size = 0x400, scoped, tag = 'scratch operand']
  %s0 = inlined_call_operand.vmem [shape: bf16[4,128,64], index: 0, kind: input, shape index: {}]
  %s1 = inlined_call_operand.vmem [shape: bf16[4,64,8], index: 1, kind: input, shape index: {}]
  %s2 = inlined_call_operand.vmem [shape: bf16[4,128,8], index: 2, kind: output, shape index: {0}]
  %s3 = inlined_call_operand.vmem [shape: f32[4,2,8], index: 3, kind: output, shape index: {1}]
  %4 = xla_tuple %s2, %s3
  %s5 = sld [smem:[#allocation0]]
  $region57: #{dc_generator_forward.13} parent=0
    _
  %s7 = ssub.s32 1, %s5
  %s8 = scalar_select 0, %s7, %s5
  loop: start=0, step=1, limit=6
  $region2: #{dc_generator_forward.13} parent=0 // loop_pre_header
    _
  $region3: #{dc_generator_forward.13} parent=0 // loop_header
    %s10 = sphi 0, %s14
    %p11 = scmp.ge.s32.totalorder %s10, 6
    %s17 = sphi 0, %s29
    %s18 = sphi 0, %s25
    %s19 = sphi 0, %s17
    %s20 = sphi 0, %s18
    %s21 = sphi 0, %s19
    %s22 = sphi 0, %s20
    %s34 = sphi 0, %s36
    %s37 = sphi 0, %s34
    %s38 = sphi 0, %s37
    %s54 = sphi 0, %s38
    %s60 = sphi 0, %s62
    %s63 = sphi 0, %s60
    %s64 = sphi 0, %s63
    %s80 = sphi 0, %s64
    %s88 = sphi 0, %s90
    %s91 = sphi 0, %s88
    %s92 = sphi 0, %s91
    %s108 = sphi 0, %s92
    %s114 = sphi 0, %s116
    %s117 = sphi 0, %s114
    %s118 = sphi 0, %s117
    %s134 = sphi 0, %s118
  $region4: #{dc_generator_forward.13} parent=0 // loop_header_branch
    %13 = sbr.rel (%p11) target = $region8
  $region5: #{dc_generator_forward.13} parent=0 // loop_body
    %s15 = ssub.s32 %s10, 1
    %s16 = ssub.s32 %s10, 2
    %s23 = sadd.s32 1, %s18
    %p24 = scmp.ge.s32.totalorder %s23, 1
    %s25 = scalar_select %p24, 0, %s23
    %s26 = sadd.s32 1, %s17
    %s27 = scalar_select %p24, %s26, %s17
    %p28 = scmp.ge.s32.totalorder %s27, 4
    %s29 = scalar_select %p28, 0, %s27
    %s30 = ssub.s32 %s17, %s29
    %s31 = ssub.s32 %s18, %s25
    %s32 = sor.u32 %s30, %s31
    %p33 = scmp.eq.s32.totalorder %s32, 0
    %s35 = sadd.s32 %s34, 1
    %s36 = scalar_select %p33, %s34, %s35
    %p39 = pneg %p33
    %p40 = scmp.eq.s32.totalorder %s10, 3
    %p41 = por %p39, %p40
    %p42 = scmp.ne.s32.totalorder %s34, %s37
    %p43 = scmp.eq.s32.totalorder %s10, 0
    %p44 = por %p42, %p43
    %p45 = scmp.ne.s32.totalorder %s34, %s37
    %p46 = scmp.eq.s32.totalorder %s15, 3
    %p47 = por %p45, %p46
    %p48 = scmp.ne.s32.totalorder %s37, %s38
    %p49 = scmp.eq.s32.totalorder %s15, 0
    %p50 = por %p48, %p49
    %p51 = scmp.ne.s32.totalorder %s37, %s38
    %p52 = scmp.eq.s32.totalorder %s16, 3
    %p53 = por %p51, %p52
    %p55 = scmp.ne.s32.totalorder %s38, %s54
    %p56 = scmp.eq.s32.totalorder %s16, 0
    %p57 = por %p55, %p56
    %s58 = ssub.s32 %s17, %s29
    %p59 = scmp.eq.s32.totalorder %s58, 0
    %s61 = sadd.s32 %s60, 1
    %s62 = scalar_select %p59, %s60, %s61
    %p65 = pneg %p59
    %p66 = scmp.eq.s32.totalorder %s10, 3
    %p67 = por %p65, %p66
    %p68 = scmp.ne.s32.totalorder %s60, %s63
    %p69 = scmp.eq.s32.totalorder %s10, 0
    %p70 = por %p68, %p69
    %p71 = scmp.ne.s32.totalorder %s60, %s63
    %p72 = scmp.eq.s32.totalorder %s15, 3
    %p73 = por %p71, %p72
    %p74 = scmp.ne.s32.totalorder %s63, %s64
    %p75 = scmp.eq.s32.totalorder %s15, 0
    %p76 = por %p74, %p75
    %p77 = scmp.ne.s32.totalorder %s63, %s64
    %p78 = scmp.eq.s32.totalorder %s16, 3
    %p79 = por %p77, %p78
    %p81 = scmp.ne.s32.totalorder %s64, %s80
    %p82 = scmp.eq.s32.totalorder %s16, 0
    %p83 = por %p81, %p82
    %s84 = ssub.s32 %s17, %s29
    %s85 = ssub.s32 %s18, %s25
    %s86 = sor.u32 %s84, %s85
    %p87 = scmp.eq.s32.totalorder %s86, 0
    %s89 = sadd.s32 %s88, 1
    %s90 = scalar_select %p87, %s88, %s89
    %p93 = pneg %p87
    %p94 = scmp.eq.s32.totalorder %s10, 3
    %p95 = por %p93, %p94
    %p96 = scmp.ne.s32.totalorder %s88, %s91
    %p97 = scmp.eq.s32.totalorder %s10, 0
    %p98 = por %p96, %p97
    %p99 = scmp.ne.s32.totalorder %s88, %s91
    %p100 = scmp.eq.s32.totalorder %s15, 3
    %p101 = por %p99, %p100
    %p102 = scmp.ne.s32.totalorder %s91, %s92
    %p103 = scmp.eq.s32.totalorder %s15, 0
    %p104 = por %p102, %p103
    %p105 = scmp.ne.s32.totalorder %s91, %s92
    %p106 = scmp.eq.s32.totalorder %s16, 3
    %p107 = por %p105, %p106
    %p109 = scmp.ne.s32.totalorder %s92, %s108
    %p110 = scmp.eq.s32.totalorder %s16, 0
    %p111 = por %p109, %p110
    %s112 = ssub.s32 %s17, %s29
    %p113 = scmp.eq.s32.totalorder %s112, 0
    %s115 = sadd.s32 %s114, 1
    %s116 = scalar_select %p113, %s114, %s115
    %p119 = pneg %p113
    %p120 = scmp.eq.s32.totalorder %s10, 3
    %p121 = por %p119, %p120
    %p122 = scmp.ne.s32.totalorder %s114, %s117
    %p123 = scmp.eq.s32.totalorder %s10, 0
    %p124 = por %p122, %p123
    %p125 = scmp.ne.s32.totalorder %s114, %s117
    %p126 = scmp.eq.s32.totalorder %s15, 3
    %p127 = por %p125, %p126
    %p128 = scmp.ne.s32.totalorder %s117, %s118
    %p129 = scmp.eq.s32.totalorder %s15, 0
    %p130 = por %p128, %p129
    %p131 = scmp.ne.s32.totalorder %s117, %s118
    %p132 = scmp.eq.s32.totalorder %s16, 3
    %p133 = por %p131, %p132
    %p135 = scmp.ne.s32.totalorder %s118, %s134
    %p136 = scmp.eq.s32.totalorder %s16, 0
    %p137 = por %p135, %p136
    %p138 = scmp.le.s32.totalorder 1, %s10
    %p139 = scmp.lt.s32.totalorder %s10, 5
    %p140 = pnand %p138, %p139
    %p141 = pneg %p140
    // Predicated region
    $region9: #{dc_generator_forward.13} parent=5 // pred_check
      _
    $region10: #{dc_generator_forward.13} parent=5 // pred_check_branch
      %143 = sbr.rel (%p140) target = $region12
    $region11: #{dc_generator_forward.13} parent=5 // pred_region
      %s144 = ssub.s32 %s10, 1
    $region12: #{dc_generator_forward.13} parent=5 // pred_fallthru
      _
    %p145 = scmp.lt.s32.totalorder %s10, 4
    // Predicated region
    $region13: #{dc_generator_forward.13} parent=5 // pred_check
      %p146 = pneg %p145
    $region14: #{dc_generator_forward.13} parent=5 // pred_check_branch
      %148 = sbr.rel (%p146) target = $region16
    $region15: #{dc_generator_forward.13} parent=5 // pred_region
      // Predicated region
      $region17: #{dc_generator_forward.13} parent=15 // pred_check
        %p149 = pneg %p44
      $region18: #{dc_generator_forward.13} parent=15 // pred_check_branch
        %151 = sbr.rel (%p149) target = $region20
      $region19: #{dc_generator_forward.13} parent=15 // pred_region
        %s152 = smul.u32 16, %s18
        %p153 = scmp.lt.s32.totalorder %s17, 3
        %s154 = scalar_select %p153, %s17, 3
        %p155 = scmp.lt.s32.totalorder %s152, 15
        %s156 = scalar_select %p155, %s152, 15
        %s157 = smul.addr %s154, 16
        %s158 = sadd.s32 %s156, %s157
        %s159 = smul.addr %s158, 4
        %s160 = scalar_lea.vmem %s0, %s159
        %s161 = smul.u32 16, %s18
      $region20: #{dc_generator_forward.13} parent=15 // pred_fallthru
        _
      // Predicated region
      $region21: #{dc_generator_forward.13} parent=15 // pred_check
        %p162 = pneg %p70
      $region22: #{dc_generator_forward.13} parent=15 // pred_check_branch
        %164 = sbr.rel (%p162) target = $region24
      $region23: #{dc_generator_forward.13} parent=15 // pred_region
        %p165 = scmp.lt.s32.totalorder %s17, 3
        %s166 = scalar_select %p165, %s17, 3
        %s167 = smul.addr %s166, 8
        %s168 = smul.addr %s167, 4
        %s169 = scalar_lea.vmem %s1, %s168
      $region24: #{dc_generator_forward.13} parent=15 // pred_fallthru
        _
    $region16: #{dc_generator_forward.13} parent=5 // pred_fallthru
      _
    %p170 = scmp.le.s32.totalorder 1, %s10
    %p171 = scmp.lt.s32.totalorder %s10, 5
    %p172 = pnand %p170, %p171
    %p173 = pneg %p172
    // Predicated region
    $region25: #{dc_generator_forward.13} parent=5 // pred_check
      _
    $region26: #{dc_generator_forward.13} parent=5 // pred_check_branch
      %175 = sbr.rel (%p172) target = $region28
    $region27: #{dc_generator_forward.13} parent=5 // pred_region
      %s176 = ssub.s32 %s10, 1
      %s177 = smul.u32 16, %s20
      %p178 = scmp.lt.s32.totalorder %s19, 3
      %s179 = scalar_select %p178, %s19, 3
      %p180 = scmp.lt.s32.totalorder %s177, 15
      %s181 = scalar_select %p180, %s177, 15
      %s182 = smul.addr %s179, 16
      %s183 = sadd.s32 %s181, %s182
      %s184 = smul.addr %s183, 4
      %s185 = scalar_lea.vmem %s0, %s184
      %p186 = pneg %p50
      %p187 = pneg %p47
      %p188 = scmp.lt.s32.totalorder %s19, 3
      %s189 = scalar_select %p188, %s19, 3
      %s190 = smul.addr %s189, 8
      %s191 = smul.addr %s190, 4
      %s192 = scalar_lea.vmem %s1, %s191
      %p193 = pneg %p76
      %p194 = pneg %p73
      %p195 = pneg %p104
      %p196 = pneg %p101
      %s197 = smul.u32 16, %s20
      %p198 = scmp.lt.s32.totalorder %s19, 3
      %s199 = scalar_select %p198, %s19, 3
      %p200 = scmp.lt.s32.totalorder %s197, 15
      %s201 = scalar_select %p200, %s197, 15
      %s202 = smul.addr %s199, 16
      %s203 = sadd.s32 %s201, %s202
      %s204 = smul.addr %s203, 4
      %s205 = scalar_lea.vmem %s2, %s204
      %p206 = pneg %p130
      %p207 = pneg %p127
      %p208 = scmp.lt.s32.totalorder %s19, 3
      %s209 = scalar_select %p208, %s19, 3
      %s210 = smul.addr %s209, 2
      %s211 = scalar_lea.vmem %s3, %s210
      %s212 = smul.u32 16, %s20
      %p213 = scmp.lt.s32.totalorder %s19, 3
      %s214 = scalar_select %p213, %s19, 3
      %p215 = scmp.lt.s32.totalorder %s212, 15
      %s216 = scalar_select %p215, %s212, 15
      %s217 = smul.addr %s214, 16
      %s218 = sadd.s32 %s216, %s217
      %s219 = smul.addr %s218, 4
      %s220 = scalar_lea.vmem %s0, %s219
      %s221 = smul.u32 16, %s20
      %p222 = scmp.lt.s32.totalorder %s19, 3
      %s223 = scalar_select %p222, %s19, 3
      %s224 = smul.addr %s223, 8
      %s225 = smul.addr %s224, 4
      %s226 = scalar_lea.vmem %s1, %s225
      %s227 = smul.u32 16, %s20
      %p228 = scmp.lt.s32.totalorder %s19, 3
      %s229 = scalar_select %p228, %s19, 3
      %p230 = scmp.lt.s32.totalorder %s227, 15
      %s231 = scalar_select %p230, %s227, 15
      %s232 = smul.addr %s229, 16
      %s233 = sadd.s32 %s231, %s232
      %s234 = smul.addr %s233, 4
      %s235 = scalar_lea.vmem %s2, %s234
      %s236 = smul.u32 16, %s20
      %p237 = scmp.lt.s32.totalorder %s19, 3
      %s238 = scalar_select %p237, %s19, 3
      %s239 = smul.addr %s238, 2
      %s240 = scalar_lea.vmem %s3, %s239
      %p242 = scmp.eq.s32.totalorder %s20, 0
      // Predicated region
      $region29: #{dc_generator_forward.13} parent=27 // pred_check
        %p243 = pneg %p242
      $region30: #{dc_generator_forward.13} parent=27 // pred_check_branch
        %245 = sbr.rel (%p243) target = $region32
      $region31: #{dc_generator_forward.13} parent=27 // pred_region
        %vm246 = vcmask 58368
        %247 = vst.msk [vmem:[#allocation2] sm:$0x3] %vm246, 0.0
      $region32: #{dc_generator_forward.13} parent=27 // pred_fallthru
        _
      %v248 = vld [vmem:[%s220] sm:$0xf]
      %v249 = vld [vmem:[%s220 + $0x4] sm:$0xf]
      %v250 = vld [vmem:[%s220 + $0x8] sm:$0xf]
      %v251 = vld [vmem:[%s220 + $0xc] sm:$0xf]
      %v252 = vld [vmem:[%s220 + $0x10] sm:$0xf]
      %v253 = vld [vmem:[%s220 + $0x14] sm:$0xf]
      %v254 = vld [vmem:[%s220 + $0x18] sm:$0xf]
      %v255 = vld [vmem:[%s220 + $0x1c] sm:$0xf]
      %v256 = vld [vmem:[%s220 + $0x20] sm:$0xf]
      %v257 = vld [vmem:[%s220 + $0x24] sm:$0xf]
      %v258 = vld [vmem:[%s220 + $0x28] sm:$0xf]
      %v259 = vld [vmem:[%s220 + $0x2c] sm:$0xf]
      %v260 = vld [vmem:[%s220 + $0x30] sm:$0xf]
      %v261 = vld [vmem:[%s220 + $0x34] sm:$0xf]
      %v262 = vld [vmem:[%s220 + $0x38] sm:$0xf]
      %v263 = vld [vmem:[%s220 + $0x3c] sm:$0xf]
      %v264 = vld [vmem:[%s226] sm:$0xf]
      %v265 = vld [vmem:[%s226 + $0x4] sm:$0xf]
      %v266 = vld [vmem:[%s226 + $0x8] sm:$0xf]
      %v267 = vld [vmem:[%s226 + $0xc] sm:$0xf]
      %v268 = vld [vmem:[%s226 + $0x10] sm:$0xf]
      %v269 = vld [vmem:[%s226 + $0x14] sm:$0xf]
      %v270 = vld [vmem:[%s226 + $0x18] sm:$0xf]
      %v271 = vld [vmem:[%s226 + $0x1c] sm:$0xf]
      %v288 = vunpack.c.l.b16 %v248
      %v289 = vunpack.c.l.b16 %v249
      %v290 = vunpack.c.l.b16 %v250
      %v291 = vunpack.c.l.b16 %v251
      %v292 = vunpack.c.l.b16 %v252
      %v293 = vunpack.c.l.b16 %v253
      %v294 = vunpack.c.l.b16 %v254
      %v295 = vunpack.c.l.b16 %v255
      %v296 = vunpack.c.l.b16 %v256
      %v297 = vunpack.c.l.b16 %v257
      %v298 = vunpack.c.l.b16 %v258
      %v299 = vunpack.c.l.b16 %v259
      %v300 = vunpack.c.l.b16 %v260
      %v301 = vunpack.c.l.b16 %v261
      %v302 = vunpack.c.l.b16 %v262
      %v303 = vunpack.c.l.b16 %v263
      %v304 = vpack.c.b16 %v289, %v288
      %v305 = vpack.c.b16 %v291, %v290
      %v306 = vpack.c.b16 %v293, %v292
      %v307 = vpack.c.b16 %v295, %v294
      %v308 = vpack.c.b16 %v297, %v296
      %v309 = vpack.c.b16 %v299, %v298
      %v310 = vpack.c.b16 %v301, %v300
      %v311 = vpack.c.b16 %v303, %v302
      %v320 = vunpack.c.l.b16 %v264
      %v321 = vunpack.c.l.b16 %v265
      %v322 = vunpack.c.l.b16 %v266
      %v323 = vunpack.c.l.b16 %v267
      %v324 = vunpack.c.l.b16 %v268
      %v325 = vunpack.c.l.b16 %v269
      %v326 = vunpack.c.l.b16 %v270
      %v327 = vunpack.c.l.b16 %v271
      %v328 = vpack.c.b16 %v321, %v320
      %v329 = vpack.c.b16 %v323, %v322
      %v330 = vpack.c.b16 %v325, %v324
      %v331 = vpack.c.b16 %v327, %v326
      %vm336 = vcmask 523264
      %v338 = vsel %vm336, %v304, 0
      %v341 = vsel %vm336, %v305, 0
      %v344 = vsel %vm336, %v306, 0
      %v347 = vsel %vm336, %v307, 0
      %v350 = vsel %vm336, %v308, 0
      %v353 = vsel %vm336, %v309, 0
      %v356 = vsel %vm336, %v310, 0
      %v359 = vsel %vm336, %v311, 0
      %361 = vmatprep.subr.bf16.mxu0 0
      %362 = vmatpush1.bf16.msra.mxu0 %v328
      %363 = vmatprep.subr.bf16.mxu0 0
      %364 = vmatpush1.bf16.msra.mxu0 %v329
      %365 = vmatprep.subr.bf16.mxu0 0
      %366 = vmatpush1.bf16.msra.mxu0 %v330
      %367 = vmatprep.subr.bf16.mxu0 0
      %368 = vmatpush1.bf16.msra.mxu0 %v331
      %369 = vmatprep.subr.bf16.mxu0 0
      %370 = vmatpush1.bf16.msra.mxu0 0
      %371 = vmatprep.subr.bf16.mxu0 0
      %372 = vmatpush1.bf16.msra.mxu0 0
      %373 = vmatprep.subr.bf16.mxu0 0
      %374 = vmatpush1.bf16.msra.mxu0 0
      %375 = vmatprep.subr.bf16.mxu0 0
      %376 = vmatpush1.bf16.msra.mxu0 0
      %377 = vmatprep.subr.bf16.mxu0 0
      %378 = vmatpush1.bf16.msra.mxu0 0
      %379 = vmatprep.subr.bf16.mxu0 0
      %380 = vmatpush1.bf16.msra.mxu0 0
      %381 = vmatprep.subr.bf16.mxu0 0
      %382 = vmatpush1.bf16.msra.mxu0 0
      %383 = vmatprep.subr.bf16.mxu0 0
      %384 = vmatpush1.bf16.msra.mxu0 0
      %385 = vmatprep.subr.bf16.mxu0 0
      %386 = vmatpush1.bf16.msra.mxu0 0
      %387 = vmatprep.subr.bf16.mxu0 0
      %388 = vmatpush1.bf16.msra.mxu0 0
      %389 = vmatprep.subr.bf16.mxu0 0
      %390 = vmatpush1.bf16.msra.mxu0 0
      %391 = vmatprep.subr.bf16.mxu0 0
      %392 = vmatpush1.bf16.msra.mxu0 0
      %393 = vmatprep.mubr.bf16.mxu0 0
      %394 = vmatmul.mubr.bf16.gmra.mrb[0].mxu0 %v338
      %v395 = vpop.f32.mrb[0].mxu0
      %v396 = vadd.f32 0.0, %v395
      %v397 = vpop.f32.mrb[0].mxu0
      %v398 = vpop.f32.mrb[0].mxu0
      %v399 = vadd.f32 0.0, %v398
      %v400 = vpop.f32.mrb[0].mxu0
      %401 = vmatprep.mubr.bf16.mxu0 0
      %402 = vmatmul.mubr.bf16.gmra.mrb[0].mxu0 %v341
      %v403 = vpop.f32.mrb[0].mxu0
      %v404 = vadd.f32 0.0, %v403
      %v405 = vpop.f32.mrb[0].mxu0
      %v406 = vpop.f32.mrb[0].mxu0
      %v407 = vadd.f32 0.0, %v406
      %v408 = vpop.f32.mrb[0].mxu0
      %409 = vmatprep.mubr.bf16.mxu0 0
      %410 = vmatmul.mubr.bf16.gmra.mrb[0].mxu0 %v344
      %v411 = vpop.f32.mrb[0].mxu0
      %v412 = vadd.f32 0.0, %v411
      %v413 = vpop.f32.mrb[0].mxu0
      %v414 = vpop.f32.mrb[0].mxu0
      %v415 = vadd.f32 0.0, %v414
      %v416 = vpop.f32.mrb[0].mxu0
      %417 = vmatprep.mubr.bf16.mxu0 0
      %418 = vmatmul.mubr.bf16.gmra.mrb[0].mxu0 %v347
      %v419 = vpop.f32.mrb[0].mxu0
      %v420 = vadd.f32 0.0, %v419
      %v421 = vpop.f32.mrb[0].mxu0
      %v422 = vpop.f32.mrb[0].mxu0
      %v423 = vadd.f32 0.0, %v422
      %v424 = vpop.f32.mrb[0].mxu0
      %425 = vmatprep.mubr.bf16.mxu0 0
      %426 = vmatmul.mubr.bf16.gmra.mrb[0].mxu0 %v350
      %v427 = vpop.f32.mrb[0].mxu0
      %v428 = vadd.f32 0.0, %v427
      %v429 = vpop.f32.mrb[0].mxu0
      %v430 = vpop.f32.mrb[0].mxu0
      %v431 = vadd.f32 0.0, %v430
      %v432 = vpop.f32.mrb[0].mxu0
      %433 = vmatprep.mubr.bf16.mxu0 0
      %434 = vmatmul.mubr.bf16.gmra.mrb[0].mxu0 %v353
      %v435 = vpop.f32.mrb[0].mxu0
      %v436 = vadd.f32 0.0, %v435
      %v437 = vpop.f32.mrb[0].mxu0
      %v438 = vpop.f32.mrb[0].mxu0
      %v439 = vadd.f32 0.0, %v438
      %v440 = vpop.f32.mrb[0].mxu0
      %441 = vmatprep.mubr.bf16.mxu0 0
      %442 = vmatmul.mubr.bf16.gmra.mrb[0].mxu0 %v356
      %v443 = vpop.f32.mrb[0].mxu0
      %v444 = vadd.f32 0.0, %v443
      %v445 = vpop.f32.mrb[0].mxu0
      %v446 = vpop.f32.mrb[0].mxu0
      %v447 = vadd.f32 0.0, %v446
      %v448 = vpop.f32.mrb[0].mxu0
      %449 = vmatprep.mubr.bf16.mxu0 0
      %450 = vmatmul.mubr.bf16.gmra.mrb[0].mxu0 %v359
      %v451 = vpop.f32.mrb[0].mxu0
      %v452 = vadd.f32 0.0, %v451
      %v453 = vpop.f32.mrb[0].mxu0
      %v454 = vpop.f32.mrb[0].mxu0
      %v455 = vadd.f32 0.0, %v454
      %v456 = vpop.f32.mrb[0].mxu0
      %457 = vdwg.mxu0
      %v458 = vpack.c.bf16 %v399, %v396
      %v459 = vpack.c.bf16 %v407, %v404
      %v460 = vpack.c.bf16 %v415, %v412
      %v461 = vpack.c.bf16 %v423, %v420
      %v462 = vpack.c.bf16 %v431, %v428
      %v463 = vpack.c.bf16 %v439, %v436
      %v464 = vpack.c.bf16 %v447, %v444
      %v465 = vpack.c.bf16 %v455, %v452
      %v474 = vunpack.c.l.b16 %v458
      %v475 = vunpack.c.h.b16 %v458
      %v476 = vunpack.c.l.b16 %v459
      %v477 = vunpack.c.h.b16 %v459
      %v478 = vunpack.c.l.b16 %v460
      %v479 = vunpack.c.h.b16 %v460
      %v480 = vunpack.c.l.b16 %v461
      %v481 = vunpack.c.h.b16 %v461
      %v482 = vunpack.c.l.b16 %v462
      %v483 = vunpack.c.h.b16 %v462
      %v484 = vunpack.c.l.b16 %v463
      %v485 = vunpack.c.h.b16 %v463
      %v486 = vunpack.c.l.b16 %v464
      %v487 = vunpack.c.h.b16 %v464
      %v488 = vunpack.c.l.b16 %v465
      %v489 = vunpack.c.h.b16 %v465
      %v490 = vpack.c.b16 %v474, %v474
      %v491 = vpack.c.b16 %v475, %v475
      %v492 = vpack.c.b16 %v476, %v476
      %v493 = vpack.c.b16 %v477, %v477
      %v494 = vpack.c.b16 %v478, %v478
      %v495 = vpack.c.b16 %v479, %v479
      %v496 = vpack.c.b16 %v480, %v480
      %v497 = vpack.c.b16 %v481, %v481
      %v498 = vpack.c.b16 %v482, %v482
      %v499 = vpack.c.b16 %v483, %v483
      %v500 = vpack.c.b16 %v484, %v484
      %v501 = vpack.c.b16 %v485, %v485
      %v502 = vpack.c.b16 %v486, %v486
      %v503 = vpack.c.b16 %v487, %v487
      %v504 = vpack.c.b16 %v488, %v488
      %v505 = vpack.c.b16 %v489, %v489
      %vm522 = vcmask 60416
      %523 = vst.msk [vmem:[%s235] sm:$0xf] %vm522, %v490
      %524 = vst.msk [vmem:[%s235 + $0x4] sm:$0xf] %vm522, %v491
      %525 = vst.msk [vmem:[%s235 + $0x8] sm:$0xf] %vm522, %v492
      %526 = vst.msk [vmem:[%s235 + $0xc] sm:$0xf] %vm522, %v493
      %527 = vst.msk [vmem:[%s235 + $0x10] sm:$0xf] %vm522, %v494
      %528 = vst.msk [vmem:[%s235 + $0x14] sm:$0xf] %vm522, %v495
      %529 = vst.msk [vmem:[%s235 + $0x18] sm:$0xf] %vm522, %v496
      %530 = vst.msk [vmem:[%s235 + $0x1c] sm:$0xf] %vm522, %v497
      %531 = vst.msk [vmem:[%s235 + $0x20] sm:$0xf] %vm522, %v498
      %532 = vst.msk [vmem:[%s235 + $0x24] sm:$0xf] %vm522, %v499
      %533 = vst.msk [vmem:[%s235 + $0x28] sm:$0xf] %vm522, %v500
      %534 = vst.msk [vmem:[%s235 + $0x2c] sm:$0xf] %vm522, %v501
      %535 = vst.msk [vmem:[%s235 + $0x30] sm:$0xf] %vm522, %v502
      %536 = vst.msk [vmem:[%s235 + $0x34] sm:$0xf] %vm522, %v503
      %537 = vst.msk [vmem:[%s235 + $0x38] sm:$0xf] %vm522, %v504
      %538 = vst.msk [vmem:[%s235 + $0x3c] sm:$0xf] %vm522, %v505
      %539 = vmatprep.subr.mxu0 0.0
      %540 = vmatpush1.msra.mxu0 %v396
      %541 = vmatprep.subr.mxu0 0.0
      %542 = vmatpush1.msra.mxu0 %v399
      %543 = vmatprep.subr.mxu0 0.0
      %544 = vmatpush1.msra.mxu0 %v404
      %545 = vmatprep.subr.mxu0 0.0
      %546 = vmatpush1.msra.mxu0 %v407
      %547 = vmatprep.subr.mxu0 0.0
      %548 = vmatpush1.msra.mxu0 %v412
      %549 = vmatprep.subr.mxu0 0.0
      %550 = vmatpush1.msra.mxu0 %v415
      %551 = vmatprep.subr.mxu0 0.0
      %552 = vmatpush1.msra.mxu0 %v420
      %553 = vmatprep.subr.mxu0 0.0
      %554 = vmatpush1.msra.mxu0 %v423
      %555 = vmatprep.subr.mxu0 0.0
      %556 = vmatpush1.msra.mxu0 %v428
      %557 = vmatprep.subr.mxu0 0.0
      %558 = vmatpush1.msra.mxu0 %v431
      %559 = vmatprep.subr.mxu0 0.0
      %560 = vmatpush1.msra.mxu0 %v436
      %561 = vmatprep.subr.mxu0 0.0
      %562 = vmatpush1.msra.mxu0 %v439
      %563 = vmatprep.subr.mxu0 0.0
      %564 = vmatpush1.msra.mxu0 %v444
      %565 = vmatprep.subr.mxu0 0.0
      %566 = vmatpush1.msra.mxu0 %v447
      %567 = vmatprep.subr.mxu0 0.0
      %568 = vmatpush1.msra.mxu0 %v452
      %569 = vmatprep.subr.mxu0 0.0
      %570 = vmatpush1.msra.mxu0 %v455
      %571 = vmatprep.subr.mxu0 0.0
      %572 = vmatpush1.msra.mxu0 0.0
      %573 = vmatprep.subr.mxu0 0.0
      %574 = vmatpush1.msra.mxu0 0.0
      %575 = vmatprep.subr.mxu0 0.0
      %576 = vmatpush1.msra.mxu0 0.0
      %577 = vmatprep.subr.mxu0 0.0
      %578 = vmatpush1.msra.mxu0 0.0
      %579 = vmatprep.subr.mxu0 0.0
      %580 = vmatpush1.msra.mxu0 0.0
      %581 = vmatprep.subr.mxu0 0.0
      %582 = vmatpush1.msra.mxu0 0.0
      %583 = vmatprep.subr.mxu0 0.0
      %584 = vmatpush1.msra.mxu0 0.0
      %585 = vmatprep.subr.mxu0 0.0
      %586 = vmatpush1.msra.mxu0 0.0
      %587 = vmatprep.subr.mxu0 0.0
      %588 = vmatpush1.msra.mxu0 0.0
      %589 = vmatprep.subr.mxu0 0.0
      %590 = vmatpush1.msra.mxu0 0.0
      %591 = vmatprep.subr.mxu0 0.0
      %592 = vmatpush1.msra.mxu0 0.0
      %593 = vmatprep.subr.mxu0 0.0
      %594 = vmatpush1.msra.mxu0 0.0
      %595 = vmatprep.subr.mxu0 0.0
      %596 = vmatpush1.msra.mxu0 0.0
      %597 = vmatprep.subr.mxu0 0.0
      %598 = vmatpush1.msra.mxu0 0.0
      %599 = vmatprep.subr.mxu0 0.0
      %600 = vmatpush1.msra.mxu0 0.0
      %601 = vmatprep.subr.mxu0 0.0
      %602 = vmatpush1.msra.mxu0 0.0
      %603 = vmatprep.mubr.f32.mxu0 0.0
      %604 = vmatmul.mubr.f32.gmra.mrb[0].mxu0 1.0
      %v605 = vpop.f32.mrb[0].mxu0
      %v606 = vadd.f32 0.0, %v605
      %v607 = vpop.f32.mrb[0].mxu0
      %608 = vdwg.mxu0
      %v609 = vmul.f32 %v396, %v396
      %v610 = vmul.f32 %v399, %v399
      %v611 = vmul.f32 %v404, %v404
      %v612 = vmul.f32 %v407, %v407
      %v613 = vmul.f32 %v412, %v412
      %v614 = vmul.f32 %v415, %v415
      %v615 = vmul.f32 %v420, %v420
      %v616 = vmul.f32 %v423, %v423
      %v617 = vmul.f32 %v428, %v428
      %v618 = vmul.f32 %v431, %v431
      %v619 = vmul.f32 %v436, %v436
      %v620 = vmul.f32 %v439, %v439
      %v621 = vmul.f32 %v444, %v444
      %v622 = vmul.f32 %v447, %v447
      %v623 = vmul.f32 %v452, %v452
      %v624 = vmul.f32 %v455, %v455
      %625 = vmatprep.subr.mxu0 0.0
      %626 = vmatpush1.msra.mxu0 %v609
      %627 = vmatprep.subr.mxu0 0.0
      %628 = vmatpush1.msra.mxu0 %v610
      %629 = vmatprep.subr.mxu0 0.0
      %630 = vmatpush1.msra.mxu0 %v611
      %631 = vmatprep.subr.mxu0 0.0
      %632 = vmatpush1.msra.mxu0 %v612
      %633 = vmatprep.subr.mxu0 0.0
      %634 = vmatpush1.msra.mxu0 %v613
      %635 = vmatprep.subr.mxu0 0.0
      %636 = vmatpush1.msra.mxu0 %v614
      %637 = vmatprep.subr.mxu0 0.0
      %638 = vmatpush1.msra.mxu0 %v615
      %639 = vmatprep.subr.mxu0 0.0
      %640 = vmatpush1.msra.mxu0 %v616
      %641 = vmatprep.subr.mxu0 0.0
      %642 = vmatpush1.msra.mxu0 %v617
      %643 = vmatprep.subr.mxu0 0.0
      %644 = vmatpush1.msra.mxu0 %v618
      %645 = vmatprep.subr.mxu0 0.0
      %646 = vmatpush1.msra.mxu0 %v619
      %647 = vmatprep.subr.mxu0 0.0
      %648 = vmatpush1.msra.mxu0 %v620
      %649 = vmatprep.subr.mxu0 0.0
      %650 = vmatpush1.msra.mxu0 %v621
      %651 = vmatprep.subr.mxu0 0.0
      %652 = vmatpush1.msra.mxu0 %v622
      %653 = vmatprep.subr.mxu0 0.0
      %654 = vmatpush1.msra.mxu0 %v623
      %655 = vmatprep.subr.mxu0 0.0
      %656 = vmatpush1.msra.mxu0 %v624
      %657 = vmatprep.subr.mxu0 0.0
      %658 = vmatpush1.msra.mxu0 0.0
      %659 = vmatprep.subr.mxu0 0.0
      %660 = vmatpush1.msra.mxu0 0.0
      %661 = vmatprep.subr.mxu0 0.0
      %662 = vmatpush1.msra.mxu0 0.0
      %663 = vmatprep.subr.mxu0 0.0
      %664 = vmatpush1.msra.mxu0 0.0
      %665 = vmatprep.subr.mxu0 0.0
      %666 = vmatpush1.msra.mxu0 0.0
      %667 = vmatprep.subr.mxu0 0.0
      %668 = vmatpush1.msra.mxu0 0.0
      %669 = vmatprep.subr.mxu0 0.0
      %670 = vmatpush1.msra.mxu0 0.0
      %671 = vmatprep.subr.mxu0 0.0
      %672 = vmatpush1.msra.mxu0 0.0
      %673 = vmatprep.subr.mxu0 0.0
      %674 = vmatpush1.msra.mxu0 0.0
      %675 = vmatprep.subr.mxu0 0.0
      %676 = vmatpush1.msra.mxu0 0.0
      %677 = vmatprep.subr.mxu0 0.0
      %678 = vmatpush1.msra.mxu0 0.0
      %679 = vmatprep.subr.mxu0 0.0
      %680 = vmatpush1.msra.mxu0 0.0
      %681 = vmatprep.subr.mxu0 0.0
      %682 = vmatpush1.msra.mxu0 0.0
      %683 = vmatprep.subr.mxu0 0.0
      %684 = vmatpush1.msra.mxu0 0.0
      %685 = vmatprep.subr.mxu0 0.0
      %686 = vmatpush1.msra.mxu0 0.0
      %687 = vmatprep.subr.mxu0 0.0
      %688 = vmatpush1.msra.mxu0 0.0
      %689 = vmatprep.mubr.f32.mxu0 0.0
      %690 = vmatmul.mubr.f32.gmra.mrb[0].mxu0 1.0
      %v691 = vpop.f32.mrb[0].mxu0
      %v692 = vadd.f32 0.0, %v691
      %v693 = vpop.f32.mrb[0].mxu0
      %694 = vdwg.mxu0
      %v695 = vld [vmem:[#allocation2] sm:$0x3]
      %v697 = vrot.slane %v692, 7
      %vm699 = vcmask 1040384
      %v700 = vsel %vm699, %v606, %v697
      %v701 = vadd.f32 %v695, %v700
      %vm702 = vcmask 58368
      %703 = vst.msk [vmem:[#allocation2] sm:$0x3] %vm702, %v701
      // Predicated region
      $region33: #{dc_generator_forward.13} parent=27 // pred_check
        %p704 = pneg %p242
      $region34: #{dc_generator_forward.13} parent=27 // pred_check_branch
        %706 = sbr.rel (%p704) target = $region36
      $region35: #{dc_generator_forward.13} parent=27 // pred_region
        %v707 = vld [vmem:[#allocation2] sm:$0x3]
        %708 = vst.msk [vmem:[%s240] sm:$0x3] %vm702, %v707
      $region36: #{dc_generator_forward.13} parent=27 // pred_fallthru
        _
      %s709 = smul.u32 16, %s20
      %p710 = scmp.lt.s32.totalorder %s19, 3
      %s711 = scalar_select %p710, %s19, 3
      %p712 = scmp.lt.s32.totalorder %s709, 15
      %s713 = scalar_select %p712, %s709, 15
      %s714 = smul.addr %s711, 16
      %s715 = sadd.s32 %s713, %s714
      %s716 = smul.addr %s715, 4
      %s717 = scalar_lea.vmem %s2, %s716
      %p718 = scmp.lt.s32.totalorder %s19, 3
      %s719 = scalar_select %p718, %s19, 3
      %s720 = smul.addr %s719, 2
      %s721 = scalar_lea.vmem %s3, %s720
      // Predicated region
      $region37: #{dc_generator_forward.13} parent=27 // pred_check
        %p722 = pneg %p101
      $region38: #{dc_generator_forward.13} parent=27 // pred_check_branch
        %724 = sbr.rel (%p722) target = $region40
      $region39: #{dc_generator_forward.13} parent=27 // pred_region
        %s725 = smul.u32 16, %s20
      $region40: #{dc_generator_forward.13} parent=27 // pred_fallthru
        _
      // Predicated region
      $region41: #{dc_generator_forward.13} parent=27 // pred_check
        %p726 = pneg %p127
      $region42: #{dc_generator_forward.13} parent=27 // pred_check_branch
        %728 = sbr.rel (%p726) target = $region44
      $region43: #{dc_generator_forward.13} parent=27 // pred_region
        _
      $region44: #{dc_generator_forward.13} parent=27 // pred_fallthru
        _
    $region28: #{dc_generator_forward.13} parent=5 // pred_fallthru
      _
    %p729 = scmp.le.s32.totalorder 2, %s10
    // Predicated region
    $region45: #{dc_generator_forward.13} parent=5 // pred_check
      %p730 = pneg %p729
    $region46: #{dc_generator_forward.13} parent=5 // pred_check_branch
      %732 = sbr.rel (%p730) target = $region48
    $region47: #{dc_generator_forward.13} parent=5 // pred_region
      %s733 = ssub.s32 %s10, 2
      // Predicated region
      $region49: #{dc_generator_forward.13} parent=47 // pred_check
        %p734 = pneg %p107
      $region50: #{dc_generator_forward.13} parent=47 // pred_check_branch
        %736 = sbr.rel (%p734) target = $region52
      $region51: #{dc_generator_forward.13} parent=47 // pred_region
        %s737 = smul.u32 16, %s22
        %p738 = scmp.lt.s32.totalorder %s21, 3
        %s739 = scalar_select %p738, %s21, 3
        %p740 = scmp.lt.s32.totalorder %s737, 15
        %s741 = scalar_select %p740, %s737, 15
        %s742 = smul.addr %s739, 16
        %s743 = sadd.s32 %s741, %s742
        %s744 = smul.addr %s743, 4
        %s745 = scalar_lea.vmem %s2, %s744
      $region52: #{dc_generator_forward.13} parent=47 // pred_fallthru
        _
      // Predicated region
      $region53: #{dc_generator_forward.13} parent=47 // pred_check
        %p746 = pneg %p133
      $region54: #{dc_generator_forward.13} parent=47 // pred_check_branch
        %748 = sbr.rel (%p746) target = $region56
      $region55: #{dc_generator_forward.13} parent=47 // pred_region
        %p749 = scmp.lt.s32.totalorder %s21, 3
        %s750 = scalar_select %p749, %s21, 3
        %s751 = smul.addr %s750, 2
        %s752 = scalar_lea.vmem %s3, %s751
      $region56: #{dc_generator_forward.13} parent=47 // pred_fallthru
        _
    $region48: #{dc_generator_forward.13} parent=5 // pred_fallthru
      _
  $region6: #{dc_generator_forward.13} parent=0 // loop_footer
    %s14 = sadd.s32 1, %s10
  $region7: #{dc_generator_forward.13} parent=0 // loop_footer_branch
    %9 = sbr.rel target = $region3
  $region8: #{dc_generator_forward.13} parent=0 // loop_exit
    _

// kernel: tile.95
$region0: #{tile.95}
  %s0 = inlined_call_operand.vmem [shape: f32[2,32,4], index: 0, kind: input, shape index: {}]
  %s1 = inlined_call_operand.vmem [shape: f32[2,128], index: 1, kind: output, shape index: {}]
  $region1: #{tile.95} parent=0
    #allocation0 [shape = 'u8[4096]{0}', space=vmem, size = 0x1000, scoped, tag = 'scoped mem for output reshape']
    %v2 = vld [vmem:[%s0] sm:$0x1]
    %s3 = scalar_lea.vmem %s0, 31
    %v4 = vld [vmem:[%s3] sm:$0x2]
    %vm5 = vcmask 1041409
    %v6 = vsel %vm5, %v4, %v2
    %vm7 = vcmask 31744
    %8 = vst.msk [vmem:[#allocation0] sm:$0x3] %vm7, %v6
    %s9 = scalar_lea.vmem %s0, 31
    %v10 = vld [vmem:[%s9] sm:$0x1]
    %s11 = scalar_lea.vmem %s0, 62
    %v12 = vld [vmem:[%s11] sm:$0x2]
    %vm13 = vcmask 1041409
    %v14 = vsel %vm13, %v12, %v10
    %15 = vrot.lane.b32.xlu0 %v14, 124
    %v16 = vpop.permute.xlu0 %15
    %vm17 = vcmask 1048544
    %18 = vst.msk [vmem:[#allocation0] sm:$0x3] %vm17, %v16
    %s19 = scalar_lea.vmem %s0, 30
    %v20 = vld [vmem:[%s19] sm:$0x1]
    %s21 = scalar_lea.vmem %s0, 61
    %v22 = vld [vmem:[%s21] sm:$0x2]
    %vm23 = vcmask 1041409
    %v24 = vsel %vm23, %v22, %v20
    %25 = vrot.lane.b32.xlu0 %v24, 120
    %v26 = vpop.permute.xlu0 %25
    %vm27 = vcmask 1015744
    %28 = vst.msk [vmem:[#allocation0] sm:$0x3] %vm27, %v26
    %s29 = scalar_lea.vmem %s0, 29
    %v30 = vld [vmem:[%s29] sm:$0x1]
    %s31 = scalar_lea.vmem %s0, 60
    %v32 = vld [vmem:[%s31] sm:$0x2]
    %vm33 = vcmask 1041409
    %v34 = vsel %vm33, %v32, %v30
    %35 = vrot.lane.b32.xlu0 %v34, 116
    %v36 = vpop.permute.xlu0 %35
    %vm37 = vcmask 982944
    %38 = vst.msk [vmem:[#allocation0] sm:$0x3] %vm37, %v36
    %s39 = scalar_lea.vmem %s0, 28
    %v40 = vld [vmem:[%s39] sm:$0x1]
    %s41 = scalar_lea.vmem %s0, 59
    %v42 = vld [vmem:[%s41] sm:$0x2]
    %vm43 = vcmask 1041409
    %v44 = vsel %vm43, %v42, %v40
    %45 = vrot.lane.b32.xlu0 %v44, 112
    %v46 = vpop.permute.xlu0 %45
    %vm47 = vcmask 950144
    %48 = vst.msk [vmem:[#allocation0] sm:$0x3] %vm47, %v46
    %s49 = scalar_lea.vmem %s0, 27
    %v50 = vld [vmem:[%s49] sm:$0x1]
    %s51 = scalar_lea.vmem %s0, 58
    %v52 = vld [vmem:[%s51] sm:$0x2]
    %vm53 = vcmask 1041409
    %v54 = vsel %vm53, %v52, %v50
    %55 = vrot.lane.b32.xlu0 %v54, 108
    %v56 = vpop.permute.xlu0 %55
    %vm57 = vcmask 917344
    %58 = vst.msk [vmem:[#allocation0] sm:$0x3] %vm57, %v56
    %s59 = scalar_lea.vmem %s0, 26
    %v60 = vld [vmem:[%s59] sm:$0x1]
    %s61 = scalar_lea.vmem %s0, 57
    %v62 = vld [vmem:[%s61] sm:$0x2]
    %vm63 = vcmask 1041409
    %v64 = vsel %vm63, %v62, %v60
    %65 = vrot.lane.b32.xlu0 %v64, 104
    %v66 = vpop.permute.xlu0 %65
    %vm67 = vcmask 884544
    %68 = vst.msk [vmem:[#allocation0] sm:$0x3] %vm67, %v66
    %s69 = scalar_lea.vmem %s0, 25
    %v70 = vld [vmem:[%s69] sm:$0x1]
    %s71 = scalar_lea.vmem %s0, 56
    %v72 = vld [vmem:[%s71] sm:$0x2]
    %vm73 = vcmask 1041409
    %v74 = vsel %vm73, %v72, %v70
    %75 = vrot.lane.b32.xlu0 %v74, 100
    %v76 = vpop.permute.xlu0 %75
    %vm77 = vcmask 851744
    %78 = vst.msk [vmem:[#allocation0] sm:$0x3] %vm77, %v76
    %s79 = scalar_lea.vmem %s0, 24
    %v80 = vld [vmem:[%s79] sm:$0x1]
    %s81 = scalar_lea.vmem %s0, 55
    %v82 = vld [vmem:[%s81] sm:$0x2]
    %vm83 = vcmask 1041409
    %v84 = vsel %vm83, %v82, %v80
    %85 = vrot.lane.b32.xlu0 %v84, 96
    %v86 = vpop.permute.xlu0 %85
    %vm87 = vcmask 818944
    %88 = vst.msk [vmem:[#allocation0] sm:$0x3] %vm87, %v86
    %s89 = scalar_lea.vmem %s0, 23
    %v90 = vld [vmem:[%s89] sm:$0x1]
    %s91 = scalar_lea.vmem %s0, 54
    %v92 = vld [vmem:[%s91] sm:$0x2]
    %vm93 = vcmask 1041409
    %v94 = vsel %vm93, %v92, %v90
    %95 = vrot.lane.b32.xlu0 %v94, 92
    %v96 = vpop.permute.xlu0 %95
    %vm97 = vcmask 786144
    %98 = vst.msk [vmem:[#allocation0] sm:$0x3] %vm97, %v96
    %s99 = scalar_lea.vmem %s0, 22
    %v100 = vld [vmem:[%s99] sm:$0x1]
    %s101 = scalar_lea.vmem %s0, 53
    %v102 = vld [vmem:[%s101] sm:$0x2]
    %vm103 = vcmask 1041409
    %v104 = vsel %vm103, %v102, %v100
    %105 = vrot.lane.b32.xlu0 %v104, 88
    %v106 = vpop.permute.xlu0 %105
    %vm107 = vcmask 753344
    %108 = vst.msk [vmem:[#allocation0] sm:$0x3] %vm107, %v106
    %s109 = scalar_lea.vmem %s0, 21
    %v110 = vld [vmem:[%s109] sm:$0x1]
    %s111 = scalar_lea.vmem %s0, 52
    %v112 = vld [vmem:[%s111] sm:$0x2]
    %vm113 = vcmask 1041409
    %v114 = vsel %vm113, %v112, %v110
    %115 = vrot.lane.b32.xlu0 %v114, 84
    %v116 = vpop.permute.xlu0 %115
    %vm117 = vcmask 720544
    %118 = vst.msk [vmem:[#allocation0] sm:$0x3] %vm117, %v116
    %s119 = scalar_lea.vmem %s0, 20
    %v120 = vld [vmem:[%s119] sm:$0x1]
    %s121 = scalar_lea.vmem %s0, 51
    %v122 = vld [vmem:[%s121] sm:$0x2]
    %vm123 = vcmask 1041409
    %v124 = vsel %vm123, %v122, %v120
    %125 = vrot.lane.b32.xlu0 %v124, 80
    %v126 = vpop.permute.xlu0 %125
    %vm127 = vcmask 687744
    %128 = vst.msk [vmem:[#allocation0] sm:$0x3] %vm127, %v126
    %s129 = scalar_lea.vmem %s0, 19
    %v130 = vld [vmem:[%s129] sm:$0x1]
    %s131 = scalar_lea.vmem %s0, 50
    %v132 = vld [vmem:[%s131] sm:$0x2]
    %vm133 = vcmask 1041409
    %v134 = vsel %vm133, %v132, %v130
    %135 = vrot.lane.b32.xlu0 %v134, 76
    %v136 = vpop.permute.xlu0 %135
    %vm137 = vcmask 654944
    %138 = vst.msk [vmem:[#allocation0] sm:$0x3] %vm137, %v136
    %s139 = scalar_lea.vmem %s0, 18
    %v140 = vld [vmem:[%s139] sm:$0x1]
    %s141 = scalar_lea.vmem %s0, 49
    %v142 = vld [vmem:[%s141] sm:$0x2]
    %vm143 = vcmask 1041409
    %v144 = vsel %vm143, %v142, %v140
    %145 = vrot.lane.b32.xlu0 %v144, 72
    %v146 = vpop.permute.xlu0 %145
    %vm147 = vcmask 622144
    %148 = vst.msk [vmem:[#allocation0] sm:$0x3] %vm147, %v146
    %s149 = scalar_lea.vmem %s0, 17
    %v150 = vld [vmem:[%s149] sm:$0x1]
    %s151 = scalar_lea.vmem %s0, 48
    %v152 = vld [vmem:[%s151] sm:$0x2]
    %vm153 = vcmask 1041409
    %v154 = vsel %vm153, %v152, %v150
    %155 = vrot.lane.b32.xlu0 %v154, 68
    %v156 = vpop.permute.xlu0 %155
    %vm157 = vcmask 589344
    %158 = vst.msk [vmem:[#allocation0] sm:$0x3] %vm157, %v156
    %s159 = scalar_lea.vmem %s0, 16
    %v160 = vld [vmem:[%s159] sm:$0x1]
    %s161 = scalar_lea.vmem %s0, 47
    %v162 = vld [vmem:[%s161] sm:$0x2]
    %vm163 = vcmask 1041409
    %v164 = vsel %vm163, %v162, %v160
    %165 = vrot.lane.b32.xlu0 %v164, 64
    %v166 = vpop.permute.xlu0 %165
    %vm167 = vcmask 556544
    %168 = vst.msk [vmem:[#allocation0] sm:$0x3] %vm167, %v166
    %s169 = scalar_lea.vmem %s0, 15
    %v170 = vld [vmem:[%s169] sm:$0x1]
    %s171 = scalar_lea.vmem %s0, 46
    %v172 = vld [vmem:[%s171] sm:$0x2]
    %vm173 = vcmask 1041409
    %v174 = vsel %vm173, %v172, %v170
    %175 = vrot.lane.b32.xlu0 %v174, 60
    %v176 = vpop.permute.xlu0 %175
    %vm177 = vcmask 523744
    %178 = vst.msk [vmem:[#allocation0] sm:$0x3] %vm177, %v176
    %s179 = scalar_lea.vmem %s0, 14
    %v180 = vld [vmem:[%s179] sm:$0x1]
    %s181 = scalar_lea.vmem %s0, 45
    %v182 = vld [vmem:[%s181] sm:$0x2]
    %vm183 = vcmask 1041409
    %v184 = vsel %vm183, %v182, %v180
    %185 = vrot.lane.b32.xlu0 %v184, 56
    %v186 = vpop.permute.xlu0 %185
    %vm187 = vcmask 490944
    %188 = vst.msk [vmem:[#allocation0] sm:$0x3] %vm187, %v186
    %s189 = scalar_lea.vmem %s0, 13
    %v190 = vld [vmem:[%s189] sm:$0x1]
    %s191 = scalar_lea.vmem %s0, 44
    %v192 = vld [vmem:[%s191] sm:$0x2]
    %vm193 = vcmask 1041409
    %v194 = vsel %vm193, %v192, %v190
    %195 = vrot.lane.b32.xlu0 %v194, 52
    %v196 = vpop.permute.xlu0 %195
    %vm197 = vcmask 458144
    %198 = vst.msk [vmem:[#allocation0] sm:$0x3] %vm197, %v196
    %s199 = scalar_lea.vmem %s0, 12
    %v200 = vld [vmem:[%s199] sm:$0x1]
    %s201 = scalar_lea.vmem %s0, 43
    %v202 = vld [vmem:[%s201] sm:$0x2]
    %vm203 = vcmask 1041409
    %v204 = vsel %vm203, %v202, %v200
    %205 = vrot.lane.b32.xlu0 %v204, 48
    %v206 = vpop.permute.xlu0 %205
    %vm207 = vcmask 425344
    %208 = vst.msk [vmem:[#allocation0] sm:$0x3] %vm207, %v206
    %s209 = scalar_lea.vmem %s0, 11
    %v210 = vld [vmem:[%s209] sm:$0x1]
    %s211 = scalar_lea.vmem %s0, 42
    %v212 = vld [vmem:[%s211] sm:$0x2]
    %vm213 = vcmask 1041409
    %v214 = vsel %vm213, %v212, %v210
    %215 = vrot.lane.b32.xlu0 %v214, 44
    %v216 = vpop.permute.xlu0 %215
    %vm217 = vcmask 392544
    %218 = vst.msk [vmem:[#allocation0] sm:$0x3] %vm217, %v216
    %s219 = scalar_lea.vmem %s0, 10
    %v220 = vld [vmem:[%s219] sm:$0x1]
    %s221 = scalar_lea.vmem %s0, 41
    %v222 = vld [vmem:[%s221] sm:$0x2]
    %vm223 = vcmask 1041409
    %v224 = vsel %vm223, %v222, %v220
    %225 = vrot.lane.b32.xlu0 %v224, 40
    %v226 = vpop.permute.xlu0 %225
    %vm227 = vcmask 359744
    %228 = vst.msk [vmem:[#allocation0] sm:$0x3] %vm227, %v226
    %s229 = scalar_lea.vmem %s0, 9
    %v230 = vld [vmem:[%s229] sm:$0x1]
    %s231 = scalar_lea.vmem %s0, 40
    %v232 = vld [vmem:[%s231] sm:$0x2]
    %vm233 = vcmask 1041409
    %v234 = vsel %vm233, %v232, %v230
    %235 = vrot.lane.b32.xlu0 %v234, 36
    %v236 = vpop.permute.xlu0 %235
    %vm237 = vcmask 326944
    %238 = vst.msk [vmem:[#allocation0] sm:$0x3] %vm237, %v236
    %s239 = scalar_lea.vmem %s0, 8
    %v240 = vld [vmem:[%s239] sm:$0x1]
    %s241 = scalar_lea.vmem %s0, 39
    %v242 = vld [vmem:[%s241] sm:$0x2]
    %vm243 = vcmask 1041409
    %v244 = vsel %vm243, %v242, %v240
    %245 = vrot.lane.b32.xlu0 %v244, 32
    %v246 = vpop.permute.xlu0 %245
    %vm247 = vcmask 294144
    %248 = vst.msk [vmem:[#allocation0] sm:$0x3] %vm247, %v246
    %s249 = scalar_lea.vmem %s0, 7
    %v250 = vld [vmem:[%s249] sm:$0x1]
    %s251 = scalar_lea.vmem %s0, 38
    %v252 = vld [vmem:[%s251] sm:$0x2]
    %vm253 = vcmask 1041409
    %v254 = vsel %vm253, %v252, %v250
    %255 = vrot.lane.b32.xlu0 %v254, 28
    %v256 = vpop.permute.xlu0 %255
    %vm257 = vcmask 261344
    %258 = vst.msk [vmem:[#allocation0] sm:$0x3] %vm257, %v256
    %s259 = scalar_lea.vmem %s0, 6
    %v260 = vld [vmem:[%s259] sm:$0x1]
    %s261 = scalar_lea.vmem %s0, 37
    %v262 = vld [vmem:[%s261] sm:$0x2]
    %vm263 = vcmask 1041409
    %v264 = vsel %vm263, %v262, %v260
    %265 = vrot.lane.b32.xlu0 %v264, 24
    %v266 = vpop.permute.xlu0 %265
    %vm267 = vcmask 228544
    %268 = vst.msk [vmem:[#allocation0] sm:$0x3] %vm267, %v266
    %s269 = scalar_lea.vmem %s0, 5
    %v270 = vld [vmem:[%s269] sm:$0x1]
    %s271 = scalar_lea.vmem %s0, 36
    %v272 = vld [vmem:[%s271] sm:$0x2]
    %vm273 = vcmask 1041409
    %v274 = vsel %vm273, %v272, %v270
    %275 = vrot.lane.b32.xlu0 %v274, 20
    %v276 = vpop.permute.xlu0 %275
    %vm277 = vcmask 195744
    %278 = vst.msk [vmem:[#allocation0] sm:$0x3] %vm277, %v276
    %s279 = scalar_lea.vmem %s0, 4
    %v280 = vld [vmem:[%s279] sm:$0x1]
    %s281 = scalar_lea.vmem %s0, 35
    %v282 = vld [vmem:[%s281] sm:$0x2]
    %vm283 = vcmask 1041409
    %v284 = vsel %vm283, %v282, %v280
    %285 = vrot.lane.b32.xlu0 %v284, 16
    %v286 = vpop.permute.xlu0 %285
    %vm287 = vcmask 162944
    %288 = vst.msk [vmem:[#allocation0] sm:$0x3] %vm287, %v286
    %s289 = scalar_lea.vmem %s0, 3
    %v290 = vld [vmem:[%s289] sm:$0x1]
    %s291 = scalar_lea.vmem %s0, 34
    %v292 = vld [vmem:[%s291] sm:$0x2]
    %vm293 = vcmask 1041409
    %v294 = vsel %vm293, %v292, %v290
    %295 = vrot.lane.b32.xlu0 %v294, 12
    %v296 = vpop.permute.xlu0 %295
    %vm297 = vcmask 130144
    %298 = vst.msk [vmem:[#allocation0] sm:$0x3] %vm297, %v296
    %s299 = scalar_lea.vmem %s0, 2
    %v300 = vld [vmem:[%s299] sm:$0x1]
    %s301 = scalar_lea.vmem %s0, 33
    %v302 = vld [vmem:[%s301] sm:$0x2]
    %vm303 = vcmask 1041409
    %v304 = vsel %vm303, %v302, %v300
    %305 = vrot.lane.b32.xlu0 %v304, 8
    %v306 = vpop.permute.xlu0 %305
    %vm307 = vcmask 97344
    %308 = vst.msk [vmem:[#allocation0] sm:$0x3] %vm307, %v306
    %s309 = scalar_lea.vmem %s0, 1
    %v310 = vld [vmem:[%s309] sm:$0x1]
    %s311 = scalar_lea.vmem %s0, 32
    %v312 = vld [vmem:[%s311] sm:$0x2]
    %vm313 = vcmask 1041409
    %v314 = vsel %vm313, %v312, %v310
    %315 = vrot.lane.b32.xlu0 %v314, 4
    %v316 = vpop.permute.xlu0 %315
    %vm317 = vcmask 64544
    %318 = vst.msk [vmem:[#allocation0] sm:$0x3] %vm317, %v316
    %s320 = sshllo.u32 0, 2
    %v322 = vld [vmem:[#allocation0] sm:%s320]
    %s323 = sshllo.u32 0, 2
    %324 = vst [vmem:[%s1] sm:%s323] %v322

// kernel: dc_generator_forward.15
$region0: #{dc_generator_forward.15}
  #allocation0 [shape = 'u32[]', space=smem, size = 0x4, offset = 0x4, fixed_abs, tag = 'smem constant byte address 0x4 - core index']
  #allocation1 [shape = 'u32[144,128]{1,0:T(1,128)}', space=vmem, size = 0x12000, scoped, tag = 'internal scratch']
  #allocation2 [shape = 'f32[2,4]{1,0:T(2,128)}', space=vmem, size = 0x400, scoped, tag = 'scratch operand']
  %s0 = inlined_call_operand.vmem [shape: bf16[4,512,32], index: 0, kind: input, shape index: {}]
  %s1 = inlined_call_operand.vmem [shape: bf16[4,32,4], index: 1, kind: input, shape index: {}]
  %s2 = inlined_call_operand.vmem [shape: bf16[4,512,4], index: 2, kind: output, shape index: {0}]
  %s3 = inlined_call_operand.vmem [shape: f32[4,2,4], index: 3, kind: output, shape index: {1}]
  %4 = xla_tuple %s2, %s3
  %s5 = sld [smem:[#allocation0]]
  $region57: #{dc_generator_forward.15} parent=0
    _
  %s7 = ssub.s32 1, %s5
  %s8 = scalar_select 0, %s7, %s5
  loop: start=0, step=1, limit=6
  $region2: #{dc_generator_forward.15} parent=0 // loop_pre_header
    _
  $region3: #{dc_generator_forward.15} parent=0 // loop_header
    %s10 = sphi 0, %s14
    %p11 = scmp.ge.s32.totalorder %s10, 6
    %s17 = sphi 0, %s29
    %s18 = sphi 0, %s25
    %s19 = sphi 0, %s17
    %s20 = sphi 0, %s18
    %s21 = sphi 0, %s19
    %s22 = sphi 0, %s20
    %s34 = sphi 0, %s36
    %s37 = sphi 0, %s34
    %s38 = sphi 0, %s37
    %s54 = sphi 0, %s38
    %s60 = sphi 0, %s62
    %s63 = sphi 0, %s60
    %s64 = sphi 0, %s63
    %s80 = sphi 0, %s64
    %s88 = sphi 0, %s90
    %s91 = sphi 0, %s88
    %s92 = sphi 0, %s91
    %s108 = sphi 0, %s92
    %s114 = sphi 0, %s116
    %s117 = sphi 0, %s114
    %s118 = sphi 0, %s117
    %s134 = sphi 0, %s118
  $region4: #{dc_generator_forward.15} parent=0 // loop_header_branch
    %13 = sbr.rel (%p11) target = $region8
  $region5: #{dc_generator_forward.15} parent=0 // loop_body
    %s15 = ssub.s32 %s10, 1
    %s16 = ssub.s32 %s10, 2
    %s23 = sadd.s32 1, %s18
    %p24 = scmp.ge.s32.totalorder %s23, 1
    %s25 = scalar_select %p24, 0, %s23
    %s26 = sadd.s32 1, %s17
    %s27 = scalar_select %p24, %s26, %s17
    %p28 = scmp.ge.s32.totalorder %s27, 4
    %s29 = scalar_select %p28, 0, %s27
    %s30 = ssub.s32 %s17, %s29
    %s31 = ssub.s32 %s18, %s25
    %s32 = sor.u32 %s30, %s31
    %p33 = scmp.eq.s32.totalorder %s32, 0
    %s35 = sadd.s32 %s34, 1
    %s36 = scalar_select %p33, %s34, %s35
    %p39 = pneg %p33
    %p40 = scmp.eq.s32.totalorder %s10, 3
    %p41 = por %p39, %p40
    %p42 = scmp.ne.s32.totalorder %s34, %s37
    %p43 = scmp.eq.s32.totalorder %s10, 0
    %p44 = por %p42, %p43
    %p45 = scmp.ne.s32.totalorder %s34, %s37
    %p46 = scmp.eq.s32.totalorder %s15, 3
    %p47 = por %p45, %p46
    %p48 = scmp.ne.s32.totalorder %s37, %s38
    %p49 = scmp.eq.s32.totalorder %s15, 0
    %p50 = por %p48, %p49
    %p51 = scmp.ne.s32.totalorder %s37, %s38
    %p52 = scmp.eq.s32.totalorder %s16, 3
    %p53 = por %p51, %p52
    %p55 = scmp.ne.s32.totalorder %s38, %s54
    %p56 = scmp.eq.s32.totalorder %s16, 0
    %p57 = por %p55, %p56
    %s58 = ssub.s32 %s17, %s29
    %p59 = scmp.eq.s32.totalorder %s58, 0
    %s61 = sadd.s32 %s60, 1
    %s62 = scalar_select %p59, %s60, %s61
    %p65 = pneg %p59
    %p66 = scmp.eq.s32.totalorder %s10, 3
    %p67 = por %p65, %p66
    %p68 = scmp.ne.s32.totalorder %s60, %s63
    %p69 = scmp.eq.s32.totalorder %s10, 0
    %p70 = por %p68, %p69
    %p71 = scmp.ne.s32.totalorder %s60, %s63
    %p72 = scmp.eq.s32.totalorder %s15, 3
    %p73 = por %p71, %p72
    %p74 = scmp.ne.s32.totalorder %s63, %s64
    %p75 = scmp.eq.s32.totalorder %s15, 0
    %p76 = por %p74, %p75
    %p77 = scmp.ne.s32.totalorder %s63, %s64
    %p78 = scmp.eq.s32.totalorder %s16, 3
    %p79 = por %p77, %p78
    %p81 = scmp.ne.s32.totalorder %s64, %s80
    %p82 = scmp.eq.s32.totalorder %s16, 0
    %p83 = por %p81, %p82
    %s84 = ssub.s32 %s17, %s29
    %s85 = ssub.s32 %s18, %s25
    %s86 = sor.u32 %s84, %s85
    %p87 = scmp.eq.s32.totalorder %s86, 0
    %s89 = sadd.s32 %s88, 1
    %s90 = scalar_select %p87, %s88, %s89
    %p93 = pneg %p87
    %p94 = scmp.eq.s32.totalorder %s10, 3
    %p95 = por %p93, %p94
    %p96 = scmp.ne.s32.totalorder %s88, %s91
    %p97 = scmp.eq.s32.totalorder %s10, 0
    %p98 = por %p96, %p97
    %p99 = scmp.ne.s32.totalorder %s88, %s91
    %p100 = scmp.eq.s32.totalorder %s15, 3
    %p101 = por %p99, %p100
    %p102 = scmp.ne.s32.totalorder %s91, %s92
    %p103 = scmp.eq.s32.totalorder %s15, 0
    %p104 = por %p102, %p103
    %p105 = scmp.ne.s32.totalorder %s91, %s92
    %p106 = scmp.eq.s32.totalorder %s16, 3
    %p107 = por %p105, %p106
    %p109 = scmp.ne.s32.totalorder %s92, %s108
    %p110 = scmp.eq.s32.totalorder %s16, 0
    %p111 = por %p109, %p110
    %s112 = ssub.s32 %s17, %s29
    %p113 = scmp.eq.s32.totalorder %s112, 0
    %s115 = sadd.s32 %s114, 1
    %s116 = scalar_select %p113, %s114, %s115
    %p119 = pneg %p113
    %p120 = scmp.eq.s32.totalorder %s10, 3
    %p121 = por %p119, %p120
    %p122 = scmp.ne.s32.totalorder %s114, %s117
    %p123 = scmp.eq.s32.totalorder %s10, 0
    %p124 = por %p122, %p123
    %p125 = scmp.ne.s32.totalorder %s114, %s117
    %p126 = scmp.eq.s32.totalorder %s15, 3
    %p127 = por %p125, %p126
    %p128 = scmp.ne.s32.totalorder %s117, %s118
    %p129 = scmp.eq.s32.totalorder %s15, 0
    %p130 = por %p128, %p129
    %p131 = scmp.ne.s32.totalorder %s117, %s118
    %p132 = scmp.eq.s32.totalorder %s16, 3
    %p133 = por %p131, %p132
    %p135 = scmp.ne.s32.totalorder %s118, %s134
    %p136 = scmp.eq.s32.totalorder %s16, 0
    %p137 = por %p135, %p136
    %p138 = scmp.le.s32.totalorder 1, %s10
    %p139 = scmp.lt.s32.totalorder %s10, 5
    %p140 = pnand %p138, %p139
    %p141 = pneg %p140
    // Predicated region
    $region9: #{dc_generator_forward.15} parent=5 // pred_check
      _
    $region10: #{dc_generator_forward.15} parent=5 // pred_check_branch
      %143 = sbr.rel (%p140) target = $region12
    $region11: #{dc_generator_forward.15} parent=5 // pred_region
      %s144 = ssub.s32 %s10, 1
    $region12: #{dc_generator_forward.15} parent=5 // pred_fallthru
      _
    %p145 = scmp.lt.s32.totalorder %s10, 4
    // Predicated region
    $region13: #{dc_generator_forward.15} parent=5 // pred_check
      %p146 = pneg %p145
    $region14: #{dc_generator_forward.15} parent=5 // pred_check_branch
      %148 = sbr.rel (%p146) target = $region16
    $region15: #{dc_generator_forward.15} parent=5 // pred_region
      // Predicated region
      $region17: #{dc_generator_forward.15} parent=15 // pred_check
        %p149 = pneg %p44
      $region18: #{dc_generator_forward.15} parent=15 // pred_check_branch
        %151 = sbr.rel (%p149) target = $region20
      $region19: #{dc_generator_forward.15} parent=15 // pred_region
        %s152 = smul.u32 64, %s18
        %p153 = scmp.lt.s32.totalorder %s17, 3
        %s154 = scalar_select %p153, %s17, 3
        %p155 = scmp.lt.s32.totalorder %s152, 63
        %s156 = scalar_select %p155, %s152, 63
        %s157 = smul.addr %s154, 64
        %s158 = sadd.s32 %s156, %s157
        %s159 = smul.addr %s158, 4
        %s160 = scalar_lea.vmem %s0, %s159
        %s161 = smul.u32 64, %s18
      $region20: #{dc_generator_forward.15} parent=15 // pred_fallthru
        _
      // Predicated region
      $region21: #{dc_generator_forward.15} parent=15 // pred_check
        %p162 = pneg %p70
      $region22: #{dc_generator_forward.15} parent=15 // pred_check_branch
        %164 = sbr.rel (%p162) target = $region24
      $region23: #{dc_generator_forward.15} parent=15 // pred_region
        %p165 = scmp.lt.s32.totalorder %s17, 3
        %s166 = scalar_select %p165, %s17, 3
        %s167 = smul.addr %s166, 4
        %s168 = smul.addr %s167, 4
        %s169 = scalar_lea.vmem %s1, %s168
      $region24: #{dc_generator_forward.15} parent=15 // pred_fallthru
        _
    $region16: #{dc_generator_forward.15} parent=5 // pred_fallthru
      _
    %p170 = scmp.le.s32.totalorder 1, %s10
    %p171 = scmp.lt.s32.totalorder %s10, 5
    %p172 = pnand %p170, %p171
    %p173 = pneg %p172
    // Predicated region
    $region25: #{dc_generator_forward.15} parent=5 // pred_check
      _
    $region26: #{dc_generator_forward.15} parent=5 // pred_check_branch
      %175 = sbr.rel (%p172) target = $region28
    $region27: #{dc_generator_forward.15} parent=5 // pred_region
      %s176 = ssub.s32 %s10, 1
      %s177 = smul.u32 64, %s20
      %p178 = scmp.lt.s32.totalorder %s19, 3
      %s179 = scalar_select %p178, %s19, 3
      %p180 = scmp.lt.s32.totalorder %s177, 63
      %s181 = scalar_select %p180, %s177, 63
      %s182 = smul.addr %s179, 64
      %s183 = sadd.s32 %s181, %s182
      %s184 = smul.addr %s183, 4
      %s185 = scalar_lea.vmem %s0, %s184
      %p186 = pneg %p50
      %p187 = pneg %p47
      %p188 = scmp.lt.s32.totalorder %s19, 3
      %s189 = scalar_select %p188, %s19, 3
      %s190 = smul.addr %s189, 4
      %s191 = smul.addr %s190, 4
      %s192 = scalar_lea.vmem %s1, %s191
      %p193 = pneg %p76
      %p194 = pneg %p73
      %p195 = pneg %p104
      %p196 = pneg %p101
      %s197 = smul.u32 64, %s20
      %p198 = scmp.lt.s32.totalorder %s19, 3
      %s199 = scalar_select %p198, %s19, 3
      %p200 = scmp.lt.s32.totalorder %s197, 63
      %s201 = scalar_select %p200, %s197, 63
      %s202 = smul.addr %s199, 64
      %s203 = sadd.s32 %s201, %s202
      %s204 = smul.addr %s203, 4
      %s205 = scalar_lea.vmem %s2, %s204
      %p206 = pneg %p130
      %p207 = pneg %p127
      %p208 = scmp.lt.s32.totalorder %s19, 3
      %s209 = scalar_select %p208, %s19, 3
      %s210 = smul.addr %s209, 2
      %s211 = scalar_lea.vmem %s3, %s210
      %s212 = smul.u32 64, %s20
      %p213 = scmp.lt.s32.totalorder %s19, 3
      %s214 = scalar_select %p213, %s19, 3
      %p215 = scmp.lt.s32.totalorder %s212, 63
      %s216 = scalar_select %p215, %s212, 63
      %s217 = smul.addr %s214, 64
      %s218 = sadd.s32 %s216, %s217
      %s219 = smul.addr %s218, 4
      %s220 = scalar_lea.vmem %s0, %s219
      %s221 = smul.u32 64, %s20
      %p222 = scmp.lt.s32.totalorder %s19, 3
      %s223 = scalar_select %p222, %s19, 3
      %s224 = smul.addr %s223, 4
      %s225 = smul.addr %s224, 4
      %s226 = scalar_lea.vmem %s1, %s225
      %s227 = smul.u32 64, %s20
      %p228 = scmp.lt.s32.totalorder %s19, 3
      %s229 = scalar_select %p228, %s19, 3
      %p230 = scmp.lt.s32.totalorder %s227, 63
      %s231 = scalar_select %p230, %s227, 63
      %s232 = smul.addr %s229, 64
      %s233 = sadd.s32 %s231, %s232
      %s234 = smul.addr %s233, 4
      %s235 = scalar_lea.vmem %s2, %s234
      %s236 = smul.u32 64, %s20
      %p237 = scmp.lt.s32.totalorder %s19, 3
      %s238 = scalar_select %p237, %s19, 3
      %s239 = smul.addr %s238, 2
      %s240 = scalar_lea.vmem %s3, %s239
      %p242 = scmp.eq.s32.totalorder %s20, 0
      // Predicated region
      $region29: #{dc_generator_forward.15} parent=27 // pred_check
        %p243 = pneg %p242
      $region30: #{dc_generator_forward.15} parent=27 // pred_check_branch
        %245 = sbr.rel (%p243) target = $region32
      $region31: #{dc_generator_forward.15} parent=27 // pred_region
        %vm246 = vcmask 25600
        %247 = vst.msk [vmem:[#allocation2] sm:$0x3] %vm246, 0.0
      $region32: #{dc_generator_forward.15} parent=27 // pred_fallthru
        _
      %v248 = vld [vmem:[%s220] sm:$0xf]
      %v249 = vld [vmem:[%s220 + $0x4] sm:$0xf]
      %v250 = vld [vmem:[%s220 + $0x8] sm:$0xf]
      %v251 = vld [vmem:[%s220 + $0xc] sm:$0xf]
      %v252 = vld [vmem:[%s220 + $0x10] sm:$0xf]
      %v253 = vld [vmem:[%s220 + $0x14] sm:$0xf]
      %v254 = vld [vmem:[%s220 + $0x18] sm:$0xf]
      %v255 = vld [vmem:[%s220 + $0x1c] sm:$0xf]
      %v256 = vld [vmem:[%s220 + $0x20] sm:$0xf]
      %v257 = vld [vmem:[%s220 + $0x24] sm:$0xf]
      %v258 = vld [vmem:[%s220 + $0x28] sm:$0xf]
      %v259 = vld [vmem:[%s220 + $0x2c] sm:$0xf]
      %v260 = vld [vmem:[%s220 + $0x30] sm:$0xf]
      %v261 = vld [vmem:[%s220 + $0x34] sm:$0xf]
      %v262 = vld [vmem:[%s220 + $0x38] sm:$0xf]
      %v263 = vld [vmem:[%s220 + $0x3c] sm:$0xf]
      %v264 = vld [vmem:[%s220 + $0x40] sm:$0xf]
      %v265 = vld [vmem:[%s220 + $0x44] sm:$0xf]
      %v266 = vld [vmem:[%s220 + $0x48] sm:$0xf]
      %v267 = vld [vmem:[%s220 + $0x4c] sm:$0xf]
      %v268 = vld [vmem:[%s220 + $0x50] sm:$0xf]
      %v269 = vld [vmem:[%s220 + $0x54] sm:$0xf]
      %v270 = vld [vmem:[%s220 + $0x58] sm:$0xf]
      %v271 = vld [vmem:[%s220 + $0x5c] sm:$0xf]
      %v272 = vld [vmem:[%s220 + $0x60] sm:$0xf]
      %v273 = vld [vmem:[%s220 + $0x64] sm:$0xf]
      %v274 = vld [vmem:[%s220 + $0x68] sm:$0xf]
      %v275 = vld [vmem:[%s220 + $0x6c] sm:$0xf]
      %v276 = vld [vmem:[%s220 + $0x70] sm:$0xf]
      %v277 = vld [vmem:[%s220 + $0x74] sm:$0xf]
      %v278 = vld [vmem:[%s220 + $0x78] sm:$0xf]
      %v279 = vld [vmem:[%s220 + $0x7c] sm:$0xf]
      %v280 = vld [vmem:[%s220 + $0x80] sm:$0xf]
      %v281 = vld [vmem:[%s220 + $0x84] sm:$0xf]
      %v282 = vld [vmem:[%s220 + $0x88] sm:$0xf]
      %v283 = vld [vmem:[%s220 + $0x8c] sm:$0xf]
      %v284 = vld [vmem:[%s220 + $0x90] sm:$0xf]
      %v285 = vld [vmem:[%s220 + $0x94] sm:$0xf]
      %v286 = vld [vmem:[%s220 + $0x98] sm:$0xf]
      %v287 = vld [vmem:[%s220 + $0x9c] sm:$0xf]
      %v288 = vld [vmem:[%s220 + $0xa0] sm:$0xf]
      %v289 = vld [vmem:[%s220 + $0xa4] sm:$0xf]
      %v290 = vld [vmem:[%s220 + $0xa8] sm:$0xf]
      %v291 = vld [vmem:[%s220 + $0xac] sm:$0xf]
      %v292 = vld [vmem:[%s220 + $0xb0] sm:$0xf]
      %v293 = vld [vmem:[%s220 + $0xb4] sm:$0xf]
      %v294 = vld [vmem:[%s220 + $0xb8] sm:$0xf]
      %v295 = vld [vmem:[%s220 + $0xbc] sm:$0xf]
      %v296 = vld [vmem:[%s220 + $0xc0] sm:$0xf]
      %v297 = vld [vmem:[%s220 + $0xc4] sm:$0xf]
      %v298 = vld [vmem:[%s220 + $0xc8] sm:$0xf]
      %v299 = vld [vmem:[%s220 + $0xcc] sm:$0xf]
      %v300 = vld [vmem:[%s220 + $0xd0] sm:$0xf]
      %v301 = vld [vmem:[%s220 + $0xd4] sm:$0xf]
      %v302 = vld [vmem:[%s220 + $0xd8] sm:$0xf]
      %v303 = vld [vmem:[%s220 + $0xdc] sm:$0xf]
      %v304 = vld [vmem:[%s220 + $0xe0] sm:$0xf]
      %v305 = vld [vmem:[%s220 + $0xe4] sm:$0xf]
      %v306 = vld [vmem:[%s220 + $0xe8] sm:$0xf]
      %v307 = vld [vmem:[%s220 + $0xec] sm:$0xf]
      %v308 = vld [vmem:[%s220 + $0xf0] sm:$0xf]
      %v309 = vld [vmem:[%s220 + $0xf4] sm:$0xf]
      %v310 = vld [vmem:[%s220 + $0xf8] sm:$0xf]
      %v311 = vld [vmem:[%s220 + $0xfc] sm:$0xf]
      %v312 = vld [vmem:[%s226] sm:$0xf]
      %v313 = vld [vmem:[%s226 + $0x4] sm:$0xf]
      %v314 = vld [vmem:[%s226 + $0x8] sm:$0xf]
      %v315 = vld [vmem:[%s226 + $0xc] sm:$0xf]
      %v380 = vunpack.c.l.b16 %v248
      %v381 = vunpack.c.l.b16 %v249
      %v382 = vunpack.c.l.b16 %v250
      %v383 = vunpack.c.l.b16 %v251
      %v384 = vunpack.c.l.b16 %v252
      %v385 = vunpack.c.l.b16 %v253
      %v386 = vunpack.c.l.b16 %v254
      %v387 = vunpack.c.l.b16 %v255
      %v388 = vunpack.c.l.b16 %v256
      %v389 = vunpack.c.l.b16 %v257
      %v390 = vunpack.c.l.b16 %v258
      %v391 = vunpack.c.l.b16 %v259
      %v392 = vunpack.c.l.b16 %v260
      %v393 = vunpack.c.l.b16 %v261
      %v394 = vunpack.c.l.b16 %v262
      %v395 = vunpack.c.l.b16 %v263
      %v396 = vunpack.c.l.b16 %v264
      %v397 = vunpack.c.l.b16 %v265
      %v398 = vunpack.c.l.b16 %v266
      %v399 = vunpack.c.l.b16 %v267
      %v400 = vunpack.c.l.b16 %v268
      %v401 = vunpack.c.l.b16 %v269
      %v402 = vunpack.c.l.b16 %v270
      %v403 = vunpack.c.l.b16 %v271
      %v404 = vunpack.c.l.b16 %v272
      %v405 = vunpack.c.l.b16 %v273
      %v406 = vunpack.c.l.b16 %v274
      %v407 = vunpack.c.l.b16 %v275
      %v408 = vunpack.c.l.b16 %v276
      %v409 = vunpack.c.l.b16 %v277
      %v410 = vunpack.c.l.b16 %v278
      %v411 = vunpack.c.l.b16 %v279
      %v412 = vunpack.c.l.b16 %v280
      %v413 = vunpack.c.l.b16 %v281
      %v414 = vunpack.c.l.b16 %v282
      %v415 = vunpack.c.l.b16 %v283
      %v416 = vunpack.c.l.b16 %v284
      %v417 = vunpack.c.l.b16 %v285
      %v418 = vunpack.c.l.b16 %v286
      %v419 = vunpack.c.l.b16 %v287
      %v420 = vunpack.c.l.b16 %v288
      %v421 = vunpack.c.l.b16 %v289
      %v422 = vunpack.c.l.b16 %v290
      %v423 = vunpack.c.l.b16 %v291
      %v424 = vunpack.c.l.b16 %v292
      %v425 = vunpack.c.l.b16 %v293
      %v426 = vunpack.c.l.b16 %v294
      %v427 = vunpack.c.l.b16 %v295
      %v428 = vunpack.c.l.b16 %v296
      %v429 = vunpack.c.l.b16 %v297
      %v430 = vunpack.c.l.b16 %v298
      %v431 = vunpack.c.l.b16 %v299
      %v432 = vunpack.c.l.b16 %v300
      %v433 = vunpack.c.l.b16 %v301
      %v434 = vunpack.c.l.b16 %v302
      %v435 = vunpack.c.l.b16 %v303
      %v436 = vunpack.c.l.b16 %v304
      %v437 = vunpack.c.l.b16 %v305
      %v438 = vunpack.c.l.b16 %v306
      %v439 = vunpack.c.l.b16 %v307
      %v440 = vunpack.c.l.b16 %v308
      %v441 = vunpack.c.l.b16 %v309
      %v442 = vunpack.c.l.b16 %v310
      %v443 = vunpack.c.l.b16 %v311
      %v444 = vpack.c.b16 %v381, %v380
      %v445 = vpack.c.b16 %v383, %v382
      %v446 = vpack.c.b16 %v385, %v384
      %v447 = vpack.c.b16 %v387, %v386
      %v448 = vpack.c.b16 %v389, %v388
      %v449 = vpack.c.b16 %v391, %v390
      %v450 = vpack.c.b16 %v393, %v392
      %v451 = vpack.c.b16 %v395, %v394
      %v452 = vpack.c.b16 %v397, %v396
      %v453 = vpack.c.b16 %v399, %v398
      %v454 = vpack.c.b16 %v401, %v400
      %v455 = vpack.c.b16 %v403, %v402
      %v456 = vpack.c.b16 %v405, %v404
      %v457 = vpack.c.b16 %v407, %v406
      %v458 = vpack.c.b16 %v409, %v408
      %v459 = vpack.c.b16 %v411, %v410
      %v460 = vpack.c.b16 %v413, %v412
      %v461 = vpack.c.b16 %v415, %v414
      %v462 = vpack.c.b16 %v417, %v416
      %v463 = vpack.c.b16 %v419, %v418
      %v464 = vpack.c.b16 %v421, %v420
      %v465 = vpack.c.b16 %v423, %v422
      %v466 = vpack.c.b16 %v425, %v424
      %v467 = vpack.c.b16 %v427, %v426
      %v468 = vpack.c.b16 %v429, %v428
      %v469 = vpack.c.b16 %v431, %v430
      %v470 = vpack.c.b16 %v433, %v432
      %v471 = vpack.c.b16 %v435, %v434
      %v472 = vpack.c.b16 %v437, %v436
      %v473 = vpack.c.b16 %v439, %v438
      %v474 = vpack.c.b16 %v441, %v440
      %v475 = vpack.c.b16 %v443, %v442
      %v480 = vunpack.c.l.b16 %v312
      %v481 = vunpack.c.l.b16 %v313
      %v482 = vunpack.c.l.b16 %v314
      %v483 = vunpack.c.l.b16 %v315
      %v484 = vpack.c.b16 %v481, %v480
      %v485 = vpack.c.b16 %v483, %v482
      %vm488 = vcmask 261120
      %v490 = vsel %vm488, %v444, 0
      %v493 = vsel %vm488, %v445, 0
      %v496 = vsel %vm488, %v446, 0
      %v499 = vsel %vm488, %v447, 0
      %v502 = vsel %vm488, %v448, 0
      %v505 = vsel %vm488, %v449, 0
      %v508 = vsel %vm488, %v450, 0
      %v511 = vsel %vm488, %v451, 0
      %v514 = vsel %vm488, %v452, 0
      %v517 = vsel %vm488, %v453, 0
      %v520 = vsel %vm488, %v454, 0
      %v523 = vsel %vm488, %v455, 0
      %v526 = vsel %vm488, %v456, 0
      %v529 = vsel %vm488, %v457, 0
      %v532 = vsel %vm488, %v458, 0
      %v535 = vsel %vm488, %v459, 0
      %v538 = vsel %vm488, %v460, 0
      %v541 = vsel %vm488, %v461, 0
      %v544 = vsel %vm488, %v462, 0
      %v547 = vsel %vm488, %v463, 0
      %v550 = vsel %vm488, %v464, 0
      %v553 = vsel %vm488, %v465, 0
      %v556 = vsel %vm488, %v466, 0
      %v559 = vsel %vm488, %v467, 0
      %v562 = vsel %vm488, %v468, 0
      %v565 = vsel %vm488, %v469, 0
      %v568 = vsel %vm488, %v470, 0
      %v571 = vsel %vm488, %v471, 0
      %v574 = vsel %vm488, %v472, 0
      %v577 = vsel %vm488, %v473, 0
      %v580 = vsel %vm488, %v474, 0
      %v583 = vsel %vm488, %v475, 0
      %585 = vmatprep.subr.bf16.mxu0 0
      %586 = vmatpush1.bf16.msra.mxu0 %v484
      %587 = vmatprep.subr.bf16.mxu0 0
      %588 = vmatpush1.bf16.msra.mxu0 %v485
      %589 = vmatprep.subr.bf16.mxu0 0
      %590 = vmatpush1.bf16.msra.mxu0 0
      %591 = vmatprep.subr.bf16.mxu0 0
      %592 = vmatpush1.bf16.msra.mxu0 0
      %593 = vmatprep.subr.bf16.mxu0 0
      %594 = vmatpush1.bf16.msra.mxu0 0
      %595 = vmatprep.subr.bf16.mxu0 0
      %596 = vmatpush1.bf16.msra.mxu0 0
      %597 = vmatprep.subr.bf16.mxu0 0
      %598 = vmatpush1.bf16.msra.mxu0 0
      %599 = vmatprep.subr.bf16.mxu0 0
      %600 = vmatpush1.bf16.msra.mxu0 0
      %601 = vmatprep.subr.bf16.mxu0 0
      %602 = vmatpush1.bf16.msra.mxu0 0
      %603 = vmatprep.subr.bf16.mxu0 0
      %604 = vmatpush1.bf16.msra.mxu0 0
      %605 = vmatprep.subr.bf16.mxu0 0
      %606 = vmatpush1.bf16.msra.mxu0 0
      %607 = vmatprep.subr.bf16.mxu0 0
      %608 = vmatpush1.bf16.msra.mxu0 0
      %609 = vmatprep.subr.bf16.mxu0 0
      %610 = vmatpush1.bf16.msra.mxu0 0
      %611 = vmatprep.subr.bf16.mxu0 0
      %612 = vmatpush1.bf16.msra.mxu0 0
      %613 = vmatprep.subr.bf16.mxu0 0
      %614 = vmatpush1.bf16.msra.mxu0 0
      %615 = vmatprep.subr.bf16.mxu0 0
      %616 = vmatpush1.bf16.msra.mxu0 0
      %617 = vmatprep.mubr.bf16.mxu0 0
      %618 = vmatmul.mubr.bf16.gmra.mrb[0].mxu0 %v490
      %v619 = vpop.f32.mrb[0].mxu0
      %v620 = vadd.f32 0.0, %v619
      %v621 = vpop.f32.mrb[0].mxu0
      %v622 = vpop.f32.mrb[0].mxu0
      %v623 = vadd.f32 0.0, %v622
      %v624 = vpop.f32.mrb[0].mxu0
      %625 = vmatprep.mubr.bf16.mxu0 0
      %626 = vmatmul.mubr.bf16.gmra.mrb[0].mxu0 %v493
      %v627 = vpop.f32.mrb[0].mxu0
      %v628 = vadd.f32 0.0, %v627
      %v629 = vpop.f32.mrb[0].mxu0
      %v630 = vpop.f32.mrb[0].mxu0
      %v631 = vadd.f32 0.0, %v630
      %v632 = vpop.f32.mrb[0].mxu0
      %633 = vmatprep.mubr.bf16.mxu0 0
      %634 = vmatmul.mubr.bf16.gmra.mrb[0].mxu0 %v496
      %v635 = vpop.f32.mrb[0].mxu0
      %v636 = vadd.f32 0.0, %v635
      %v637 = vpop.f32.mrb[0].mxu0
      %v638 = vpop.f32.mrb[0].mxu0
      %v639 = vadd.f32 0.0, %v638
      %v640 = vpop.f32.mrb[0].mxu0
      %641 = vmatprep.mubr.bf16.mxu0 0
      %642 = vmatmul.mubr.bf16.gmra.mrb[0].mxu0 %v499
      %v643 = vpop.f32.mrb[0].mxu0
      %v644 = vadd.f32 0.0, %v643
      %v645 = vpop.f32.mrb[0].mxu0
      %v646 = vpop.f32.mrb[0].mxu0
      %v647 = vadd.f32 0.0, %v646
      %v648 = vpop.f32.mrb[0].mxu0
      %649 = vmatprep.mubr.bf16.mxu0 0
      %650 = vmatmul.mubr.bf16.gmra.mrb[0].mxu0 %v502
      %v651 = vpop.f32.mrb[0].mxu0
      %v652 = vadd.f32 0.0, %v651
      %v653 = vpop.f32.mrb[0].mxu0
      %v654 = vpop.f32.mrb[0].mxu0
      %v655 = vadd.f32 0.0, %v654
      %v656 = vpop.f32.mrb[0].mxu0
      %657 = vmatprep.mubr.bf16.mxu0 0
      %658 = vmatmul.mubr.bf16.gmra.mrb[0].mxu0 %v505
      %v659 = vpop.f32.mrb[0].mxu0
      %v660 = vadd.f32 0.0, %v659
      %v661 = vpop.f32.mrb[0].mxu0
      %v662 = vpop.f32.mrb[0].mxu0
      %v663 = vadd.f32 0.0, %v662
      %v664 = vpop.f32.mrb[0].mxu0
      %665 = vmatprep.mubr.bf16.mxu0 0
      %666 = vmatmul.mubr.bf16.gmra.mrb[0].mxu0 %v508
      %v667 = vpop.f32.mrb[0].mxu0
      %v668 = vadd.f32 0.0, %v667
      %v669 = vpop.f32.mrb[0].mxu0
      %v670 = vpop.f32.mrb[0].mxu0
      %v671 = vadd.f32 0.0, %v670
      %v672 = vpop.f32.mrb[0].mxu0
      %673 = vmatprep.mubr.bf16.mxu0 0
      %674 = vmatmul.mubr.bf16.gmra.mrb[0].mxu0 %v511
      %v675 = vpop.f32.mrb[0].mxu0
      %v676 = vadd.f32 0.0, %v675
      %v677 = vpop.f32.mrb[0].mxu0
      %v678 = vpop.f32.mrb[0].mxu0
      %v679 = vadd.f32 0.0, %v678
      %v680 = vpop.f32.mrb[0].mxu0
      %681 = vmatprep.mubr.bf16.mxu0 0
      %682 = vmatmul.mubr.bf16.gmra.mrb[0].mxu0 %v514
      %v683 = vpop.f32.mrb[0].mxu0
      %v684 = vadd.f32 0.0, %v683
      %v685 = vpop.f32.mrb[0].mxu0
      %v686 = vpop.f32.mrb[0].mxu0
      %v687 = vadd.f32 0.0, %v686
      %v688 = vpop.f32.mrb[0].mxu0
      %689 = vmatprep.mubr.bf16.mxu0 0
      %690 = vmatmul.mubr.bf16.gmra.mrb[0].mxu0 %v517
      %v691 = vpop.f32.mrb[0].mxu0
      %v692 = vadd.f32 0.0, %v691
      %v693 = vpop.f32.mrb[0].mxu0
      %v694 = vpop.f32.mrb[0].mxu0
      %v695 = vadd.f32 0.0, %v694
      %v696 = vpop.f32.mrb[0].mxu0
      %697 = vmatprep.mubr.bf16.mxu0 0
      %698 = vmatmul.mubr.bf16.gmra.mrb[0].mxu0 %v520
      %v699 = vpop.f32.mrb[0].mxu0
      %v700 = vadd.f32 0.0, %v699
      %v701 = vpop.f32.mrb[0].mxu0
      %v702 = vpop.f32.mrb[0].mxu0
      %v703 = vadd.f32 0.0, %v702
      %v704 = vpop.f32.mrb[0].mxu0
      %705 = vmatprep.mubr.bf16.mxu0 0
      %706 = vmatmul.mubr.bf16.gmra.mrb[0].mxu0 %v523
      %v707 = vpop.f32.mrb[0].mxu0
      %v708 = vadd.f32 0.0, %v707
      %v709 = vpop.f32.mrb[0].mxu0
      %v710 = vpop.f32.mrb[0].mxu0
      %v711 = vadd.f32 0.0, %v710
      %v712 = vpop.f32.mrb[0].mxu0
      %713 = vmatprep.mubr.bf16.mxu0 0
      %714 = vmatmul.mubr.bf16.gmra.mrb[0].mxu0 %v526
      %v715 = vpop.f32.mrb[0].mxu0
      %v716 = vadd.f32 0.0, %v715
      %v717 = vpop.f32.mrb[0].mxu0
      %v718 = vpop.f32.mrb[0].mxu0
      %v719 = vadd.f32 0.0, %v718
      %v720 = vpop.f32.mrb[0].mxu0
      %721 = vmatprep.mubr.bf16.mxu0 0
      %722 = vmatmul.mubr.bf16.gmra.mrb[0].mxu0 %v529
      %v723 = vpop.f32.mrb[0].mxu0
      %v724 = vadd.f32 0.0, %v723
      %v725 = vpop.f32.mrb[0].mxu0
      %v726 = vpop.f32.mrb[0].mxu0
      %v727 = vadd.f32 0.0, %v726
      %v728 = vpop.f32.mrb[0].mxu0
      %729 = vmatprep.mubr.bf16.mxu0 0
      %730 = vmatmul.mubr.bf16.gmra.mrb[0].mxu0 %v532
      %v731 = vpop.f32.mrb[0].mxu0
      %v732 = vadd.f32 0.0, %v731
      %v733 = vpop.f32.mrb[0].mxu0
      %v734 = vpop.f32.mrb[0].mxu0
      %v735 = vadd.f32 0.0, %v734
      %v736 = vpop.f32.mrb[0].mxu0
      %737 = vmatprep.mubr.bf16.mxu0 0
      %738 = vmatmul.mubr.bf16.gmra.mrb[0].mxu0 %v535
      %v739 = vpop.f32.mrb[0].mxu0
      %v740 = vadd.f32 0.0, %v739
      %v741 = vpop.f32.mrb[0].mxu0
      %v742 = vpop.f32.mrb[0].mxu0
      %v743 = vadd.f32 0.0, %v742
      %v744 = vpop.f32.mrb[0].mxu0
      %745 = vmatprep.mubr.bf16.mxu0 0
      %746 = vmatmul.mubr.bf16.gmra.mrb[0].mxu0 %v538
      %v747 = vpop.f32.mrb[0].mxu0
      %v748 = vadd.f32 0.0, %v747
      %v749 = vpop.f32.mrb[0].mxu0
      %v750 = vpop.f32.mrb[0].mxu0
      %v751 = vadd.f32 0.0, %v750
      %v752 = vpop.f32.mrb[0].mxu0
      %753 = vmatprep.mubr.bf16.mxu0 0
      %754 = vmatmul.mubr.bf16.gmra.mrb[0].mxu0 %v541
      %v755 = vpop.f32.mrb[0].mxu0
      %v756 = vadd.f32 0.0, %v755
      %v757 = vpop.f32.mrb[0].mxu0
      %v758 = vpop.f32.mrb[0].mxu0
      %v759 = vadd.f32 0.0, %v758
      %v760 = vpop.f32.mrb[0].mxu0
      %761 = vmatprep.mubr.bf16.mxu0 0
      %762 = vmatmul.mubr.bf16.gmra.mrb[0].mxu0 %v544
      %v763 = vpop.f32.mrb[0].mxu0
      %v764 = vadd.f32 0.0, %v763
      %v765 = vpop.f32.mrb[0].mxu0
      %v766 = vpop.f32.mrb[0].mxu0
      %v767 = vadd.f32 0.0, %v766
      %v768 = vpop.f32.mrb[0].mxu0
      %769 = vmatprep.mubr.bf16.mxu0 0
      %770 = vmatmul.mubr.bf16.gmra.mrb[0].mxu0 %v547
      %v771 = vpop.f32.mrb[0].mxu0
      %v772 = vadd.f32 0.0, %v771
      %v773 = vpop.f32.mrb[0].mxu0
      %v774 = vpop.f32.mrb[0].mxu0
      %v775 = vadd.f32 0.0, %v774
      %v776 = vpop.f32.mrb[0].mxu0
      %777 = vmatprep.mubr.bf16.mxu0 0
      %778 = vmatmul.mubr.bf16.gmra.mrb[0].mxu0 %v550
      %v779 = vpop.f32.mrb[0].mxu0
      %v780 = vadd.f32 0.0, %v779
      %v781 = vpop.f32.mrb[0].mxu0
      %v782 = vpop.f32.mrb[0].mxu0
      %v783 = vadd.f32 0.0, %v782
      %v784 = vpop.f32.mrb[0].mxu0
      %785 = vmatprep.mubr.bf16.mxu0 0
      %786 = vmatmul.mubr.bf16.gmra.mrb[0].mxu0 %v553
      %v787 = vpop.f32.mrb[0].mxu0
      %v788 = vadd.f32 0.0, %v787
      %v789 = vpop.f32.mrb[0].mxu0
      %v790 = vpop.f32.mrb[0].mxu0
      %v791 = vadd.f32 0.0, %v790
      %v792 = vpop.f32.mrb[0].mxu0
      %793 = vmatprep.mubr.bf16.mxu0 0
      %794 = vmatmul.mubr.bf16.gmra.mrb[0].mxu0 %v556
      %v795 = vpop.f32.mrb[0].mxu0
      %v796 = vadd.f32 0.0, %v795
      %v797 = vpop.f32.mrb[0].mxu0
      %v798 = vpop.f32.mrb[0].mxu0
      %v799 = vadd.f32 0.0, %v798
      %v800 = vpop.f32.mrb[0].mxu0
      %801 = vmatprep.mubr.bf16.mxu0 0
      %802 = vmatmul.mubr.bf16.gmra.mrb[0].mxu0 %v559
      %v803 = vpop.f32.mrb[0].mxu0
      %v804 = vadd.f32 0.0, %v803
      %v805 = vpop.f32.mrb[0].mxu0
      %v806 = vpop.f32.mrb[0].mxu0
      %v807 = vadd.f32 0.0, %v806
      %v808 = vpop.f32.mrb[0].mxu0
      %809 = vmatprep.mubr.bf16.mxu0 0
      %810 = vmatmul.mubr.bf16.gmra.mrb[0].mxu0 %v562
      %v811 = vpop.f32.mrb[0].mxu0
      %v812 = vadd.f32 0.0, %v811
      %v813 = vpop.f32.mrb[0].mxu0
      %v814 = vpop.f32.mrb[0].mxu0
      %v815 = vadd.f32 0.0, %v814
      %v816 = vpop.f32.mrb[0].mxu0
      %817 = vmatprep.mubr.bf16.mxu0 0
      %818 = vmatmul.mubr.bf16.gmra.mrb[0].mxu0 %v565
      %v819 = vpop.f32.mrb[0].mxu0
      %v820 = vadd.f32 0.0, %v819
      %v821 = vpop.f32.mrb[0].mxu0
      %v822 = vpop.f32.mrb[0].mxu0
      %v823 = vadd.f32 0.0, %v822
      %v824 = vpop.f32.mrb[0].mxu0
      %825 = vmatprep.mubr.bf16.mxu0 0
      %826 = vmatmul.mubr.bf16.gmra.mrb[0].mxu0 %v568
      %v827 = vpop.f32.mrb[0].mxu0
      %v828 = vadd.f32 0.0, %v827
      %v829 = vpop.f32.mrb[0].mxu0
      %v830 = vpop.f32.mrb[0].mxu0
      %v831 = vadd.f32 0.0, %v830
      %v832 = vpop.f32.mrb[0].mxu0
      %833 = vmatprep.mubr.bf16.mxu0 0
      %834 = vmatmul.mubr.bf16.gmra.mrb[0].mxu0 %v571
      %v835 = vpop.f32.mrb[0].mxu0
      %v836 = vadd.f32 0.0, %v835
      %v837 = vpop.f32.mrb[0].mxu0
      %v838 = vpop.f32.mrb[0].mxu0
      %v839 = vadd.f32 0.0, %v838
      %v840 = vpop.f32.mrb[0].mxu0
      %841 = vmatprep.mubr.bf16.mxu0 0
      %842 = vmatmul.mubr.bf16.gmra.mrb[0].mxu0 %v574
      %v843 = vpop.f32.mrb[0].mxu0
      %v844 = vadd.f32 0.0, %v843
      %v845 = vpop.f32.mrb[0].mxu0
      %v846 = vpop.f32.mrb[0].mxu0
      %v847 = vadd.f32 0.0, %v846
      %v848 = vpop.f32.mrb[0].mxu0
      %849 = vmatprep.mubr.bf16.mxu0 0
      %850 = vmatmul.mubr.bf16.gmra.mrb[0].mxu0 %v577
      %v851 = vpop.f32.mrb[0].mxu0
      %v852 = vadd.f32 0.0, %v851
      %v853 = vpop.f32.mrb[0].mxu0
      %v854 = vpop.f32.mrb[0].mxu0
      %v855 = vadd.f32 0.0, %v854
      %v856 = vpop.f32.mrb[0].mxu0
      %857 = vmatprep.mubr.bf16.mxu0 0
      %858 = vmatmul.mubr.bf16.gmra.mrb[0].mxu0 %v580
      %v859 = vpop.f32.mrb[0].mxu0
      %v860 = vadd.f32 0.0, %v859
      %v861 = vpop.f32.mrb[0].mxu0
      %v862 = vpop.f32.mrb[0].mxu0
      %v863 = vadd.f32 0.0, %v862
      %v864 = vpop.f32.mrb[0].mxu0
      %865 = vmatprep.mubr.bf16.mxu0 0
      %866 = vmatmul.mubr.bf16.gmra.mrb[0].mxu0 %v583
      %v867 = vpop.f32.mrb[0].mxu0
      %v868 = vadd.f32 0.0, %v867
      %v869 = vpop.f32.mrb[0].mxu0
      %v870 = vpop.f32.mrb[0].mxu0
      %v871 = vadd.f32 0.0, %v870
      %v872 = vpop.f32.mrb[0].mxu0
      %873 = vdwg.mxu0
      %v874 = vpack.c.bf16 %v623, %v620
      %v875 = vpack.c.bf16 %v631, %v628
      %v876 = vpack.c.bf16 %v639, %v636
      %v877 = vpack.c.bf16 %v647, %v644
      %v878 = vpack.c.bf16 %v655, %v652
      %v879 = vpack.c.bf16 %v663, %v660
      %v880 = vpack.c.bf16 %v671, %v668
      %v881 = vpack.c.bf16 %v679, %v676
      %v882 = vpack.c.bf16 %v687, %v684
      %v883 = vpack.c.bf16 %v695, %v692
      %v884 = vpack.c.bf16 %v703, %v700
      %v885 = vpack.c.bf16 %v711, %v708
      %v886 = vpack.c.bf16 %v719, %v716
      %v887 = vpack.c.bf16 %v727, %v724
      %v888 = vpack.c.bf16 %v735, %v732
      %v889 = vpack.c.bf16 %v743, %v740
      %v890 = vpack.c.bf16 %v751, %v748
      %v891 = vpack.c.bf16 %v759, %v756
      %v892 = vpack.c.bf16 %v767, %v764
      %v893 = vpack.c.bf16 %v775, %v772
      %v894 = vpack.c.bf16 %v783, %v780
      %v895 = vpack.c.bf16 %v791, %v788
      %v896 = vpack.c.bf16 %v799, %v796
      %v897 = vpack.c.bf16 %v807, %v804
      %v898 = vpack.c.bf16 %v815, %v812
      %v899 = vpack.c.bf16 %v823, %v820
      %v900 = vpack.c.bf16 %v831, %v828
      %v901 = vpack.c.bf16 %v839, %v836
      %v902 = vpack.c.bf16 %v847, %v844
      %v903 = vpack.c.bf16 %v855, %v852
      %v904 = vpack.c.bf16 %v863, %v860
      %v905 = vpack.c.bf16 %v871, %v868
      %v938 = vunpack.c.l.b16 %v874
      %v939 = vunpack.c.h.b16 %v874
      %v940 = vunpack.c.l.b16 %v875
      %v941 = vunpack.c.h.b16 %v875
      %v942 = vunpack.c.l.b16 %v876
      %v943 = vunpack.c.h.b16 %v876
      %v944 = vunpack.c.l.b16 %v877
      %v945 = vunpack.c.h.b16 %v877
      %v946 = vunpack.c.l.b16 %v878
      %v947 = vunpack.c.h.b16 %v878
      %v948 = vunpack.c.l.b16 %v879
      %v949 = vunpack.c.h.b16 %v879
      %v950 = vunpack.c.l.b16 %v880
      %v951 = vunpack.c.h.b16 %v880
      %v952 = vunpack.c.l.b16 %v881
      %v953 = vunpack.c.h.b16 %v881
      %v954 = vunpack.c.l.b16 %v882
      %v955 = vunpack.c.h.b16 %v882
      %v956 = vunpack.c.l.b16 %v883
      %v957 = vunpack.c.h.b16 %v883
      %v958 = vunpack.c.l.b16 %v884
      %v959 = vunpack.c.h.b16 %v884
      %v960 = vunpack.c.l.b16 %v885
      %v961 = vunpack.c.h.b16 %v885
      %v962 = vunpack.c.l.b16 %v886
      %v963 = vunpack.c.h.b16 %v886
      %v964 = vunpack.c.l.b16 %v887
      %v965 = vunpack.c.h.b16 %v887
      %v966 = vunpack.c.l.b16 %v888
      %v967 = vunpack.c.h.b16 %v888
      %v968 = vunpack.c.l.b16 %v889
      %v969 = vunpack.c.h.b16 %v889
      %v970 = vunpack.c.l.b16 %v890
      %v971 = vunpack.c.h.b16 %v890
      %v972 = vunpack.c.l.b16 %v891
      %v973 = vunpack.c.h.b16 %v891
      %v974 = vunpack.c.l.b16 %v892
      %v975 = vunpack.c.h.b16 %v892
      %v976 = vunpack.c.l.b16 %v893
      %v977 = vunpack.c.h.b16 %v893
      %v978 = vunpack.c.l.b16 %v894
      %v979 = vunpack.c.h.b16 %v894
      %v980 = vunpack.c.l.b16 %v895
      %v981 = vunpack.c.h.b16 %v895
      %v982 = vunpack.c.l.b16 %v896
      %v983 = vunpack.c.h.b16 %v896
      %v984 = vunpack.c.l.b16 %v897
      %v985 = vunpack.c.h.b16 %v897
      %v986 = vunpack.c.l.b16 %v898
      %v987 = vunpack.c.h.b16 %v898
      %v988 = vunpack.c.l.b16 %v899
      %v989 = vunpack.c.h.b16 %v899
      %v990 = vunpack.c.l.b16 %v900
      %v991 = vunpack.c.h.b16 %v900
      %v992 = vunpack.c.l.b16 %v901
      %v993 = vunpack.c.h.b16 %v901
      %v994 = vunpack.c.l.b16 %v902
      %v995 = vunpack.c.h.b16 %v902
      %v996 = vunpack.c.l.b16 %v903
      %v997 = vunpack.c.h.b16 %v903
      %v998 = vunpack.c.l.b16 %v904
      %v999 = vunpack.c.h.b16 %v904
      %v1000 = vunpack.c.l.b16 %v905
      %v1001 = vunpack.c.h.b16 %v905
      %v1002 = vpack.c.b16 %v938, %v938
      %v1003 = vpack.c.b16 %v939, %v939
      %v1004 = vpack.c.b16 %v940, %v940
      %v1005 = vpack.c.b16 %v941, %v941
      %v1006 = vpack.c.b16 %v942, %v942
      %v1007 = vpack.c.b16 %v943, %v943
      %v1008 = vpack.c.b16 %v944, %v944
      %v1009 = vpack.c.b16 %v945, %v945
      %v1010 = vpack.c.b16 %v946, %v946
      %v1011 = vpack.c.b16 %v947, %v947
      %v1012 = vpack.c.b16 %v948, %v948
      %v1013 = vpack.c.b16 %v949, %v949
      %v1014 = vpack.c.b16 %v950, %v950
      %v1015 = vpack.c.b16 %v951, %v951
      %v1016 = vpack.c.b16 %v952, %v952
      %v1017 = vpack.c.b16 %v953, %v953
      %v1018 = vpack.c.b16 %v954, %v954
      %v1019 = vpack.c.b16 %v955, %v955
      %v1020 = vpack.c.b16 %v956, %v956
      %v1021 = vpack.c.b16 %v957, %v957
      %v1022 = vpack.c.b16 %v958, %v958
      %v1023 = vpack.c.b16 %v959, %v959
      %v1024 = vpack.c.b16 %v960, %v960
      %v1025 = vpack.c.b16 %v961, %v961
      %v1026 = vpack.c.b16 %v962, %v962
      %v1027 = vpack.c.b16 %v963, %v963
      %v1028 = vpack.c.b16 %v964, %v964
      %v1029 = vpack.c.b16 %v965, %v965
      %v1030 = vpack.c.b16 %v966, %v966
      %v1031 = vpack.c.b16 %v967, %v967
      %v1032 = vpack.c.b16 %v968, %v968
      %v1033 = vpack.c.b16 %v969, %v969
      %v1034 = vpack.c.b16 %v970, %v970
      %v1035 = vpack.c.b16 %v971, %v971
      %v1036 = vpack.c.b16 %v972, %v972
      %v1037 = vpack.c.b16 %v973, %v973
      %v1038 = vpack.c.b16 %v974, %v974
      %v1039 = vpack.c.b16 %v975, %v975
      %v1040 = vpack.c.b16 %v976, %v976
      %v1041 = vpack.c.b16 %v977, %v977
      %v1042 = vpack.c.b16 %v978, %v978
      %v1043 = vpack.c.b16 %v979, %v979
      %v1044 = vpack.c.b16 %v980, %v980
      %v1045 = vpack.c.b16 %v981, %v981
      %v1046 = vpack.c.b16 %v982, %v982
      %v1047 = vpack.c.b16 %v983, %v983
      %v1048 = vpack.c.b16 %v984, %v984
      %v1049 = vpack.c.b16 %v985, %v985
      %v1050 = vpack.c.b16 %v986, %v986
      %v1051 = vpack.c.b16 %v987, %v987
      %v1052 = vpack.c.b16 %v988, %v988
      %v1053 = vpack.c.b16 %v989, %v989
      %v1054 = vpack.c.b16 %v990, %v990
      %v1055 = vpack.c.b16 %v991, %v991
      %v1056 = vpack.c.b16 %v992, %v992
      %v1057 = vpack.c.b16 %v993, %v993
      %v1058 = vpack.c.b16 %v994, %v994
      %v1059 = vpack.c.b16 %v995, %v995
      %v1060 = vpack.c.b16 %v996, %v996
      %v1061 = vpack.c.b16 %v997, %v997
      %v1062 = vpack.c.b16 %v998, %v998
      %v1063 = vpack.c.b16 %v999, %v999
      %v1064 = vpack.c.b16 %v1000, %v1000
      %v1065 = vpack.c.b16 %v1001, %v1001
      %vm1130 = vcmask 27648
      %1131 = vst.msk [vmem:[%s235] sm:$0xf] %vm1130, %v1002
      %1132 = vst.msk [vmem:[%s235 + $0x4] sm:$0xf] %vm1130, %v1003
      %1133 = vst.msk [vmem:[%s235 + $0x8] sm:$0xf] %vm1130, %v1004
      %1134 = vst.msk [vmem:[%s235 + $0xc] sm:$0xf] %vm1130, %v1005
      %1135 = vst.msk [vmem:[%s235 + $0x10] sm:$0xf] %vm1130, %v1006
      %1136 = vst.msk [vmem:[%s235 + $0x14] sm:$0xf] %vm1130, %v1007
      %1137 = vst.msk [vmem:[%s235 + $0x18] sm:$0xf] %vm1130, %v1008
      %1138 = vst.msk [vmem:[%s235 + $0x1c] sm:$0xf] %vm1130, %v1009
      %1139 = vst.msk [vmem:[%s235 + $0x20] sm:$0xf] %vm1130, %v1010
      %1140 = vst.msk [vmem:[%s235 + $0x24] sm:$0xf] %vm1130, %v1011
      %1141 = vst.msk [vmem:[%s235 + $0x28] sm:$0xf] %vm1130, %v1012
      %1142 = vst.msk [vmem:[%s235 + $0x2c] sm:$0xf] %vm1130, %v1013
      %1143 = vst.msk [vmem:[%s235 + $0x30] sm:$0xf] %vm1130, %v1014
      %1144 = vst.msk [vmem:[%s235 + $0x34] sm:$0xf] %vm1130, %v1015
      %1145 = vst.msk [vmem:[%s235 + $0x38] sm:$0xf] %vm1130, %v1016
      %1146 = vst.msk [vmem:[%s235 + $0x3c] sm:$0xf] %vm1130, %v1017
      %1147 = vst.msk [vmem:[%s235 + $0x40] sm:$0xf] %vm1130, %v1018
      %1148 = vst.msk [vmem:[%s235 + $0x44] sm:$0xf] %vm1130, %v1019
      %1149 = vst.msk [vmem:[%s235 + $0x48] sm:$0xf] %vm1130, %v1020
      %1150 = vst.msk [vmem:[%s235 + $0x4c] sm:$0xf] %vm1130, %v1021
      %1151 = vst.msk [vmem:[%s235 + $0x50] sm:$0xf] %vm1130, %v1022
      %1152 = vst.msk [vmem:[%s235 + $0x54] sm:$0xf] %vm1130, %v1023
      %1153 = vst.msk [vmem:[%s235 + $0x58] sm:$0xf] %vm1130, %v1024
      %1154 = vst.msk [vmem:[%s235 + $0x5c] sm:$0xf] %vm1130, %v1025
      %1155 = vst.msk [vmem:[%s235 + $0x60] sm:$0xf] %vm1130, %v1026
      %1156 = vst.msk [vmem:[%s235 + $0x64] sm:$0xf] %vm1130, %v1027
      %1157 = vst.msk [vmem:[%s235 + $0x68] sm:$0xf] %vm1130, %v1028
      %1158 = vst.msk [vmem:[%s235 + $0x6c] sm:$0xf] %vm1130, %v1029
      %1159 = vst.msk [vmem:[%s235 + $0x70] sm:$0xf] %vm1130, %v1030
      %1160 = vst.msk [vmem:[%s235 + $0x74] sm:$0xf] %vm1130, %v1031
      %1161 = vst.msk [vmem:[%s235 + $0x78] sm:$0xf] %vm1130, %v1032
      %1162 = vst.msk [vmem:[%s235 + $0x7c] sm:$0xf] %vm1130, %v1033
      %1163 = vst.msk [vmem:[%s235 + $0x80] sm:$0xf] %vm1130, %v1034
      %1164 = vst.msk [vmem:[%s235 + $0x84] sm:$0xf] %vm1130, %v1035
      %1165 = vst.msk [vmem:[%s235 + $0x88] sm:$0xf] %vm1130, %v1036
      %1166 = vst.msk [vmem:[%s235 + $0x8c] sm:$0xf] %vm1130, %v1037
      %1167 = vst.msk [vmem:[%s235 + $0x90] sm:$0xf] %vm1130, %v1038
      %1168 = vst.msk [vmem:[%s235 + $0x94] sm:$0xf] %vm1130, %v1039
      %1169 = vst.msk [vmem:[%s235 + $0x98] sm:$0xf] %vm1130, %v1040
      %1170 = vst.msk [vmem:[%s235 + $0x9c] sm:$0xf] %vm1130, %v1041
      %1171 = vst.msk [vmem:[%s235 + $0xa0] sm:$0xf] %vm1130, %v1042
      %1172 = vst.msk [vmem:[%s235 + $0xa4] sm:$0xf] %vm1130, %v1043
      %1173 = vst.msk [vmem:[%s235 + $0xa8] sm:$0xf] %vm1130, %v1044
      %1174 = vst.msk [vmem:[%s235 + $0xac] sm:$0xf] %vm1130, %v1045
      %1175 = vst.msk [vmem:[%s235 + $0xb0] sm:$0xf] %vm1130, %v1046
      %1176 = vst.msk [vmem:[%s235 + $0xb4] sm:$0xf] %vm1130, %v1047
      %1177 = vst.msk [vmem:[%s235 + $0xb8] sm:$0xf] %vm1130, %v1048
      %1178 = vst.msk [vmem:[%s235 + $0xbc] sm:$0xf] %vm1130, %v1049
      %1179 = vst.msk [vmem:[%s235 + $0xc0] sm:$0xf] %vm1130, %v1050
      %1180 = vst.msk [vmem:[%s235 + $0xc4] sm:$0xf] %vm1130, %v1051
      %1181 = vst.msk [vmem:[%s235 + $0xc8] sm:$0xf] %vm1130, %v1052
      %1182 = vst.msk [vmem:[%s235 + $0xcc] sm:$0xf] %vm1130, %v1053
      %1183 = vst.msk [vmem:[%s235 + $0xd0] sm:$0xf] %vm1130, %v1054
      %1184 = vst.msk [vmem:[%s235 + $0xd4] sm:$0xf] %vm1130, %v1055
      %1185 = vst.msk [vmem:[%s235 + $0xd8] sm:$0xf] %vm1130, %v1056
      %1186 = vst.msk [vmem:[%s235 + $0xdc] sm:$0xf] %vm1130, %v1057
      %1187 = vst.msk [vmem:[%s235 + $0xe0] sm:$0xf] %vm1130, %v1058
      %1188 = vst.msk [vmem:[%s235 + $0xe4] sm:$0xf] %vm1130, %v1059
      %1189 = vst.msk [vmem:[%s235 + $0xe8] sm:$0xf] %vm1130, %v1060
      %1190 = vst.msk [vmem:[%s235 + $0xec] sm:$0xf] %vm1130, %v1061
      %1191 = vst.msk [vmem:[%s235 + $0xf0] sm:$0xf] %vm1130, %v1062
      %1192 = vst.msk [vmem:[%s235 + $0xf4] sm:$0xf] %vm1130, %v1063
      %1193 = vst.msk [vmem:[%s235 + $0xf8] sm:$0xf] %vm1130, %v1064
      %1194 = vst.msk [vmem:[%s235 + $0xfc] sm:$0xf] %vm1130, %v1065
      %1195 = vmatprep.subr.mxu0 0.0
      %1196 = vmatpush1.msra.mxu0 %v620
      %1197 = vmatprep.subr.mxu0 0.0
      %1198 = vmatpush1.msra.mxu0 %v623
      %1199 = vmatprep.subr.mxu0 0.0
      %1200 = vmatpush1.msra.mxu0 %v628
      %1201 = vmatprep.subr.mxu0 0.0
      %1202 = vmatpush1.msra.mxu0 %v631
      %1203 = vmatprep.subr.mxu0 0.0
      %1204 = vmatpush1.msra.mxu0 %v636
      %1205 = vmatprep.subr.mxu0 0.0
      %1206 = vmatpush1.msra.mxu0 %v639
      %1207 = vmatprep.subr.mxu0 0.0
      %1208 = vmatpush1.msra.mxu0 %v644
      %1209 = vmatprep.subr.mxu0 0.0
      %1210 = vmatpush1.msra.mxu0 %v647
      %1211 = vmatprep.subr.mxu0 0.0
      %1212 = vmatpush1.msra.mxu0 %v652
      %1213 = vmatprep.subr.mxu0 0.0
      %1214 = vmatpush1.msra.mxu0 %v655
      %1215 = vmatprep.subr.mxu0 0.0
      %1216 = vmatpush1.msra.mxu0 %v660
      %1217 = vmatprep.subr.mxu0 0.0
      %1218 = vmatpush1.msra.mxu0 %v663
      %1219 = vmatprep.subr.mxu0 0.0
      %1220 = vmatpush1.msra.mxu0 %v668
      %1221 = vmatprep.subr.mxu0 0.0
      %1222 = vmatpush1.msra.mxu0 %v671
      %1223 = vmatprep.subr.mxu0 0.0
      %1224 = vmatpush1.msra.mxu0 %v676
      %1225 = vmatprep.subr.mxu0 0.0
      %1226 = vmatpush1.msra.mxu0 %v679
      %1227 = vmatprep.subr.mxu0 0.0
      %1228 = vmatpush1.msra.mxu0 %v684
      %1229 = vmatprep.subr.mxu0 0.0
      %1230 = vmatpush1.msra.mxu0 %v687
      %1231 = vmatprep.subr.mxu0 0.0
      %1232 = vmatpush1.msra.mxu0 %v692
      %1233 = vmatprep.subr.mxu0 0.0
      %1234 = vmatpush1.msra.mxu0 %v695
      %1235 = vmatprep.subr.mxu0 0.0
      %1236 = vmatpush1.msra.mxu0 %v700
      %1237 = vmatprep.subr.mxu0 0.0
      %1238 = vmatpush1.msra.mxu0 %v703
      %1239 = vmatprep.subr.mxu0 0.0
      %1240 = vmatpush1.msra.mxu0 %v708
      %1241 = vmatprep.subr.mxu0 0.0
      %1242 = vmatpush1.msra.mxu0 %v711
      %1243 = vmatprep.subr.mxu0 0.0
      %1244 = vmatpush1.msra.mxu0 %v716
      %1245 = vmatprep.subr.mxu0 0.0
      %1246 = vmatpush1.msra.mxu0 %v719
      %1247 = vmatprep.subr.mxu0 0.0
      %1248 = vmatpush1.msra.mxu0 %v724
      %1249 = vmatprep.subr.mxu0 0.0
      %1250 = vmatpush1.msra.mxu0 %v727
      %1251 = vmatprep.subr.mxu0 0.0
      %1252 = vmatpush1.msra.mxu0 %v732
      %1253 = vmatprep.subr.mxu0 0.0
      %1254 = vmatpush1.msra.mxu0 %v735
      %1255 = vmatprep.subr.mxu0 0.0
      %1256 = vmatpush1.msra.mxu0 %v740
      %1257 = vmatprep.subr.mxu0 0.0
      %1258 = vmatpush1.msra.mxu0 %v743
      %1259 = vmatprep.mubr.f32.mxu0 1.0
      %1260 = vmatmul.mubr.f32.gmra.mrb[0].mxu0 1.0
      %v1261 = vpop.f32.mrb[0].mxu0
      %v1262 = vadd.f32 0.0, %v1261
      %v1263 = vpop.f32.mrb[0].mxu0
      %1264 = vdwg.mxu0
      %1265 = vmatprep.subr.mxu0 0.0
      %1266 = vmatpush1.msra.mxu0 %v748
      %1267 = vmatprep.subr.mxu0 0.0
      %1268 = vmatpush1.msra.mxu0 %v751
      %1269 = vmatprep.subr.mxu0 0.0
      %1270 = vmatpush1.msra.mxu0 %v756
      %1271 = vmatprep.subr.mxu0 0.0
      %1272 = vmatpush1.msra.mxu0 %v759
      %1273 = vmatprep.subr.mxu0 0.0
      %1274 = vmatpush1.msra.mxu0 %v764
      %1275 = vmatprep.subr.mxu0 0.0
      %1276 = vmatpush1.msra.mxu0 %v767
      %1277 = vmatprep.subr.mxu0 0.0
      %1278 = vmatpush1.msra.mxu0 %v772
      %1279 = vmatprep.subr.mxu0 0.0
      %1280 = vmatpush1.msra.mxu0 %v775
      %1281 = vmatprep.subr.mxu0 0.0
      %1282 = vmatpush1.msra.mxu0 %v780
      %1283 = vmatprep.subr.mxu0 0.0
      %1284 = vmatpush1.msra.mxu0 %v783
      %1285 = vmatprep.subr.mxu0 0.0
      %1286 = vmatpush1.msra.mxu0 %v788
      %1287 = vmatprep.subr.mxu0 0.0
      %1288 = vmatpush1.msra.mxu0 %v791
      %1289 = vmatprep.subr.mxu0 0.0
      %1290 = vmatpush1.msra.mxu0 %v796
      %1291 = vmatprep.subr.mxu0 0.0
      %1292 = vmatpush1.msra.mxu0 %v799
      %1293 = vmatprep.subr.mxu0 0.0
      %1294 = vmatpush1.msra.mxu0 %v804
      %1295 = vmatprep.subr.mxu0 0.0
      %1296 = vmatpush1.msra.mxu0 %v807
      %1297 = vmatprep.subr.mxu0 0.0
      %1298 = vmatpush1.msra.mxu0 %v812
      %1299 = vmatprep.subr.mxu0 0.0
      %1300 = vmatpush1.msra.mxu0 %v815
      %1301 = vmatprep.subr.mxu0 0.0
      %1302 = vmatpush1.msra.mxu0 %v820
      %1303 = vmatprep.subr.mxu0 0.0
      %1304 = vmatpush1.msra.mxu0 %v823
      %1305 = vmatprep.subr.mxu0 0.0
      %1306 = vmatpush1.msra.mxu0 %v828
      %1307 = vmatprep.subr.mxu0 0.0
      %1308 = vmatpush1.msra.mxu0 %v831
      %1309 = vmatprep.subr.mxu0 0.0
      %1310 = vmatpush1.msra.mxu0 %v836
      %1311 = vmatprep.subr.mxu0 0.0
      %1312 = vmatpush1.msra.mxu0 %v839
      %1313 = vmatprep.subr.mxu0 0.0
      %1314 = vmatpush1.msra.mxu0 %v844
      %1315 = vmatprep.subr.mxu0 0.0
      %1316 = vmatpush1.msra.mxu0 %v847
      %1317 = vmatprep.subr.mxu0 0.0
      %1318 = vmatpush1.msra.mxu0 %v852
      %1319 = vmatprep.subr.mxu0 0.0
      %1320 = vmatpush1.msra.mxu0 %v855
      %1321 = vmatprep.subr.mxu0 0.0
      %1322 = vmatpush1.msra.mxu0 %v860
      %1323 = vmatprep.subr.mxu0 0.0
      %1324 = vmatpush1.msra.mxu0 %v863
      %1325 = vmatprep.subr.mxu0 0.0
      %1326 = vmatpush1.msra.mxu0 %v868
      %1327 = vmatprep.subr.mxu0 0.0
      %1328 = vmatpush1.msra.mxu0 %v871
      %1329 = vmatprep.mubr.f32.mxu0 1.0
      %1330 = vmatmul.mubr.f32.gmra.mrb[0].mxu0 1.0
      %v1331 = vpop.f32.mrb[0].mxu0
      %v1332 = vadd.f32 %v1262, %v1331
      %v1333 = vpop.f32.mrb[0].mxu0
      %1334 = vdwg.mxu0
      %v1335 = vmul.f32 %v620, %v620
      %v1336 = vmul.f32 %v623, %v623
      %v1337 = vmul.f32 %v628, %v628
      %v1338 = vmul.f32 %v631, %v631
      %v1339 = vmul.f32 %v636, %v636
      %v1340 = vmul.f32 %v639, %v639
      %v1341 = vmul.f32 %v644, %v644
      %v1342 = vmul.f32 %v647, %v647
      %v1343 = vmul.f32 %v652, %v652
      %v1344 = vmul.f32 %v655, %v655
      %v1345 = vmul.f32 %v660, %v660
      %v1346 = vmul.f32 %v663, %v663
      %v1347 = vmul.f32 %v668, %v668
      %v1348 = vmul.f32 %v671, %v671
      %v1349 = vmul.f32 %v676, %v676
      %v1350 = vmul.f32 %v679, %v679
      %v1351 = vmul.f32 %v684, %v684
      %v1352 = vmul.f32 %v687, %v687
      %v1353 = vmul.f32 %v692, %v692
      %v1354 = vmul.f32 %v695, %v695
      %v1355 = vmul.f32 %v700, %v700
      %v1356 = vmul.f32 %v703, %v703
      %v1357 = vmul.f32 %v708, %v708
      %v1358 = vmul.f32 %v711, %v711
      %v1359 = vmul.f32 %v716, %v716
      %v1360 = vmul.f32 %v719, %v719
      %v1361 = vmul.f32 %v724, %v724
      %v1362 = vmul.f32 %v727, %v727
      %v1363 = vmul.f32 %v732, %v732
      %v1364 = vmul.f32 %v735, %v735
      %v1365 = vmul.f32 %v740, %v740
      %v1366 = vmul.f32 %v743, %v743
      %v1367 = vmul.f32 %v748, %v748
      %v1368 = vmul.f32 %v751, %v751
      %v1369 = vmul.f32 %v756, %v756
      %v1370 = vmul.f32 %v759, %v759
      %v1371 = vmul.f32 %v764, %v764
      %v1372 = vmul.f32 %v767, %v767
      %v1373 = vmul.f32 %v772, %v772
      %v1374 = vmul.f32 %v775, %v775
      %v1375 = vmul.f32 %v780, %v780
      %v1376 = vmul.f32 %v783, %v783
      %v1377 = vmul.f32 %v788, %v788
      %v1378 = vmul.f32 %v791, %v791
      %v1379 = vmul.f32 %v796, %v796
      %v1380 = vmul.f32 %v799, %v799
      %v1381 = vmul.f32 %v804, %v804
      %v1382 = vmul.f32 %v807, %v807
      %v1383 = vmul.f32 %v812, %v812
      %v1384 = vmul.f32 %v815, %v815
      %v1385 = vmul.f32 %v820, %v820
      %v1386 = vmul.f32 %v823, %v823
      %v1387 = vmul.f32 %v828, %v828
      %v1388 = vmul.f32 %v831, %v831
      %v1389 = vmul.f32 %v836, %v836
      %v1390 = vmul.f32 %v839, %v839
      %v1391 = vmul.f32 %v844, %v844
      %v1392 = vmul.f32 %v847, %v847
      %v1393 = vmul.f32 %v852, %v852
      %v1394 = vmul.f32 %v855, %v855
      %v1395 = vmul.f32 %v860, %v860
      %v1396 = vmul.f32 %v863, %v863
      %v1397 = vmul.f32 %v868, %v868
      %v1398 = vmul.f32 %v871, %v871
      %1399 = vmatprep.subr.mxu0 0.0
      %1400 = vmatpush1.msra.mxu0 %v1335
      %1401 = vmatprep.subr.mxu0 0.0
      %1402 = vmatpush1.msra.mxu0 %v1336
      %1403 = vmatprep.subr.mxu0 0.0
      %1404 = vmatpush1.msra.mxu0 %v1337
      %1405 = vmatprep.subr.mxu0 0.0
      %1406 = vmatpush1.msra.mxu0 %v1338
      %1407 = vmatprep.subr.mxu0 0.0
      %1408 = vmatpush1.msra.mxu0 %v1339
      %1409 = vmatprep.subr.mxu0 0.0
      %1410 = vmatpush1.msra.mxu0 %v1340
      %1411 = vmatprep.subr.mxu0 0.0
      %1412 = vmatpush1.msra.mxu0 %v1341
      %1413 = vmatprep.subr.mxu0 0.0
      %1414 = vmatpush1.msra.mxu0 %v1342
      %1415 = vmatprep.subr.mxu0 0.0
      %1416 = vmatpush1.msra.mxu0 %v1343
      %1417 = vmatprep.subr.mxu0 0.0
      %1418 = vmatpush1.msra.mxu0 %v1344
      %1419 = vmatprep.subr.mxu0 0.0
      %1420 = vmatpush1.msra.mxu0 %v1345
      %1421 = vmatprep.subr.mxu0 0.0
      %1422 = vmatpush1.msra.mxu0 %v1346
      %1423 = vmatprep.subr.mxu0 0.0
      %1424 = vmatpush1.msra.mxu0 %v1347
      %1425 = vmatprep.subr.mxu0 0.0
      %1426 = vmatpush1.msra.mxu0 %v1348
      %1427 = vmatprep.subr.mxu0 0.0
      %1428 = vmatpush1.msra.mxu0 %v1349
      %1429 = vmatprep.subr.mxu0 0.0
      %1430 = vmatpush1.msra.mxu0 %v1350
      %1431 = vmatprep.subr.mxu0 0.0
      %1432 = vmatpush1.msra.mxu0 %v1351
      %1433 = vmatprep.subr.mxu0 0.0
      %1434 = vmatpush1.msra.mxu0 %v1352
      %1435 = vmatprep.subr.mxu0 0.0
      %1436 = vmatpush1.msra.mxu0 %v1353
      %1437 = vmatprep.subr.mxu0 0.0
      %1438 = vmatpush1.msra.mxu0 %v1354
      %1439 = vmatprep.subr.mxu0 0.0
      %1440 = vmatpush1.msra.mxu0 %v1355
      %1441 = vmatprep.subr.mxu0 0.0
      %1442 = vmatpush1.msra.mxu0 %v1356
      %1443 = vmatprep.subr.mxu0 0.0
      %1444 = vmatpush1.msra.mxu0 %v1357
      %1445 = vmatprep.subr.mxu0 0.0
      %1446 = vmatpush1.msra.mxu0 %v1358
      %1447 = vmatprep.subr.mxu0 0.0
      %1448 = vmatpush1.msra.mxu0 %v1359
      %1449 = vmatprep.subr.mxu0 0.0
      %1450 = vmatpush1.msra.mxu0 %v1360
      %1451 = vmatprep.subr.mxu0 0.0
      %1452 = vmatpush1.msra.mxu0 %v1361
      %1453 = vmatprep.subr.mxu0 0.0
      %1454 = vmatpush1.msra.mxu0 %v1362
      %1455 = vmatprep.subr.mxu0 0.0
      %1456 = vmatpush1.msra.mxu0 %v1363
      %1457 = vmatprep.subr.mxu0 0.0
      %1458 = vmatpush1.msra.mxu0 %v1364
      %1459 = vmatprep.subr.mxu0 0.0
      %1460 = vmatpush1.msra.mxu0 %v1365
      %1461 = vmatprep.subr.mxu0 0.0
      %1462 = vmatpush1.msra.mxu0 %v1366
      %1463 = vmatprep.mubr.f32.mxu0 1.0
      %1464 = vmatmul.mubr.f32.gmra.mrb[0].mxu0 1.0
      %v1465 = vpop.f32.mrb[0].mxu0
      %v1466 = vadd.f32 0.0, %v1465
      %v1467 = vpop.f32.mrb[0].mxu0
      %1468 = vdwg.mxu0
      %1469 = vmatprep.subr.mxu0 0.0
      %1470 = vmatpush1.msra.mxu0 %v1367
      %1471 = vmatprep.subr.mxu0 0.0
      %1472 = vmatpush1.msra.mxu0 %v1368
      %1473 = vmatprep.subr.mxu0 0.0
      %1474 = vmatpush1.msra.mxu0 %v1369
      %1475 = vmatprep.subr.mxu0 0.0
      %1476 = vmatpush1.msra.mxu0 %v1370
      %1477 = vmatprep.subr.mxu0 0.0
      %1478 = vmatpush1.msra.mxu0 %v1371
      %1479 = vmatprep.subr.mxu0 0.0
      %1480 = vmatpush1.msra.mxu0 %v1372
      %1481 = vmatprep.subr.mxu0 0.0
      %1482 = vmatpush1.msra.mxu0 %v1373
      %1483 = vmatprep.subr.mxu0 0.0
      %1484 = vmatpush1.msra.mxu0 %v1374
      %1485 = vmatprep.subr.mxu0 0.0
      %1486 = vmatpush1.msra.mxu0 %v1375
      %1487 = vmatprep.subr.mxu0 0.0
      %1488 = vmatpush1.msra.mxu0 %v1376
      %1489 = vmatprep.subr.mxu0 0.0
      %1490 = vmatpush1.msra.mxu0 %v1377
      %1491 = vmatprep.subr.mxu0 0.0
      %1492 = vmatpush1.msra.mxu0 %v1378
      %1493 = vmatprep.subr.mxu0 0.0
      %1494 = vmatpush1.msra.mxu0 %v1379
      %1495 = vmatprep.subr.mxu0 0.0
      %1496 = vmatpush1.msra.mxu0 %v1380
      %1497 = vmatprep.subr.mxu0 0.0
      %1498 = vmatpush1.msra.mxu0 %v1381
      %1499 = vmatprep.subr.mxu0 0.0
      %1500 = vmatpush1.msra.mxu0 %v1382
      %1501 = vmatprep.subr.mxu0 0.0
      %1502 = vmatpush1.msra.mxu0 %v1383
      %1503 = vmatprep.subr.mxu0 0.0
      %1504 = vmatpush1.msra.mxu0 %v1384
      %1505 = vmatprep.subr.mxu0 0.0
      %1506 = vmatpush1.msra.mxu0 %v1385
      %1507 = vmatprep.subr.mxu0 0.0
      %1508 = vmatpush1.msra.mxu0 %v1386
      %1509 = vmatprep.subr.mxu0 0.0
      %1510 = vmatpush1.msra.mxu0 %v1387
      %1511 = vmatprep.subr.mxu0 0.0
      %1512 = vmatpush1.msra.mxu0 %v1388
      %1513 = vmatprep.subr.mxu0 0.0
      %1514 = vmatpush1.msra.mxu0 %v1389
      %1515 = vmatprep.subr.mxu0 0.0
      %1516 = vmatpush1.msra.mxu0 %v1390
      %1517 = vmatprep.subr.mxu0 0.0
      %1518 = vmatpush1.msra.mxu0 %v1391
      %1519 = vmatprep.subr.mxu0 0.0
      %1520 = vmatpush1.msra.mxu0 %v1392
      %1521 = vmatprep.subr.mxu0 0.0
      %1522 = vmatpush1.msra.mxu0 %v1393
      %1523 = vmatprep.subr.mxu0 0.0
      %1524 = vmatpush1.msra.mxu0 %v1394
      %1525 = vmatprep.subr.mxu0 0.0
      %1526 = vmatpush1.msra.mxu0 %v1395
      %1527 = vmatprep.subr.mxu0 0.0
      %1528 = vmatpush1.msra.mxu0 %v1396
      %1529 = vmatprep.subr.mxu0 0.0
      %1530 = vmatpush1.msra.mxu0 %v1397
      %1531 = vmatprep.subr.mxu0 0.0
      %1532 = vmatpush1.msra.mxu0 %v1398
      %1533 = vmatprep.mubr.f32.mxu0 1.0
      %1534 = vmatmul.mubr.f32.gmra.mrb[0].mxu0 1.0
      %v1535 = vpop.f32.mrb[0].mxu0
      %v1536 = vadd.f32 %v1466, %v1535
      %v1537 = vpop.f32.mrb[0].mxu0
      %1538 = vdwg.mxu0
      %v1539 = vld [vmem:[#allocation2] sm:$0x3]
      %v1541 = vrot.slane %v1536, 7
      %vm1543 = vcmask 1040384
      %v1544 = vsel %vm1543, %v1332, %v1541
      %v1545 = vadd.f32 %v1539, %v1544
      %vm1546 = vcmask 25600
      %1547 = vst.msk [vmem:[#allocation2] sm:$0x3] %vm1546, %v1545
      // Predicated region
      $region33: #{dc_generator_forward.15} parent=27 // pred_check
        %p1548 = pneg %p242
      $region34: #{dc_generator_forward.15} parent=27 // pred_check_branch
        %1550 = sbr.rel (%p1548) target = $region36
      $region35: #{dc_generator_forward.15} parent=27 // pred_region
        %v1551 = vld [vmem:[#allocation2] sm:$0x3]
        %1552 = vst.msk [vmem:[%s240] sm:$0x3] %vm1546, %v1551
      $region36: #{dc_generator_forward.15} parent=27 // pred_fallthru
        _
      %s1553 = smul.u32 64, %s20
      %p1554 = scmp.lt.s32.totalorder %s19, 3
      %s1555 = scalar_select %p1554, %s19, 3
      %p1556 = scmp.lt.s32.totalorder %s1553, 63
      %s1557 = scalar_select %p1556, %s1553, 63
      %s1558 = smul.addr %s1555, 64
      %s1559 = sadd.s32 %s1557, %s1558
      %s1560 = smul.addr %s1559, 4
      %s1561 = scalar_lea.vmem %s2, %s1560
      %p1562 = scmp.lt.s32.totalorder %s19, 3
      %s1563 = scalar_select %p1562, %s19, 3
      %s1564 = smul.addr %s1563, 2
      %s1565 = scalar_lea.vmem %s3, %s1564
      // Predicated region
      $region37: #{dc_generator_forward.15} parent=27 // pred_check
        %p1566 = pneg %p101
      $region38: #{dc_generator_forward.15} parent=27 // pred_check_branch
        %1568 = sbr.rel (%p1566) target = $region40
      $region39: #{dc_generator_forward.15} parent=27 // pred_region
        %s1569 = smul.u32 64, %s20
      $region40: #{dc_generator_forward.15} parent=27 // pred_fallthru
        _
      // Predicated region
      $region41: #{dc_generator_forward.15} parent=27 // pred_check
        %p1570 = pneg %p127
      $region42: #{dc_generator_forward.15} parent=27 // pred_check_branch
        %1572 = sbr.rel (%p1570) target = $region44
      $region43: #{dc_generator_forward.15} parent=27 // pred_region
        _
      $region44: #{dc_generator_forward.15} parent=27 // pred_fallthru
        _
    $region28: #{dc_generator_forward.15} parent=5 // pred_fallthru
      _
    %p1573 = scmp.le.s32.totalorder 2, %s10
    // Predicated region
    $region45: #{dc_generator_forward.15} parent=5 // pred_check
      %p1574 = pneg %p1573
    $region46: #{dc_generator_forward.15} parent=5 // pred_check_branch
      %1576 = sbr.rel (%p1574) target = $region48
    $region47: #{dc_generator_forward.15} parent=5 // pred_region
      %s1577 = ssub.s32 %s10, 2
      // Predicated region
      $region49: #{dc_generator_forward.15} parent=47 // pred_check
        %p1578 = pneg %p107
      $region50: #{dc_generator_forward.15} parent=47 // pred_check_branch
        %1580 = sbr.rel (%p1578) target = $region52
      $region51: #{dc_generator_forward.15} parent=47 // pred_region
        %s1581 = smul.u32 64, %s22
        %p1582 = scmp.lt.s32.totalorder %s21, 3
        %s1583 = scalar_select %p1582, %s21, 3
        %p1584 = scmp.lt.s32.totalorder %s1581, 63
        %s1585 = scalar_select %p1584, %s1581, 63
        %s1586 = smul.addr %s1583, 64
        %s1587 = sadd.s32 %s1585, %s1586
        %s1588 = smul.addr %s1587, 4
        %s1589 = scalar_lea.vmem %s2, %s1588
      $region52: #{dc_generator_forward.15} parent=47 // pred_fallthru
        _
      // Predicated region
      $region53: #{dc_generator_forward.15} parent=47 // pred_check
        %p1590 = pneg %p133
      $region54: #{dc_generator_forward.15} parent=47 // pred_check_branch
        %1592 = sbr.rel (%p1590) target = $region56
      $region55: #{dc_generator_forward.15} parent=47 // pred_region
        %p1593 = scmp.lt.s32.totalorder %s21, 3
        %s1594 = scalar_select %p1593, %s21, 3
        %s1595 = smul.addr %s1594, 2
        %s1596 = scalar_lea.vmem %s3, %s1595
      $region56: #{dc_generator_forward.15} parent=47 // pred_fallthru
        _
    $region48: #{dc_generator_forward.15} parent=5 // pred_fallthru
      _
  $region6: #{dc_generator_forward.15} parent=0 // loop_footer
    %s14 = sadd.s32 1, %s10
  $region7: #{dc_generator_forward.15} parent=0 // loop_footer_branch
    %9 = sbr.rel target = $region3
  $region8: #{dc_generator_forward.15} parent=0 // loop_exit
    _

// kernel: dc_generator_forward.16
$region0: #{dc_generator_forward.16}
  #allocation0 [shape = 'u32[]', space=smem, size = 0x4, offset = 0x4, fixed_abs, tag = 'smem constant byte address 0x4 - core index']
  #allocation1 [shape = 'u32[144,128]{1,0:T(1,128)}', space=vmem, size = 0x12000, scoped, tag = 'internal scratch']
  %s0 = inlined_call_operand.vmem [shape: bf16[64,128], index: 0, kind: input, shape index: {}, may-alias: {0,4}]
  %s1 = inlined_call_operand.vmem [shape: f32[2,128], index: 1, kind: input, shape index: {}]
  %s2 = inlined_call_operand.vmem [shape: f32[1,128], index: 2, kind: input, shape index: {}]
  %s3 = inlined_call_operand.vmem [shape: f32[1,128], index: 3, kind: input, shape index: {}]
  %s4 = inlined_call_operand.vmem [shape: bf16[64,128], index: 4, kind: output, shape index: {}, may-alias: {0,4}]
  %s5 = sld [smem:[#allocation0]]
  $region26: #{dc_generator_forward.16} parent=0
    _
  %s7 = ssub.s32 1, %s5
  %s8 = scalar_select 0, %s7, %s5
  // Predicated region
  $region2: #{dc_generator_forward.16} parent=0 // pred_check
    _
  $region3: #{dc_generator_forward.16} parent=0 // pred_check_branch
    %10 = sbr.rel (0) target = $region5
  $region4: #{dc_generator_forward.16} parent=0 // pred_region
    _
  $region5: #{dc_generator_forward.16} parent=0 // pred_fallthru
    _
  // Predicated region
  $region6: #{dc_generator_forward.16} parent=0 // pred_check
    _
  $region7: #{dc_generator_forward.16} parent=0 // pred_check_branch
    %12 = sbr.rel (0) target = $region9
  $region8: #{dc_generator_forward.16} parent=0 // pred_region
    _
  $region9: #{dc_generator_forward.16} parent=0 // pred_fallthru
    _
  // Predicated region
  $region10: #{dc_generator_forward.16} parent=0 // pred_check
    _
  $region11: #{dc_generator_forward.16} parent=0 // pred_check_branch
    %14 = sbr.rel (0) target = $region13
  $region12: #{dc_generator_forward.16} parent=0 // pred_region
    _
  $region13: #{dc_generator_forward.16} parent=0 // pred_fallthru
    _
  // Predicated region
  $region14: #{dc_generator_forward.16} parent=0 // pred_check
    _
  $region15: #{dc_generator_forward.16} parent=0 // pred_check_branch
    %16 = sbr.rel (0) target = $region17
  $region16: #{dc_generator_forward.16} parent=0 // pred_region
    _
  $region17: #{dc_generator_forward.16} parent=0 // pred_fallthru
    _
  %v17 = vld [vmem:[%s1] sm:$0x1]
  %v18 = vmul.f32 %v17, 0.00048828125
  %v19 = vld [vmem:[%s1 + $0x1] sm:$0x1]
  %v20 = vmul.f32 %v19, 0.00048828125
  %v21 = vmul.f32 %v18, %v18
  %v22 = vsub.f32 %v20, %v21
  %v23 = vadd.f32 %v22, 1e-05
  %v24 = vrsqrt.pop %v23
  %v25 = vld [vmem:[%s0] sm:$0xf]
  %v26 = vld [vmem:[%s0 + $0x4] sm:$0xf]
  %v27 = vld [vmem:[%s0 + $0x8] sm:$0xf]
  %v28 = vld [vmem:[%s0 + $0xc] sm:$0xf]
  %v29 = vld [vmem:[%s0 + $0x10] sm:$0xf]
  %v30 = vld [vmem:[%s0 + $0x14] sm:$0xf]
  %v31 = vld [vmem:[%s0 + $0x18] sm:$0xf]
  %v32 = vld [vmem:[%s0 + $0x1c] sm:$0xf]
  %v33 = vunpack.c.l.bf16 %v25
  %v34 = vunpack.c.l.bf16 %v26
  %v35 = vunpack.c.l.bf16 %v27
  %v36 = vunpack.c.l.bf16 %v28
  %v37 = vunpack.c.l.bf16 %v29
  %v38 = vunpack.c.l.bf16 %v30
  %v39 = vunpack.c.l.bf16 %v31
  %v40 = vunpack.c.l.bf16 %v32
  %v41 = vlaneseq
  %v42 = vshrl.u32 %v41, 7
  %v43 = vsub.s32 0, %v42
  %v44 = vrot.slane %v18, %v43
  %v45 = vsub.f32 %v33, %v44
  %v46 = vsub.f32 %v34, %v44
  %v47 = vsub.f32 %v35, %v44
  %v48 = vsub.f32 %v36, %v44
  %v49 = vsub.f32 %v37, %v44
  %v50 = vsub.f32 %v38, %v44
  %v51 = vsub.f32 %v39, %v44
  %v52 = vsub.f32 %v40, %v44
  %v53 = vlaneseq
  %v54 = vshrl.u32 %v53, 7
  %v55 = vsub.s32 0, %v54
  %v56 = vrot.slane %v24, %v55
  %v57 = vmul.f32 %v45, %v56
  %v58 = vmul.f32 %v46, %v56
  %v59 = vmul.f32 %v47, %v56
  %v60 = vmul.f32 %v48, %v56
  %v61 = vmul.f32 %v49, %v56
  %v62 = vmul.f32 %v50, %v56
  %v63 = vmul.f32 %v51, %v56
  %v64 = vmul.f32 %v52, %v56
  %v65 = vld [vmem:[%s2] sm:$0x1]
  %v67 = vlaneseq
  %v68 = vshrl.u32 %v67, 7
  %v69 = vsub.s32 0, %v68
  %v70 = vrot.slane %v65, %v69
  %v72 = vmul.f32 %v57, %v70
  %v73 = vmul.f32 %v58, %v70
  %v74 = vmul.f32 %v59, %v70
  %v75 = vmul.f32 %v60, %v70
  %v76 = vmul.f32 %v61, %v70
  %v77 = vmul.f32 %v62, %v70
  %v78 = vmul.f32 %v63, %v70
  %v79 = vmul.f32 %v64, %v70
  %v80 = vld [vmem:[%s3] sm:$0x1]
  %v82 = vlaneseq
  %v83 = vshrl.u32 %v82, 7
  %v84 = vsub.s32 0, %v83
  %v85 = vrot.slane %v80, %v84
  %v87 = vadd.f32 %v72, %v85
  %v88 = vadd.f32 %v73, %v85
  %v89 = vadd.f32 %v74, %v85
  %v90 = vadd.f32 %v75, %v85
  %v91 = vadd.f32 %v76, %v85
  %v92 = vadd.f32 %v77, %v85
  %v93 = vadd.f32 %v78, %v85
  %v94 = vadd.f32 %v79, %v85
  %v95 = vmax.f32 %v87, 0.0
  %v96 = vmax.f32 %v88, 0.0
  %v97 = vmax.f32 %v89, 0.0
  %v98 = vmax.f32 %v90, 0.0
  %v99 = vmax.f32 %v91, 0.0
  %v100 = vmax.f32 %v92, 0.0
  %v101 = vmax.f32 %v93, 0.0
  %v102 = vmax.f32 %v94, 0.0
  %v103 = vpack.c.bf16 %v96, %v95
  %v104 = vpack.c.bf16 %v98, %v97
  %v105 = vpack.c.bf16 %v100, %v99
  %v106 = vpack.c.bf16 %v102, %v101
  %v111 = vunpack.c.l.b16 %v103
  %v112 = vunpack.c.h.b16 %v103
  %v113 = vunpack.c.l.b16 %v104
  %v114 = vunpack.c.h.b16 %v104
  %v115 = vunpack.c.l.b16 %v105
  %v116 = vunpack.c.h.b16 %v105
  %v117 = vunpack.c.l.b16 %v106
  %v118 = vunpack.c.h.b16 %v106
  %v119 = vpack.c.b16 %v111, %v111
  %v120 = vpack.c.b16 %v112, %v112
  %v121 = vpack.c.b16 %v113, %v113
  %v122 = vpack.c.b16 %v114, %v114
  %v123 = vpack.c.b16 %v115, %v115
  %v124 = vpack.c.b16 %v116, %v116
  %v125 = vpack.c.b16 %v117, %v117
  %v126 = vpack.c.b16 %v118, %v118
  %135 = vst [vmem:[%s4] sm:$0xf] %v119
  %136 = vst [vmem:[%s4 + $0x4] sm:$0xf] %v120
  %137 = vst [vmem:[%s4 + $0x8] sm:$0xf] %v121
  %138 = vst [vmem:[%s4 + $0xc] sm:$0xf] %v122
  %139 = vst [vmem:[%s4 + $0x10] sm:$0xf] %v123
  %140 = vst [vmem:[%s4 + $0x14] sm:$0xf] %v124
  %141 = vst [vmem:[%s4 + $0x18] sm:$0xf] %v125
  %142 = vst [vmem:[%s4 + $0x1c] sm:$0xf] %v126
  // Predicated region
  $region18: #{dc_generator_forward.16} parent=0 // pred_check
    _
  $region19: #{dc_generator_forward.16} parent=0 // pred_check_branch
    %144 = sbr.rel (0) target = $region21
  $region20: #{dc_generator_forward.16} parent=0 // pred_region
    _
  $region21: #{dc_generator_forward.16} parent=0 // pred_fallthru
    _
  // Predicated region
  $region22: #{dc_generator_forward.16} parent=0 // pred_check
    _
  $region23: #{dc_generator_forward.16} parent=0 // pred_check_branch
    %146 = sbr.rel (0) target = $region25
  $region24: #{dc_generator_forward.16} parent=0 // pred_region
    _
  $region25: #{dc_generator_forward.16} parent=0 // pred_fallthru
    _

// kernel: dc_generator_forward.17
$region0: #{dc_generator_forward.17}
  #allocation0 [shape = 'u32[]', space=smem, size = 0x4, offset = 0x4, fixed_abs, tag = 'smem constant byte address 0x4 - core index']
  #allocation1 [shape = 'u32[144,128]{1,0:T(1,128)}', space=vmem, size = 0x12000, scoped, tag = 'internal scratch']
  %s0 = inlined_call_operand.vmem [shape: bf16[4,2048,16], index: 0, kind: input, shape index: {}]
  %s1 = inlined_call_operand.vmem [shape: bf16[4,16,3], index: 1, kind: input, shape index: {}]
  %s2 = inlined_call_operand.vmem [shape: f32[4,2048,3], index: 2, kind: output, shape index: {}]
  %s3 = sld [smem:[#allocation0]]
  $region41: #{dc_generator_forward.17} parent=0
    _
  %s5 = ssub.s32 1, %s3
  %s6 = scalar_select 0, %s5, %s3
  loop: start=0, step=1, limit=18
  $region2: #{dc_generator_forward.17} parent=0 // loop_pre_header
    _
  $region3: #{dc_generator_forward.17} parent=0 // loop_header
    %s8 = sphi 0, %s12
    %p9 = scmp.ge.s32.totalorder %s8, 18
    %s15 = sphi 0, %s27
    %s16 = sphi 0, %s23
    %s17 = sphi 0, %s15
    %s18 = sphi 0, %s16
    %s19 = sphi 0, %s17
    %s20 = sphi 0, %s18
    %s32 = sphi 0, %s34
    %s35 = sphi 0, %s32
    %s36 = sphi 0, %s35
    %s52 = sphi 0, %s36
    %s58 = sphi 0, %s60
    %s61 = sphi 0, %s58
    %s62 = sphi 0, %s61
    %s78 = sphi 0, %s62
    %s86 = sphi 0, %s88
    %s89 = sphi 0, %s86
    %s90 = sphi 0, %s89
    %s106 = sphi 0, %s90
  $region4: #{dc_generator_forward.17} parent=0 // loop_header_branch
    %11 = sbr.rel (%p9) target = $region8
  $region5: #{dc_generator_forward.17} parent=0 // loop_body
    %s13 = ssub.s32 %s8, 1
    %s14 = ssub.s32 %s8, 2
    %s21 = sadd.s32 1, %s16
    %p22 = scmp.ge.s32.totalorder %s21, 4
    %s23 = scalar_select %p22, 0, %s21
    %s24 = sadd.s32 1, %s15
    %s25 = scalar_select %p22, %s24, %s15
    %p26 = scmp.ge.s32.totalorder %s25, 4
    %s27 = scalar_select %p26, 0, %s25
    %s28 = ssub.s32 %s15, %s27
    %s29 = ssub.s32 %s16, %s23
    %s30 = sor.u32 %s28, %s29
    %p31 = scmp.eq.s32.totalorder %s30, 0
    %s33 = sadd.s32 %s32, 1
    %s34 = scalar_select %p31, %s32, %s33
    %p37 = pneg %p31
    %p38 = scmp.eq.s32.totalorder %s8, 15
    %p39 = por %p37, %p38
    %p40 = scmp.ne.s32.totalorder %s32, %s35
    %p41 = scmp.eq.s32.totalorder %s8, 0
    %p42 = por %p40, %p41
    %p43 = scmp.ne.s32.totalorder %s32, %s35
    %p44 = scmp.eq.s32.totalorder %s13, 15
    %p45 = por %p43, %p44
    %p46 = scmp.ne.s32.totalorder %s35, %s36
    %p47 = scmp.eq.s32.totalorder %s13, 0
    %p48 = por %p46, %p47
    %p49 = scmp.ne.s32.totalorder %s35, %s36
    %p50 = scmp.eq.s32.totalorder %s14, 15
    %p51 = por %p49, %p50
    %p53 = scmp.ne.s32.totalorder %s36, %s52
    %p54 = scmp.eq.s32.totalorder %s14, 0
    %p55 = por %p53, %p54
    %s56 = ssub.s32 %s15, %s27
    %p57 = scmp.eq.s32.totalorder %s56, 0
    %s59 = sadd.s32 %s58, 1
    %s60 = scalar_select %p57, %s58, %s59
    %p63 = pneg %p57
    %p64 = scmp.eq.s32.totalorder %s8, 15
    %p65 = por %p63, %p64
    %p66 = scmp.ne.s32.totalorder %s58, %s61
    %p67 = scmp.eq.s32.totalorder %s8, 0
    %p68 = por %p66, %p67
    %p69 = scmp.ne.s32.totalorder %s58, %s61
    %p70 = scmp.eq.s32.totalorder %s13, 15
    %p71 = por %p69, %p70
    %p72 = scmp.ne.s32.totalorder %s61, %s62
    %p73 = scmp.eq.s32.totalorder %s13, 0
    %p74 = por %p72, %p73
    %p75 = scmp.ne.s32.totalorder %s61, %s62
    %p76 = scmp.eq.s32.totalorder %s14, 15
    %p77 = por %p75, %p76
    %p79 = scmp.ne.s32.totalorder %s62, %s78
    %p80 = scmp.eq.s32.totalorder %s14, 0
    %p81 = por %p79, %p80
    %s82 = ssub.s32 %s15, %s27
    %s83 = ssub.s32 %s16, %s23
    %s84 = sor.u32 %s82, %s83
    %p85 = scmp.eq.s32.totalorder %s84, 0
    %s87 = sadd.s32 %s86, 1
    %s88 = scalar_select %p85, %s86, %s87
    %p91 = pneg %p85
    %p92 = scmp.eq.s32.totalorder %s8, 15
    %p93 = por %p91, %p92
    %p94 = scmp.ne.s32.totalorder %s86, %s89
    %p95 = scmp.eq.s32.totalorder %s8, 0
    %p96 = por %p94, %p95
    %p97 = scmp.ne.s32.totalorder %s86, %s89
    %p98 = scmp.eq.s32.totalorder %s13, 15
    %p99 = por %p97, %p98
    %p100 = scmp.ne.s32.totalorder %s89, %s90
    %p101 = scmp.eq.s32.totalorder %s13, 0
    %p102 = por %p100, %p101
    %p103 = scmp.ne.s32.totalorder %s89, %s90
    %p104 = scmp.eq.s32.totalorder %s14, 15
    %p105 = por %p103, %p104
    %p107 = scmp.ne.s32.totalorder %s90, %s106
    %p108 = scmp.eq.s32.totalorder %s14, 0
    %p109 = por %p107, %p108
    %p110 = scmp.le.s32.totalorder 1, %s8
    %p111 = scmp.lt.s32.totalorder %s8, 17
    %p112 = pnand %p110, %p111
    %p113 = pneg %p112
    // Predicated region
    $region9: #{dc_generator_forward.17} parent=5 // pred_check
      _
    $region10: #{dc_generator_forward.17} parent=5 // pred_check_branch
      %115 = sbr.rel (%p112) target = $region12
    $region11: #{dc_generator_forward.17} parent=5 // pred_region
      %s116 = ssub.s32 %s8, 1
    $region12: #{dc_generator_forward.17} parent=5 // pred_fallthru
      _
    %p117 = scmp.lt.s32.totalorder %s8, 16
    // Predicated region
    $region13: #{dc_generator_forward.17} parent=5 // pred_check
      %p118 = pneg %p117
    $region14: #{dc_generator_forward.17} parent=5 // pred_check_branch
      %120 = sbr.rel (%p118) target = $region16
    $region15: #{dc_generator_forward.17} parent=5 // pred_region
      // Predicated region
      $region17: #{dc_generator_forward.17} parent=15 // pred_check
        %p121 = pneg %p42
      $region18: #{dc_generator_forward.17} parent=15 // pred_check_branch
        %123 = sbr.rel (%p121) target = $region20
      $region19: #{dc_generator_forward.17} parent=15 // pred_region
        %s124 = smul.u32 64, %s16
        %p125 = scmp.lt.s32.totalorder %s15, 3
        %s126 = scalar_select %p125, %s15, 3
        %p127 = scmp.lt.s32.totalorder %s124, 255
        %s128 = scalar_select %p127, %s124, 255
        %s129 = smul.addr %s126, 256
        %s130 = sadd.s32 %s128, %s129
        %s131 = smul.addr %s130, 4
        %s132 = scalar_lea.vmem %s0, %s131
        %s133 = smul.u32 64, %s16
      $region20: #{dc_generator_forward.17} parent=15 // pred_fallthru
        _
      // Predicated region
      $region21: #{dc_generator_forward.17} parent=15 // pred_check
        %p134 = pneg %p68
      $region22: #{dc_generator_forward.17} parent=15 // pred_check_branch
        %136 = sbr.rel (%p134) target = $region24
      $region23: #{dc_generator_forward.17} parent=15 // pred_region
        %p137 = scmp.lt.s32.totalorder %s15, 3
        %s138 = scalar_select %p137, %s15, 3
        %s139 = smul.addr %s138, 2
        %s140 = smul.addr %s139, 4
        %s141 = scalar_lea.vmem %s1, %s140
      $region24: #{dc_generator_forward.17} parent=15 // pred_fallthru
        _
    $region16: #{dc_generator_forward.17} parent=5 // pred_fallthru
      _
    %p142 = scmp.le.s32.totalorder 1, %s8
    %p143 = scmp.lt.s32.totalorder %s8, 17
    %p144 = pnand %p142, %p143
    %p145 = pneg %p144
    // Predicated region
    $region25: #{dc_generator_forward.17} parent=5 // pred_check
      _
    $region26: #{dc_generator_forward.17} parent=5 // pred_check_branch
      %147 = sbr.rel (%p144) target = $region28
    $region27: #{dc_generator_forward.17} parent=5 // pred_region
      %s148 = ssub.s32 %s8, 1
      %s149 = smul.u32 64, %s18
      %p150 = scmp.lt.s32.totalorder %s17, 3
      %s151 = scalar_select %p150, %s17, 3
      %p152 = scmp.lt.s32.totalorder %s149, 255
      %s153 = scalar_select %p152, %s149, 255
      %s154 = smul.addr %s151, 256
      %s155 = sadd.s32 %s153, %s154
      %s156 = smul.addr %s155, 4
      %s157 = scalar_lea.vmem %s0, %s156
      %p158 = pneg %p48
      %p159 = pneg %p45
      %p160 = scmp.lt.s32.totalorder %s17, 3
      %s161 = scalar_select %p160, %s17, 3
      %s162 = smul.addr %s161, 2
      %s163 = smul.addr %s162, 4
      %s164 = scalar_lea.vmem %s1, %s163
      %p165 = pneg %p74
      %p166 = pneg %p71
      %p167 = pneg %p102
      %p168 = pneg %p99
      %s169 = smul.u32 64, %s18
      %p170 = scmp.lt.s32.totalorder %s17, 3
      %s171 = scalar_select %p170, %s17, 3
      %p172 = scmp.lt.s32.totalorder %s169, 255
      %s173 = scalar_select %p172, %s169, 255
      %s174 = smul.addr %s171, 256
      %s175 = sadd.s32 %s173, %s174
      %s176 = smul.addr %s175, 8
      %s177 = scalar_lea.vmem %s2, %s176
      %s178 = smul.u32 64, %s18
      %p179 = scmp.lt.s32.totalorder %s17, 3
      %s180 = scalar_select %p179, %s17, 3
      %p181 = scmp.lt.s32.totalorder %s178, 255
      %s182 = scalar_select %p181, %s178, 255
      %s183 = smul.addr %s180, 256
      %s184 = sadd.s32 %s182, %s183
      %s185 = smul.addr %s184, 4
      %s186 = scalar_lea.vmem %s0, %s185
      %s187 = smul.u32 64, %s18
      %p188 = scmp.lt.s32.totalorder %s17, 3
      %s189 = scalar_select %p188, %s17, 3
      %s190 = smul.addr %s189, 2
      %s191 = smul.addr %s190, 4
      %s192 = scalar_lea.vmem %s1, %s191
      %s193 = smul.u32 64, %s18
      %p194 = scmp.lt.s32.totalorder %s17, 3
      %s195 = scalar_select %p194, %s17, 3
      %p196 = scmp.lt.s32.totalorder %s193, 255
      %s197 = scalar_select %p196, %s193, 255
      %s198 = smul.addr %s195, 256
      %s199 = sadd.s32 %s197, %s198
      %s200 = smul.addr %s199, 8
      %s201 = scalar_lea.vmem %s2, %s200
      %s202 = smul.u32 64, %s18
      %v204 = vld [vmem:[%s186] sm:$0xf]
      %v205 = vld [vmem:[%s186 + $0x4] sm:$0xf]
      %v206 = vld [vmem:[%s186 + $0x8] sm:$0xf]
      %v207 = vld [vmem:[%s186 + $0xc] sm:$0xf]
      %v208 = vld [vmem:[%s186 + $0x10] sm:$0xf]
      %v209 = vld [vmem:[%s186 + $0x14] sm:$0xf]
      %v210 = vld [vmem:[%s186 + $0x18] sm:$0xf]
      %v211 = vld [vmem:[%s186 + $0x1c] sm:$0xf]
      %v212 = vld [vmem:[%s186 + $0x20] sm:$0xf]
      %v213 = vld [vmem:[%s186 + $0x24] sm:$0xf]
      %v214 = vld [vmem:[%s186 + $0x28] sm:$0xf]
      %v215 = vld [vmem:[%s186 + $0x2c] sm:$0xf]
      %v216 = vld [vmem:[%s186 + $0x30] sm:$0xf]
      %v217 = vld [vmem:[%s186 + $0x34] sm:$0xf]
      %v218 = vld [vmem:[%s186 + $0x38] sm:$0xf]
      %v219 = vld [vmem:[%s186 + $0x3c] sm:$0xf]
      %v220 = vld [vmem:[%s186 + $0x40] sm:$0xf]
      %v221 = vld [vmem:[%s186 + $0x44] sm:$0xf]
      %v222 = vld [vmem:[%s186 + $0x48] sm:$0xf]
      %v223 = vld [vmem:[%s186 + $0x4c] sm:$0xf]
      %v224 = vld [vmem:[%s186 + $0x50] sm:$0xf]
      %v225 = vld [vmem:[%s186 + $0x54] sm:$0xf]
      %v226 = vld [vmem:[%s186 + $0x58] sm:$0xf]
      %v227 = vld [vmem:[%s186 + $0x5c] sm:$0xf]
      %v228 = vld [vmem:[%s186 + $0x60] sm:$0xf]
      %v229 = vld [vmem:[%s186 + $0x64] sm:$0xf]
      %v230 = vld [vmem:[%s186 + $0x68] sm:$0xf]
      %v231 = vld [vmem:[%s186 + $0x6c] sm:$0xf]
      %v232 = vld [vmem:[%s186 + $0x70] sm:$0xf]
      %v233 = vld [vmem:[%s186 + $0x74] sm:$0xf]
      %v234 = vld [vmem:[%s186 + $0x78] sm:$0xf]
      %v235 = vld [vmem:[%s186 + $0x7c] sm:$0xf]
      %v236 = vld [vmem:[%s186 + $0x80] sm:$0xf]
      %v237 = vld [vmem:[%s186 + $0x84] sm:$0xf]
      %v238 = vld [vmem:[%s186 + $0x88] sm:$0xf]
      %v239 = vld [vmem:[%s186 + $0x8c] sm:$0xf]
      %v240 = vld [vmem:[%s186 + $0x90] sm:$0xf]
      %v241 = vld [vmem:[%s186 + $0x94] sm:$0xf]
      %v242 = vld [vmem:[%s186 + $0x98] sm:$0xf]
      %v243 = vld [vmem:[%s186 + $0x9c] sm:$0xf]
      %v244 = vld [vmem:[%s186 + $0xa0] sm:$0xf]
      %v245 = vld [vmem:[%s186 + $0xa4] sm:$0xf]
      %v246 = vld [vmem:[%s186 + $0xa8] sm:$0xf]
      %v247 = vld [vmem:[%s186 + $0xac] sm:$0xf]
      %v248 = vld [vmem:[%s186 + $0xb0] sm:$0xf]
      %v249 = vld [vmem:[%s186 + $0xb4] sm:$0xf]
      %v250 = vld [vmem:[%s186 + $0xb8] sm:$0xf]
      %v251 = vld [vmem:[%s186 + $0xbc] sm:$0xf]
      %v252 = vld [vmem:[%s186 + $0xc0] sm:$0xf]
      %v253 = vld [vmem:[%s186 + $0xc4] sm:$0xf]
      %v254 = vld [vmem:[%s186 + $0xc8] sm:$0xf]
      %v255 = vld [vmem:[%s186 + $0xcc] sm:$0xf]
      %v256 = vld [vmem:[%s186 + $0xd0] sm:$0xf]
      %v257 = vld [vmem:[%s186 + $0xd4] sm:$0xf]
      %v258 = vld [vmem:[%s186 + $0xd8] sm:$0xf]
      %v259 = vld [vmem:[%s186 + $0xdc] sm:$0xf]
      %v260 = vld [vmem:[%s186 + $0xe0] sm:$0xf]
      %v261 = vld [vmem:[%s186 + $0xe4] sm:$0xf]
      %v262 = vld [vmem:[%s186 + $0xe8] sm:$0xf]
      %v263 = vld [vmem:[%s186 + $0xec] sm:$0xf]
      %v264 = vld [vmem:[%s186 + $0xf0] sm:$0xf]
      %v265 = vld [vmem:[%s186 + $0xf4] sm:$0xf]
      %v266 = vld [vmem:[%s186 + $0xf8] sm:$0xf]
      %v267 = vld [vmem:[%s186 + $0xfc] sm:$0xf]
      %v268 = vld [vmem:[%s192] sm:$0xf]
      %v269 = vld [vmem:[%s192 + $0x4] sm:$0xf]
      %v334 = vunpack.c.l.b16 %v204
      %v335 = vunpack.c.l.b16 %v205
      %v336 = vunpack.c.l.b16 %v206
      %v337 = vunpack.c.l.b16 %v207
      %v338 = vunpack.c.l.b16 %v208
      %v339 = vunpack.c.l.b16 %v209
      %v340 = vunpack.c.l.b16 %v210
      %v341 = vunpack.c.l.b16 %v211
      %v342 = vunpack.c.l.b16 %v212
      %v343 = vunpack.c.l.b16 %v213
      %v344 = vunpack.c.l.b16 %v214
      %v345 = vunpack.c.l.b16 %v215
      %v346 = vunpack.c.l.b16 %v216
      %v347 = vunpack.c.l.b16 %v217
      %v348 = vunpack.c.l.b16 %v218
      %v349 = vunpack.c.l.b16 %v219
      %v350 = vunpack.c.l.b16 %v220
      %v351 = vunpack.c.l.b16 %v221
      %v352 = vunpack.c.l.b16 %v222
      %v353 = vunpack.c.l.b16 %v223
      %v354 = vunpack.c.l.b16 %v224
      %v355 = vunpack.c.l.b16 %v225
      %v356 = vunpack.c.l.b16 %v226
      %v357 = vunpack.c.l.b16 %v227
      %v358 = vunpack.c.l.b16 %v228
      %v359 = vunpack.c.l.b16 %v229
      %v360 = vunpack.c.l.b16 %v230
      %v361 = vunpack.c.l.b16 %v231
      %v362 = vunpack.c.l.b16 %v232
      %v363 = vunpack.c.l.b16 %v233
      %v364 = vunpack.c.l.b16 %v234
      %v365 = vunpack.c.l.b16 %v235
      %v366 = vunpack.c.l.b16 %v236
      %v367 = vunpack.c.l.b16 %v237
      %v368 = vunpack.c.l.b16 %v238
      %v369 = vunpack.c.l.b16 %v239
      %v370 = vunpack.c.l.b16 %v240
      %v371 = vunpack.c.l.b16 %v241
      %v372 = vunpack.c.l.b16 %v242
      %v373 = vunpack.c.l.b16 %v243
      %v374 = vunpack.c.l.b16 %v244
      %v375 = vunpack.c.l.b16 %v245
      %v376 = vunpack.c.l.b16 %v246
      %v377 = vunpack.c.l.b16 %v247
      %v378 = vunpack.c.l.b16 %v248
      %v379 = vunpack.c.l.b16 %v249
      %v380 = vunpack.c.l.b16 %v250
      %v381 = vunpack.c.l.b16 %v251
      %v382 = vunpack.c.l.b16 %v252
      %v383 = vunpack.c.l.b16 %v253
      %v384 = vunpack.c.l.b16 %v254
      %v385 = vunpack.c.l.b16 %v255
      %v386 = vunpack.c.l.b16 %v256
      %v387 = vunpack.c.l.b16 %v257
      %v388 = vunpack.c.l.b16 %v258
      %v389 = vunpack.c.l.b16 %v259
      %v390 = vunpack.c.l.b16 %v260
      %v391 = vunpack.c.l.b16 %v261
      %v392 = vunpack.c.l.b16 %v262
      %v393 = vunpack.c.l.b16 %v263
      %v394 = vunpack.c.l.b16 %v264
      %v395 = vunpack.c.l.b16 %v265
      %v396 = vunpack.c.l.b16 %v266
      %v397 = vunpack.c.l.b16 %v267
      %v398 = vpack.c.b16 %v335, %v334
      %v399 = vpack.c.b16 %v337, %v336
      %v400 = vpack.c.b16 %v339, %v338
      %v401 = vpack.c.b16 %v341, %v340
      %v402 = vpack.c.b16 %v343, %v342
      %v403 = vpack.c.b16 %v345, %v344
      %v404 = vpack.c.b16 %v347, %v346
      %v405 = vpack.c.b16 %v349, %v348
      %v406 = vpack.c.b16 %v351, %v350
      %v407 = vpack.c.b16 %v353, %v352
      %v408 = vpack.c.b16 %v355, %v354
      %v409 = vpack.c.b16 %v357, %v356
      %v410 = vpack.c.b16 %v359, %v358
      %v411 = vpack.c.b16 %v361, %v360
      %v412 = vpack.c.b16 %v363, %v362
      %v413 = vpack.c.b16 %v365, %v364
      %v414 = vpack.c.b16 %v367, %v366
      %v415 = vpack.c.b16 %v369, %v368
      %v416 = vpack.c.b16 %v371, %v370
      %v417 = vpack.c.b16 %v373, %v372
      %v418 = vpack.c.b16 %v375, %v374
      %v419 = vpack.c.b16 %v377, %v376
      %v420 = vpack.c.b16 %v379, %v378
      %v421 = vpack.c.b16 %v381, %v380
      %v422 = vpack.c.b16 %v383, %v382
      %v423 = vpack.c.b16 %v385, %v384
      %v424 = vpack.c.b16 %v387, %v386
      %v425 = vpack.c.b16 %v389, %v388
      %v426 = vpack.c.b16 %v391, %v390
      %v427 = vpack.c.b16 %v393, %v392
      %v428 = vpack.c.b16 %v395, %v394
      %v429 = vpack.c.b16 %v397, %v396
      %v432 = vunpack.c.l.b16 %v268
      %v433 = vunpack.c.l.b16 %v269
      %v434 = vpack.c.b16 %v433, %v432
      %vm436 = vcmask 130048
      %v438 = vsel %vm436, %v398, 0
      %v441 = vsel %vm436, %v399, 0
      %v444 = vsel %vm436, %v400, 0
      %v447 = vsel %vm436, %v401, 0
      %v450 = vsel %vm436, %v402, 0
      %v453 = vsel %vm436, %v403, 0
      %v456 = vsel %vm436, %v404, 0
      %v459 = vsel %vm436, %v405, 0
      %v462 = vsel %vm436, %v406, 0
      %v465 = vsel %vm436, %v407, 0
      %v468 = vsel %vm436, %v408, 0
      %v471 = vsel %vm436, %v409, 0
      %v474 = vsel %vm436, %v410, 0
      %v477 = vsel %vm436, %v411, 0
      %v480 = vsel %vm436, %v412, 0
      %v483 = vsel %vm436, %v413, 0
      %v486 = vsel %vm436, %v414, 0
      %v489 = vsel %vm436, %v415, 0
      %v492 = vsel %vm436, %v416, 0
      %v495 = vsel %vm436, %v417, 0
      %v498 = vsel %vm436, %v418, 0
      %v501 = vsel %vm436, %v419, 0
      %v504 = vsel %vm436, %v420, 0
      %v507 = vsel %vm436, %v421, 0
      %v510 = vsel %vm436, %v422, 0
      %v513 = vsel %vm436, %v423, 0
      %v516 = vsel %vm436, %v424, 0
      %v519 = vsel %vm436, %v425, 0
      %v522 = vsel %vm436, %v426, 0
      %v525 = vsel %vm436, %v427, 0
      %v528 = vsel %vm436, %v428, 0
      %v531 = vsel %vm436, %v429, 0
      %533 = vmatprep.subr.bf16.mxu0 0
      %534 = vmatpush1.bf16.msra.mxu0 %v434
      %535 = vmatprep.subr.bf16.mxu0 0
      %536 = vmatpush1.bf16.msra.mxu0 0
      %537 = vmatprep.subr.bf16.mxu0 0
      %538 = vmatpush1.bf16.msra.mxu0 0
      %539 = vmatprep.subr.bf16.mxu0 0
      %540 = vmatpush1.bf16.msra.mxu0 0
      %541 = vmatprep.subr.bf16.mxu0 0
      %542 = vmatpush1.bf16.msra.mxu0 0
      %543 = vmatprep.subr.bf16.mxu0 0
      %544 = vmatpush1.bf16.msra.mxu0 0
      %545 = vmatprep.subr.bf16.mxu0 0
      %546 = vmatpush1.bf16.msra.mxu0 0
      %547 = vmatprep.subr.bf16.mxu0 0
      %548 = vmatpush1.bf16.msra.mxu0 0
      %549 = vmatprep.subr.bf16.mxu0 0
      %550 = vmatpush1.bf16.msra.mxu0 0
      %551 = vmatprep.subr.bf16.mxu0 0
      %552 = vmatpush1.bf16.msra.mxu0 0
      %553 = vmatprep.subr.bf16.mxu0 0
      %554 = vmatpush1.bf16.msra.mxu0 0
      %555 = vmatprep.subr.bf16.mxu0 0
      %556 = vmatpush1.bf16.msra.mxu0 0
      %557 = vmatprep.subr.bf16.mxu0 0
      %558 = vmatpush1.bf16.msra.mxu0 0
      %559 = vmatprep.subr.bf16.mxu0 0
      %560 = vmatpush1.bf16.msra.mxu0 0
      %561 = vmatprep.subr.bf16.mxu0 0
      %562 = vmatpush1.bf16.msra.mxu0 0
      %563 = vmatprep.subr.bf16.mxu0 0
      %564 = vmatpush1.bf16.msra.mxu0 0
      %565 = vmatprep.mubr.bf16.mxu0 0
      %566 = vmatmul.mubr.bf16.gmra.mrb[0].mxu0 %v438
      %v567 = vpop.f32.mrb[0].mxu0
      %v568 = vadd.f32 0.0, %v567
      %v569 = vpop.f32.mrb[0].mxu0
      %v570 = vpop.f32.mrb[0].mxu0
      %v571 = vadd.f32 0.0, %v570
      %v572 = vpop.f32.mrb[0].mxu0
      %573 = vmatprep.mubr.bf16.mxu0 0
      %574 = vmatmul.mubr.bf16.gmra.mrb[0].mxu0 %v441
      %v575 = vpop.f32.mrb[0].mxu0
      %v576 = vadd.f32 0.0, %v575
      %v577 = vpop.f32.mrb[0].mxu0
      %v578 = vpop.f32.mrb[0].mxu0
      %v579 = vadd.f32 0.0, %v578
      %v580 = vpop.f32.mrb[0].mxu0
      %581 = vmatprep.mubr.bf16.mxu0 0
      %582 = vmatmul.mubr.bf16.gmra.mrb[0].mxu0 %v444
      %v583 = vpop.f32.mrb[0].mxu0
      %v584 = vadd.f32 0.0, %v583
      %v585 = vpop.f32.mrb[0].mxu0
      %v586 = vpop.f32.mrb[0].mxu0
      %v587 = vadd.f32 0.0, %v586
      %v588 = vpop.f32.mrb[0].mxu0
      %589 = vmatprep.mubr.bf16.mxu0 0
      %590 = vmatmul.mubr.bf16.gmra.mrb[0].mxu0 %v447
      %v591 = vpop.f32.mrb[0].mxu0
      %v592 = vadd.f32 0.0, %v591
      %v593 = vpop.f32.mrb[0].mxu0
      %v594 = vpop.f32.mrb[0].mxu0
      %v595 = vadd.f32 0.0, %v594
      %v596 = vpop.f32.mrb[0].mxu0
      %597 = vmatprep.mubr.bf16.mxu0 0
      %598 = vmatmul.mubr.bf16.gmra.mrb[0].mxu0 %v450
      %v599 = vpop.f32.mrb[0].mxu0
      %v600 = vadd.f32 0.0, %v599
      %v601 = vpop.f32.mrb[0].mxu0
      %v602 = vpop.f32.mrb[0].mxu0
      %v603 = vadd.f32 0.0, %v602
      %v604 = vpop.f32.mrb[0].mxu0
      %605 = vmatprep.mubr.bf16.mxu0 0
      %606 = vmatmul.mubr.bf16.gmra.mrb[0].mxu0 %v453
      %v607 = vpop.f32.mrb[0].mxu0
      %v608 = vadd.f32 0.0, %v607
      %v609 = vpop.f32.mrb[0].mxu0
      %v610 = vpop.f32.mrb[0].mxu0
      %v611 = vadd.f32 0.0, %v610
      %v612 = vpop.f32.mrb[0].mxu0
      %613 = vmatprep.mubr.bf16.mxu0 0
      %614 = vmatmul.mubr.bf16.gmra.mrb[0].mxu0 %v456
      %v615 = vpop.f32.mrb[0].mxu0
      %v616 = vadd.f32 0.0, %v615
      %v617 = vpop.f32.mrb[0].mxu0
      %v618 = vpop.f32.mrb[0].mxu0
      %v619 = vadd.f32 0.0, %v618
      %v620 = vpop.f32.mrb[0].mxu0
      %621 = vmatprep.mubr.bf16.mxu0 0
      %622 = vmatmul.mubr.bf16.gmra.mrb[0].mxu0 %v459
      %v623 = vpop.f32.mrb[0].mxu0
      %v624 = vadd.f32 0.0, %v623
      %v625 = vpop.f32.mrb[0].mxu0
      %v626 = vpop.f32.mrb[0].mxu0
      %v627 = vadd.f32 0.0, %v626
      %v628 = vpop.f32.mrb[0].mxu0
      %629 = vmatprep.mubr.bf16.mxu0 0
      %630 = vmatmul.mubr.bf16.gmra.mrb[0].mxu0 %v462
      %v631 = vpop.f32.mrb[0].mxu0
      %v632 = vadd.f32 0.0, %v631
      %v633 = vpop.f32.mrb[0].mxu0
      %v634 = vpop.f32.mrb[0].mxu0
      %v635 = vadd.f32 0.0, %v634
      %v636 = vpop.f32.mrb[0].mxu0
      %637 = vmatprep.mubr.bf16.mxu0 0
      %638 = vmatmul.mubr.bf16.gmra.mrb[0].mxu0 %v465
      %v639 = vpop.f32.mrb[0].mxu0
      %v640 = vadd.f32 0.0, %v639
      %v641 = vpop.f32.mrb[0].mxu0
      %v642 = vpop.f32.mrb[0].mxu0
      %v643 = vadd.f32 0.0, %v642
      %v644 = vpop.f32.mrb[0].mxu0
      %645 = vmatprep.mubr.bf16.mxu0 0
      %646 = vmatmul.mubr.bf16.gmra.mrb[0].mxu0 %v468
      %v647 = vpop.f32.mrb[0].mxu0
      %v648 = vadd.f32 0.0, %v647
      %v649 = vpop.f32.mrb[0].mxu0
      %v650 = vpop.f32.mrb[0].mxu0
      %v651 = vadd.f32 0.0, %v650
      %v652 = vpop.f32.mrb[0].mxu0
      %653 = vmatprep.mubr.bf16.mxu0 0
      %654 = vmatmul.mubr.bf16.gmra.mrb[0].mxu0 %v471
      %v655 = vpop.f32.mrb[0].mxu0
      %v656 = vadd.f32 0.0, %v655
      %v657 = vpop.f32.mrb[0].mxu0
      %v658 = vpop.f32.mrb[0].mxu0
      %v659 = vadd.f32 0.0, %v658
      %v660 = vpop.f32.mrb[0].mxu0
      %661 = vmatprep.mubr.bf16.mxu0 0
      %662 = vmatmul.mubr.bf16.gmra.mrb[0].mxu0 %v474
      %v663 = vpop.f32.mrb[0].mxu0
      %v664 = vadd.f32 0.0, %v663
      %v665 = vpop.f32.mrb[0].mxu0
      %v666 = vpop.f32.mrb[0].mxu0
      %v667 = vadd.f32 0.0, %v666
      %v668 = vpop.f32.mrb[0].mxu0
      %669 = vmatprep.mubr.bf16.mxu0 0
      %670 = vmatmul.mubr.bf16.gmra.mrb[0].mxu0 %v477
      %v671 = vpop.f32.mrb[0].mxu0
      %v672 = vadd.f32 0.0, %v671
      %v673 = vpop.f32.mrb[0].mxu0
      %v674 = vpop.f32.mrb[0].mxu0
      %v675 = vadd.f32 0.0, %v674
      %v676 = vpop.f32.mrb[0].mxu0
      %677 = vmatprep.mubr.bf16.mxu0 0
      %678 = vmatmul.mubr.bf16.gmra.mrb[0].mxu0 %v480
      %v679 = vpop.f32.mrb[0].mxu0
      %v680 = vadd.f32 0.0, %v679
      %v681 = vpop.f32.mrb[0].mxu0
      %v682 = vpop.f32.mrb[0].mxu0
      %v683 = vadd.f32 0.0, %v682
      %v684 = vpop.f32.mrb[0].mxu0
      %685 = vmatprep.mubr.bf16.mxu0 0
      %686 = vmatmul.mubr.bf16.gmra.mrb[0].mxu0 %v483
      %v687 = vpop.f32.mrb[0].mxu0
      %v688 = vadd.f32 0.0, %v687
      %v689 = vpop.f32.mrb[0].mxu0
      %v690 = vpop.f32.mrb[0].mxu0
      %v691 = vadd.f32 0.0, %v690
      %v692 = vpop.f32.mrb[0].mxu0
      %693 = vmatprep.mubr.bf16.mxu0 0
      %694 = vmatmul.mubr.bf16.gmra.mrb[0].mxu0 %v486
      %v695 = vpop.f32.mrb[0].mxu0
      %v696 = vadd.f32 0.0, %v695
      %v697 = vpop.f32.mrb[0].mxu0
      %v698 = vpop.f32.mrb[0].mxu0
      %v699 = vadd.f32 0.0, %v698
      %v700 = vpop.f32.mrb[0].mxu0
      %701 = vmatprep.mubr.bf16.mxu0 0
      %702 = vmatmul.mubr.bf16.gmra.mrb[0].mxu0 %v489
      %v703 = vpop.f32.mrb[0].mxu0
      %v704 = vadd.f32 0.0, %v703
      %v705 = vpop.f32.mrb[0].mxu0
      %v706 = vpop.f32.mrb[0].mxu0
      %v707 = vadd.f32 0.0, %v706
      %v708 = vpop.f32.mrb[0].mxu0
      %709 = vmatprep.mubr.bf16.mxu0 0
      %710 = vmatmul.mubr.bf16.gmra.mrb[0].mxu0 %v492
      %v711 = vpop.f32.mrb[0].mxu0
      %v712 = vadd.f32 0.0, %v711
      %v713 = vpop.f32.mrb[0].mxu0
      %v714 = vpop.f32.mrb[0].mxu0
      %v715 = vadd.f32 0.0, %v714
      %v716 = vpop.f32.mrb[0].mxu0
      %717 = vmatprep.mubr.bf16.mxu0 0
      %718 = vmatmul.mubr.bf16.gmra.mrb[0].mxu0 %v495
      %v719 = vpop.f32.mrb[0].mxu0
      %v720 = vadd.f32 0.0, %v719
      %v721 = vpop.f32.mrb[0].mxu0
      %v722 = vpop.f32.mrb[0].mxu0
      %v723 = vadd.f32 0.0, %v722
      %v724 = vpop.f32.mrb[0].mxu0
      %725 = vmatprep.mubr.bf16.mxu0 0
      %726 = vmatmul.mubr.bf16.gmra.mrb[0].mxu0 %v498
      %v727 = vpop.f32.mrb[0].mxu0
      %v728 = vadd.f32 0.0, %v727
      %v729 = vpop.f32.mrb[0].mxu0
      %v730 = vpop.f32.mrb[0].mxu0
      %v731 = vadd.f32 0.0, %v730
      %v732 = vpop.f32.mrb[0].mxu0
      %733 = vmatprep.mubr.bf16.mxu0 0
      %734 = vmatmul.mubr.bf16.gmra.mrb[0].mxu0 %v501
      %v735 = vpop.f32.mrb[0].mxu0
      %v736 = vadd.f32 0.0, %v735
      %v737 = vpop.f32.mrb[0].mxu0
      %v738 = vpop.f32.mrb[0].mxu0
      %v739 = vadd.f32 0.0, %v738
      %v740 = vpop.f32.mrb[0].mxu0
      %741 = vmatprep.mubr.bf16.mxu0 0
      %742 = vmatmul.mubr.bf16.gmra.mrb[0].mxu0 %v504
      %v743 = vpop.f32.mrb[0].mxu0
      %v744 = vadd.f32 0.0, %v743
      %v745 = vpop.f32.mrb[0].mxu0
      %v746 = vpop.f32.mrb[0].mxu0
      %v747 = vadd.f32 0.0, %v746
      %v748 = vpop.f32.mrb[0].mxu0
      %749 = vmatprep.mubr.bf16.mxu0 0
      %750 = vmatmul.mubr.bf16.gmra.mrb[0].mxu0 %v507
      %v751 = vpop.f32.mrb[0].mxu0
      %v752 = vadd.f32 0.0, %v751
      %v753 = vpop.f32.mrb[0].mxu0
      %v754 = vpop.f32.mrb[0].mxu0
      %v755 = vadd.f32 0.0, %v754
      %v756 = vpop.f32.mrb[0].mxu0
      %757 = vmatprep.mubr.bf16.mxu0 0
      %758 = vmatmul.mubr.bf16.gmra.mrb[0].mxu0 %v510
      %v759 = vpop.f32.mrb[0].mxu0
      %v760 = vadd.f32 0.0, %v759
      %v761 = vpop.f32.mrb[0].mxu0
      %v762 = vpop.f32.mrb[0].mxu0
      %v763 = vadd.f32 0.0, %v762
      %v764 = vpop.f32.mrb[0].mxu0
      %765 = vmatprep.mubr.bf16.mxu0 0
      %766 = vmatmul.mubr.bf16.gmra.mrb[0].mxu0 %v513
      %v767 = vpop.f32.mrb[0].mxu0
      %v768 = vadd.f32 0.0, %v767
      %v769 = vpop.f32.mrb[0].mxu0
      %v770 = vpop.f32.mrb[0].mxu0
      %v771 = vadd.f32 0.0, %v770
      %v772 = vpop.f32.mrb[0].mxu0
      %773 = vmatprep.mubr.bf16.mxu0 0
      %774 = vmatmul.mubr.bf16.gmra.mrb[0].mxu0 %v516
      %v775 = vpop.f32.mrb[0].mxu0
      %v776 = vadd.f32 0.0, %v775
      %v777 = vpop.f32.mrb[0].mxu0
      %v778 = vpop.f32.mrb[0].mxu0
      %v779 = vadd.f32 0.0, %v778
      %v780 = vpop.f32.mrb[0].mxu0
      %781 = vmatprep.mubr.bf16.mxu0 0
      %782 = vmatmul.mubr.bf16.gmra.mrb[0].mxu0 %v519
      %v783 = vpop.f32.mrb[0].mxu0
      %v784 = vadd.f32 0.0, %v783
      %v785 = vpop.f32.mrb[0].mxu0
      %v786 = vpop.f32.mrb[0].mxu0
      %v787 = vadd.f32 0.0, %v786
      %v788 = vpop.f32.mrb[0].mxu0
      %789 = vmatprep.mubr.bf16.mxu0 0
      %790 = vmatmul.mubr.bf16.gmra.mrb[0].mxu0 %v522
      %v791 = vpop.f32.mrb[0].mxu0
      %v792 = vadd.f32 0.0, %v791
      %v793 = vpop.f32.mrb[0].mxu0
      %v794 = vpop.f32.mrb[0].mxu0
      %v795 = vadd.f32 0.0, %v794
      %v796 = vpop.f32.mrb[0].mxu0
      %797 = vmatprep.mubr.bf16.mxu0 0
      %798 = vmatmul.mubr.bf16.gmra.mrb[0].mxu0 %v525
      %v799 = vpop.f32.mrb[0].mxu0
      %v800 = vadd.f32 0.0, %v799
      %v801 = vpop.f32.mrb[0].mxu0
      %v802 = vpop.f32.mrb[0].mxu0
      %v803 = vadd.f32 0.0, %v802
      %v804 = vpop.f32.mrb[0].mxu0
      %805 = vmatprep.mubr.bf16.mxu0 0
      %806 = vmatmul.mubr.bf16.gmra.mrb[0].mxu0 %v528
      %v807 = vpop.f32.mrb[0].mxu0
      %v808 = vadd.f32 0.0, %v807
      %v809 = vpop.f32.mrb[0].mxu0
      %v810 = vpop.f32.mrb[0].mxu0
      %v811 = vadd.f32 0.0, %v810
      %v812 = vpop.f32.mrb[0].mxu0
      %813 = vmatprep.mubr.bf16.mxu0 0
      %814 = vmatmul.mubr.bf16.gmra.mrb[0].mxu0 %v531
      %v815 = vpop.f32.mrb[0].mxu0
      %v816 = vadd.f32 0.0, %v815
      %v817 = vpop.f32.mrb[0].mxu0
      %v818 = vpop.f32.mrb[0].mxu0
      %v819 = vadd.f32 0.0, %v818
      %v820 = vpop.f32.mrb[0].mxu0
      %821 = vdwg.mxu0
      %v822 = vtanh.pop %v568
      %v823 = vtanh.pop %v571
      %v824 = vtanh.pop %v576
      %v825 = vtanh.pop %v579
      %v826 = vtanh.pop %v584
      %v827 = vtanh.pop %v587
      %v828 = vtanh.pop %v592
      %v829 = vtanh.pop %v595
      %v830 = vtanh.pop %v600
      %v831 = vtanh.pop %v603
      %v832 = vtanh.pop %v608
      %v833 = vtanh.pop %v611
      %v834 = vtanh.pop %v616
      %v835 = vtanh.pop %v619
      %v836 = vtanh.pop %v624
      %v837 = vtanh.pop %v627
      %v838 = vtanh.pop %v632
      %v839 = vtanh.pop %v635
      %v840 = vtanh.pop %v640
      %v841 = vtanh.pop %v643
      %v842 = vtanh.pop %v648
      %v843 = vtanh.pop %v651
      %v844 = vtanh.pop %v656
      %v845 = vtanh.pop %v659
      %v846 = vtanh.pop %v664
      %v847 = vtanh.pop %v667
      %v848 = vtanh.pop %v672
      %v849 = vtanh.pop %v675
      %v850 = vtanh.pop %v680
      %v851 = vtanh.pop %v683
      %v852 = vtanh.pop %v688
      %v853 = vtanh.pop %v691
      %v854 = vtanh.pop %v696
      %v855 = vtanh.pop %v699
      %v856 = vtanh.pop %v704
      %v857 = vtanh.pop %v707
      %v858 = vtanh.pop %v712
      %v859 = vtanh.pop %v715
      %v860 = vtanh.pop %v720
      %v861 = vtanh.pop %v723
      %v862 = vtanh.pop %v728
      %v863 = vtanh.pop %v731
      %v864 = vtanh.pop %v736
      %v865 = vtanh.pop %v739
      %v866 = vtanh.pop %v744
      %v867 = vtanh.pop %v747
      %v868 = vtanh.pop %v752
      %v869 = vtanh.pop %v755
      %v870 = vtanh.pop %v760
      %v871 = vtanh.pop %v763
      %v872 = vtanh.pop %v768
      %v873 = vtanh.pop %v771
      %v874 = vtanh.pop %v776
      %v875 = vtanh.pop %v779
      %v876 = vtanh.pop %v784
      %v877 = vtanh.pop %v787
      %v878 = vtanh.pop %v792
      %v879 = vtanh.pop %v795
      %v880 = vtanh.pop %v800
      %v881 = vtanh.pop %v803
      %v882 = vtanh.pop %v808
      %v883 = vtanh.pop %v811
      %v884 = vtanh.pop %v816
      %v885 = vtanh.pop %v819
      %vm886 = vcmask 23552
      %887 = vst.msk [vmem:[%s201] sm:$0xff] %vm886, %v822
      %888 = vst.msk [vmem:[%s201 + $0x8] sm:$0xff] %vm886, %v823
      %889 = vst.msk [vmem:[%s201 + $0x10] sm:$0xff] %vm886, %v824
      %890 = vst.msk [vmem:[%s201 + $0x18] sm:$0xff] %vm886, %v825
      %891 = vst.msk [vmem:[%s201 + $0x20] sm:$0xff] %vm886, %v826
      %892 = vst.msk [vmem:[%s201 + $0x28] sm:$0xff] %vm886, %v827
      %893 = vst.msk [vmem:[%s201 + $0x30] sm:$0xff] %vm886, %v828
      %894 = vst.msk [vmem:[%s201 + $0x38] sm:$0xff] %vm886, %v829
      %895 = vst.msk [vmem:[%s201 + $0x40] sm:$0xff] %vm886, %v830
      %896 = vst.msk [vmem:[%s201 + $0x48] sm:$0xff] %vm886, %v831
      %897 = vst.msk [vmem:[%s201 + $0x50] sm:$0xff] %vm886, %v832
      %898 = vst.msk [vmem:[%s201 + $0x58] sm:$0xff] %vm886, %v833
      %899 = vst.msk [vmem:[%s201 + $0x60] sm:$0xff] %vm886, %v834
      %900 = vst.msk [vmem:[%s201 + $0x68] sm:$0xff] %vm886, %v835
      %901 = vst.msk [vmem:[%s201 + $0x70] sm:$0xff] %vm886, %v836
      %902 = vst.msk [vmem:[%s201 + $0x78] sm:$0xff] %vm886, %v837
      %903 = vst.msk [vmem:[%s201 + $0x80] sm:$0xff] %vm886, %v838
      %904 = vst.msk [vmem:[%s201 + $0x88] sm:$0xff] %vm886, %v839
      %905 = vst.msk [vmem:[%s201 + $0x90] sm:$0xff] %vm886, %v840
      %906 = vst.msk [vmem:[%s201 + $0x98] sm:$0xff] %vm886, %v841
      %907 = vst.msk [vmem:[%s201 + $0xa0] sm:$0xff] %vm886, %v842
      %908 = vst.msk [vmem:[%s201 + $0xa8] sm:$0xff] %vm886, %v843
      %909 = vst.msk [vmem:[%s201 + $0xb0] sm:$0xff] %vm886, %v844
      %910 = vst.msk [vmem:[%s201 + $0xb8] sm:$0xff] %vm886, %v845
      %911 = vst.msk [vmem:[%s201 + $0xc0] sm:$0xff] %vm886, %v846
      %912 = vst.msk [vmem:[%s201 + $0xc8] sm:$0xff] %vm886, %v847
      %913 = vst.msk [vmem:[%s201 + $0xd0] sm:$0xff] %vm886, %v848
      %914 = vst.msk [vmem:[%s201 + $0xd8] sm:$0xff] %vm886, %v849
      %915 = vst.msk [vmem:[%s201 + $0xe0] sm:$0xff] %vm886, %v850
      %916 = vst.msk [vmem:[%s201 + $0xe8] sm:$0xff] %vm886, %v851
      %917 = vst.msk [vmem:[%s201 + $0xf0] sm:$0xff] %vm886, %v852
      %918 = vst.msk [vmem:[%s201 + $0xf8] sm:$0xff] %vm886, %v853
      %919 = vst.msk [vmem:[%s201 + $0x100] sm:$0xff] %vm886, %v854
      %920 = vst.msk [vmem:[%s201 + $0x108] sm:$0xff] %vm886, %v855
      %921 = vst.msk [vmem:[%s201 + $0x110] sm:$0xff] %vm886, %v856
      %922 = vst.msk [vmem:[%s201 + $0x118] sm:$0xff] %vm886, %v857
      %923 = vst.msk [vmem:[%s201 + $0x120] sm:$0xff] %vm886, %v858
      %924 = vst.msk [vmem:[%s201 + $0x128] sm:$0xff] %vm886, %v859
      %925 = vst.msk [vmem:[%s201 + $0x130] sm:$0xff] %vm886, %v860
      %926 = vst.msk [vmem:[%s201 + $0x138] sm:$0xff] %vm886, %v861
      %927 = vst.msk [vmem:[%s201 + $0x140] sm:$0xff] %vm886, %v862
      %928 = vst.msk [vmem:[%s201 + $0x148] sm:$0xff] %vm886, %v863
      %929 = vst.msk [vmem:[%s201 + $0x150] sm:$0xff] %vm886, %v864
      %930 = vst.msk [vmem:[%s201 + $0x158] sm:$0xff] %vm886, %v865
      %931 = vst.msk [vmem:[%s201 + $0x160] sm:$0xff] %vm886, %v866
      %932 = vst.msk [vmem:[%s201 + $0x168] sm:$0xff] %vm886, %v867
      %933 = vst.msk [vmem:[%s201 + $0x170] sm:$0xff] %vm886, %v868
      %934 = vst.msk [vmem:[%s201 + $0x178] sm:$0xff] %vm886, %v869
      %935 = vst.msk [vmem:[%s201 + $0x180] sm:$0xff] %vm886, %v870
      %936 = vst.msk [vmem:[%s201 + $0x188] sm:$0xff] %vm886, %v871
      %937 = vst.msk [vmem:[%s201 + $0x190] sm:$0xff] %vm886, %v872
      %938 = vst.msk [vmem:[%s201 + $0x198] sm:$0xff] %vm886, %v873
      %939 = vst.msk [vmem:[%s201 + $0x1a0] sm:$0xff] %vm886, %v874
      %940 = vst.msk [vmem:[%s201 + $0x1a8] sm:$0xff] %vm886, %v875
      %941 = vst.msk [vmem:[%s201 + $0x1b0] sm:$0xff] %vm886, %v876
      %942 = vst.msk [vmem:[%s201 + $0x1b8] sm:$0xff] %vm886, %v877
      %943 = vst.msk [vmem:[%s201 + $0x1c0] sm:$0xff] %vm886, %v878
      %944 = vst.msk [vmem:[%s201 + $0x1c8] sm:$0xff] %vm886, %v879
      %945 = vst.msk [vmem:[%s201 + $0x1d0] sm:$0xff] %vm886, %v880
      %946 = vst.msk [vmem:[%s201 + $0x1d8] sm:$0xff] %vm886, %v881
      %947 = vst.msk [vmem:[%s201 + $0x1e0] sm:$0xff] %vm886, %v882
      %948 = vst.msk [vmem:[%s201 + $0x1e8] sm:$0xff] %vm886, %v883
      %949 = vst.msk [vmem:[%s201 + $0x1f0] sm:$0xff] %vm886, %v884
      %950 = vst.msk [vmem:[%s201 + $0x1f8] sm:$0xff] %vm886, %v885
      %s951 = smul.u32 64, %s18
      %p952 = scmp.lt.s32.totalorder %s17, 3
      %s953 = scalar_select %p952, %s17, 3
      %p954 = scmp.lt.s32.totalorder %s951, 255
      %s955 = scalar_select %p954, %s951, 255
      %s956 = smul.addr %s953, 256
      %s957 = sadd.s32 %s955, %s956
      %s958 = smul.addr %s957, 8
      %s959 = scalar_lea.vmem %s2, %s958
      // Predicated region
      $region29: #{dc_generator_forward.17} parent=27 // pred_check
        %p960 = pneg %p99
      $region30: #{dc_generator_forward.17} parent=27 // pred_check_branch
        %962 = sbr.rel (%p960) target = $region32
      $region31: #{dc_generator_forward.17} parent=27 // pred_region
        %s963 = smul.u32 64, %s18
      $region32: #{dc_generator_forward.17} parent=27 // pred_fallthru
        _
    $region28: #{dc_generator_forward.17} parent=5 // pred_fallthru
      _
    %p964 = scmp.le.s32.totalorder 2, %s8
    // Predicated region
    $region33: #{dc_generator_forward.17} parent=5 // pred_check
      %p965 = pneg %p964
    $region34: #{dc_generator_forward.17} parent=5 // pred_check_branch
      %967 = sbr.rel (%p965) target = $region36
    $region35: #{dc_generator_forward.17} parent=5 // pred_region
      %s968 = ssub.s32 %s8, 2
      // Predicated region
      $region37: #{dc_generator_forward.17} parent=35 // pred_check
        %p969 = pneg %p105
      $region38: #{dc_generator_forward.17} parent=35 // pred_check_branch
        %971 = sbr.rel (%p969) target = $region40
      $region39: #{dc_generator_forward.17} parent=35 // pred_region
        %s972 = smul.u32 64, %s20
        %p973 = scmp.lt.s32.totalorder %s19, 3
        %s974 = scalar_select %p973, %s19, 3
        %p975 = scmp.lt.s32.totalorder %s972, 255
        %s976 = scalar_select %p975, %s972, 255
        %s977 = smul.addr %s974, 256
        %s978 = sadd.s32 %s976, %s977
        %s979 = smul.addr %s978, 8
        %s980 = scalar_lea.vmem %s2, %s979
      $region40: #{dc_generator_forward.17} parent=35 // pred_fallthru
        _
    $region36: #{dc_generator_forward.17} parent=5 // pred_fallthru
      _
  $region6: #{dc_generator_forward.17} parent=0 // loop_footer
    %s12 = sadd.s32 1, %s8
  $region7: #{dc_generator_forward.17} parent=0 // loop_footer_branch
    %7 = sbr.rel target = $region3
  $region8: #{dc_generator_forward.17} parent=0 // loop_exit
    _

</llo_original>
